<compile_context>
chip_gen: v6e
topology: v6e:2x2x1
jax: 0.10.0
libtpu: 0.0.40
codegen_flags: <defaults>
</compile_context>

<pallas_src>
import functools

import jax
import jax.numpy as jnp
from jax.experimental import pallas as pl
from jax.experimental.pallas import tpu as pltpu

_BN_EPS = 1e-5


def fold_bn(gamma, beta, mean, var, eps=_BN_EPS):
    # Inference-mode BatchNorm folded into a per-channel affine (f32).
    scale = gamma / jnp.sqrt(var + eps)
    shift = beta - mean * scale
    return scale.astype(jnp.float32), shift.astype(jnp.float32)


# ----------------------------------------------------------------------------
# Fused Pallas kernel: B images per grid step, everything stays in VMEM.
# ----------------------------------------------------------------------------
def _bottleneck_kernel(H, W, P, PAD, B, compute_dtype,
                       x_ref, w1_ref, w2_ref, w3_ref,
                       s1_ref, b1_ref, s2_ref, b2_ref, s3_ref, b3_ref,
                       o_ref, y1p_ref):
    HW = H * W
    f32 = jnp.float32

    # Column masks (by the OUTPUT pixel's w coordinate): taps that would read
    # across the left/right image edge contribute zero.
    col = jax.lax.broadcasted_iota(jnp.int32, (HW, 1), 0) % W
    not_left = (col != 0).astype(f32)        # for kw == 0 taps
    not_right = (col != W - 1).astype(f32)   # for kw == 2 taps

    # Zero the top/bottom halo rows of the scratch every grid step so
    # correctness never depends on grid scheduling / megacore scratch sharing.
    zpad = jnp.zeros((PAD, 3 * P), compute_dtype)
    y1p_ref[0:PAD, :] = zpad
    y1p_ref[PAD + HW:2 * PAD + HW, :] = zpad

    for b in range(B):                               # static unroll over images
        x = x_ref[b]                                 # (HW, Cin), HBM/io dtype
        xc = x.astype(compute_dtype)

        # --- conv1 (1x1) + bn1 + relu (f32 epilogue) --------------------------
        y1 = jnp.dot(xc, w1_ref[...], preferred_element_type=f32)   # (HW, P)
        y1 = jnp.maximum(y1 * s1_ref[...] + b1_ref[...], 0.0)

        # Pre-shift y1 by (kw-1) along the flattened spatial axis (XLU roll),
        # mask the row-wraparound at the image edges, and pack the three kw
        # variants along the lane axis.  Cast once to the compute dtype on
        # write; halo rows above/below stay zero.
        v0 = pltpu.roll(y1, 1, 0) * not_left          # value at (h, w-1)
        v2 = pltpu.roll(y1, HW - 1, 0) * not_right    # value at (h, w+1)
        y1p_ref[PAD:PAD + HW, :] = jnp.concatenate(
            [v0, y1, v2], axis=1).astype(compute_dtype)

        # --- conv2 (3x3, pad=1, stride=1) + bn2 + relu ------------------------
        # out2[i] = sum_kh y1packed[i + (kh-1)*W, :] @ W2[kh]    (K = 3P)
        acc = jnp.zeros((HW, P), f32)
        for kh in range(3):
            base = PAD + (kh - 1) * W                 # sublane-aligned if W%8==0
            tap = y1p_ref[base:base + HW, :]          # (HW, 3P), compute dtype
            acc = acc + jnp.dot(tap, w2_ref[kh], preferred_element_type=f32)
        y2 = jnp.maximum(acc * s2_ref[...] + b2_ref[...], 0.0)      # (HW, P)

        # --- conv3 (1x1) + bn3 + residual add + relu --------------------------
        y3 = jnp.dot(y2.astype(compute_dtype), w3_ref[...],
                     preferred_element_type=f32)                    # (HW, 4P)
        y3 = y3 * s3_ref[...] + b3_ref[...] + x.astype(f32)
        o_ref[b] = jnp.maximum(y3, 0.0).astype(o_ref.dtype)


# ----------------------------------------------------------------------------
# Wrappers
# ----------------------------------------------------------------------------
def bottleneck_forward_nhwc(x_nhwc, params, stride=1,
                            compute_dtype=jnp.bfloat16, images_per_block=1):
    """Fused Bottleneck forward, NHWC activations, downsample=None.

    HBM activation dtype == compute_dtype (bf16 on the performance path)."""
    N, H, W, Cin = x_nhwc.shape
    P = params["conv1_w"].shape[0]
    C4 = 4 * P
    # TODO(synk): stride != 1 and the downsample branch (non-identity residual)
    # are not implemented; BatchNorm is eval-mode (running stats) only.
    assert stride == 1 and Cin == C4, "downsample=None requires identity residual"
    assert N % images_per_block == 0, "batch must be divisible by images_per_block"
    # TODO(synk): per-block activations must fit VMEM (true for all ResNet-50
    # bottleneck shapes at images_per_block=1); a spatially-tiled variant would
    # be needed otherwise.

    B = images_per_block
    HW = H * W
    PAD = ((W + 1 + 7) // 8) * 8          # sublane-aligned halo for the 3x3 taps

    io_dtype = compute_dtype              # bf16 activations in HBM on perf path
    x_flat = x_nhwc.reshape(N, HW, Cin).astype(io_dtype)

    # Weights: 1x1 convs -> (Cin, Cout) matmuls; 3x3 conv -> three (3P, P)
    # matmuls indexed by kh, with rows ordered [kw, c_in] to match the lane
    # packing of the shifted taps.  Cast once to the MXU dtype.
    w1 = params["conv1_w"].reshape(P, Cin).T.astype(compute_dtype)             # (Cin, P)
    w2 = jnp.transpose(params["conv2_w"], (2, 3, 1, 0)).reshape(3, 3 * P, P)
    w2 = w2.astype(compute_dtype)                                              # (3, 3P, P)
    w3 = params["conv3_w"].reshape(C4, P).T.astype(compute_dtype)              # (P, C4)

    s1, b1 = fold_bn(params["bn1_g"], params["bn1_b"], params["bn1_m"], params["bn1_v"])
    s2, b2 = fold_bn(params["bn2_g"], params["bn2_b"], params["bn2_m"], params["bn2_v"])
    s3, b3 = fold_bn(params["bn3_g"], params["bn3_b"], params["bn3_m"], params["bn3_v"])
    s1, b1 = s1.reshape(1, P), b1.reshape(1, P)
    s2, b2 = s2.reshape(1, P), b2.reshape(1, P)
    s3, b3 = s3.reshape(1, C4), b3.reshape(1, C4)

    kernel = functools.partial(_bottleneck_kernel, H, W, P, PAD, B, compute_dtype)

    out = pl.pallas_call(
        kernel,
        out_shape=jax.ShapeDtypeStruct((N, HW, C4), io_dtype),
        grid=(N // B,),
        in_specs=[
            pl.BlockSpec((B, HW, Cin), lambda n: (n, 0, 0)),     # x (B images)
            pl.BlockSpec((Cin, P), lambda n: (0, 0)),            # w1
            pl.BlockSpec((3, 3 * P, P), lambda n: (0, 0, 0)),    # w2 (per-kh, K=3P)
            pl.BlockSpec((P, C4), lambda n: (0, 0)),             # w3
            pl.BlockSpec((1, P), lambda n: (0, 0)),              # s1
            pl.BlockSpec((1, P), lambda n: (0, 0)),              # b1
            pl.BlockSpec((1, P), lambda n: (0, 0)),              # s2
            pl.BlockSpec((1, P), lambda n: (0, 0)),              # b2
            pl.BlockSpec((1, C4), lambda n: (0, 0)),             # s3
            pl.BlockSpec((1, C4), lambda n: (0, 0)),             # b3
        ],
        out_specs=pl.BlockSpec((B, HW, C4), lambda n: (n, 0, 0)),
        scratch_shapes=[pltpu.VMEM((2 * PAD + HW, 3 * P), compute_dtype)],
        compiler_params=pltpu.CompilerParams(
            dimension_semantics=("parallel",),
            vmem_limit_bytes=32 * 1024 * 1024,   # safe for v7x's 64 MiB VMEM
        ),
    )(x_flat, w1, w2, w3, s1, b1, s2, b2, s3, b3)

    return out.reshape(N, H, W, C4)


def bottleneck_forward(x_nchw, params, stride=1, compute_dtype=jnp.bfloat16,
                       images_per_block=1):
    """NCHW (PyTorch) interface. Prefer bottleneck_forward_nhwc when the caller
    can keep NHWC activations (saves two full HBM passes of layout change)."""
    x_nhwc = jnp.transpose(x_nchw, (0, 2, 3, 1))
    out = bottleneck_forward_nhwc(x_nhwc, params, stride=stride,
                                  compute_dtype=compute_dtype,
                                  images_per_block=images_per_block)
    return jnp.transpose(out, (0, 3, 1, 2))


# ----------------------------------------------------------------------------
# Pure-JAX reference (for correctness check)
# ----------------------------------------------------------------------------
def _ref_forward(x, p, stride=1):
    def conv(x, w, s, pad):
        return jax.lax.conv_general_dilated(
            x, w, (s, s), pad, dimension_numbers=("NCHW", "OIHW", "NCHW"))

    def bn(x, g, b, m, v):
        g, b, m, v = (a.reshape(1, -1, 1, 1) for a in (g, b, m, v))
        return (x - m) / jnp.sqrt(v + _BN_EPS) * g + b

    out = jnp.maximum(bn(conv(x, p["conv1_w"], 1, "VALID"),
                         p["bn1_g"], p["bn1_b"], p["bn1_m"], p["bn1_v"]), 0.0)
    out = jnp.maximum(bn(conv(out, p["conv2_w"], stride, ((1, 1), (1, 1))),
                         p["bn2_g"], p["bn2_b"], p["bn2_m"], p["bn2_v"]), 0.0)
    out = bn(conv(out, p["conv3_w"], 1, "VALID"),
             p["bn3_g"], p["bn3_b"], p["bn3_m"], p["bn3_v"])
    return jnp.maximum(out + x, 0.0)


# ----------------------------------------------------------------------------
# Main
# ----------------------------------------------------------------------------
if __name__ == "__main__":
    # Bottleneck(inplanes=16, planes=4, stride=1, downsample=None)
    inplanes, planes = 16, 4
    N, H, W = 2, 16, 16

    key = jax.random.PRNGKey(0)
    ks = jax.random.split(key, 16)
    f32 = jnp.float32

    params = {
        "conv1_w": 0.1 * jax.random.normal(ks[0], (planes, inplanes, 1, 1), f32),
        "bn1_g": 1.0 + 0.1 * jax.random.normal(ks[1], (planes,), f32),
        "bn1_b": 0.05 * jax.random.normal(ks[2], (planes,), f32),
        "bn1_m": 0.1 * jax.random.normal(ks[3], (planes,), f32),
        "bn1_v": 1.0 + 0.1 * jnp.abs(jax.random.normal(ks[4], (planes,), f32)),
        "conv2_w": 0.1 * jax.random.normal(ks[5], (planes, planes, 3, 3), f32),
        "bn2_g": 1.0 + 0.1 * jax.random.normal(ks[6], (planes,), f32),
        "bn2_b": 0.05 * jax.random.normal(ks[7], (planes,), f32),
        "bn2_m": 0.1 * jax.random.normal(ks[8], (planes,), f32),
        "bn2_v": 1.0 + 0.1 * jnp.abs(jax.random.normal(ks[9], (planes,), f32)),
        "conv3_w": 0.1 * jax.random.normal(ks[10], (planes * 4, planes, 1, 1), f32),
        "bn3_g": 1.0 + 0.1 * jax.random.normal(ks[11], (planes * 4,), f32),
        "bn3_b": 0.05 * jax.random.normal(ks[12], (planes * 4,), f32),
        "bn3_m": 0.1 * jax.random.normal(ks[13], (planes * 4,), f32),
        "bn3_v": 1.0 + 0.1 * jnp.abs(jax.random.normal(ks[14], (planes * 4,), f32)),
    }

    x = jax.random.normal(ks[15], (N, inplanes, H, W), f32)

    ref = jax.block_until_ready(_ref_forward(x, params, stride=1))

    # Strict check: fused kernel with f32 I/O + f32 MXU operands.
    fwd_f32 = jax.jit(lambda x, p: bottleneck_forward(
        x, p, stride=1, compute_dtype=jnp.float32, images_per_block=1))
    out32 = jax.block_until_ready(fwd_f32(x, params))
    assert out32.shape == (N, planes * 4, H, W)
    assert jnp.allclose(out32, ref, atol=5e-4, rtol=5e-4), \
        f"f32 path max abs err {jnp.max(jnp.abs(out32 - ref))}"

    # Performance path: bf16 HBM activations + bf16 MXU operands, f32 accum.
    fwd_bf16 = jax.jit(lambda x, p: bottleneck_forward(
        x, p, stride=1, compute_dtype=jnp.bfloat16, images_per_block=1))
    out16 = jax.block_until_ready(fwd_bf16(x, params))
    assert out16.shape == (N, planes * 4, H, W)
    assert jnp.allclose(out16.astype(f32), ref, atol=5e-2, rtol=5e-2), \
        f"bf16 path max abs err {jnp.max(jnp.abs(out16.astype(f32) - ref))}"

    # Multi-image-per-step path (small-spatial-stage optimisation on v5e/v6e).
    fwd_bf16_b2 = jax.jit(lambda x, p: bottleneck_forward(
        x, p, stride=1, compute_dtype=jnp.bfloat16, images_per_block=2))
    out16b = jax.block_until_ready(fwd_bf16_b2(x, params))
    assert out16b.shape == (N, planes * 4, H, W)
    assert jnp.allclose(out16b.astype(f32), ref, atol=5e-2, rtol=5e-2), \
        f"bf16 (2 img/blk) max abs err {jnp.max(jnp.abs(out16b.astype(f32) - ref))}"

    print("KERNEL_OK")
</pallas_src>

<mosaic_0001>
module attributes {stable_mosaic.version = 11 : i64} {
  func.func @_bottleneck_kernel(%arg0: i32, %arg1: memref<1x256x16xf32, #tpu.memory_space<vmem>>, %arg2: memref<16x4xf32, #tpu.memory_space<vmem>>, %arg3: memref<3x12x4xf32, #tpu.memory_space<vmem>>, %arg4: memref<4x16xf32, #tpu.memory_space<vmem>>, %arg5: memref<1x4xf32, #tpu.memory_space<vmem>>, %arg6: memref<1x4xf32, #tpu.memory_space<vmem>>, %arg7: memref<1x4xf32, #tpu.memory_space<vmem>>, %arg8: memref<1x4xf32, #tpu.memory_space<vmem>>, %arg9: memref<1x16xf32, #tpu.memory_space<vmem>>, %arg10: memref<1x16xf32, #tpu.memory_space<vmem>>, %arg11: memref<1x256x16xf32, #tpu.memory_space<vmem>>, %arg12: memref<304x12xf32, #tpu.memory_space<vmem>>) attributes {dimension_semantics = [#tpu.dimension_semantics<parallel>], iteration_bounds = array<i64: 2>, scalar_prefetch = 0 : i64, scratch_operands = 1 : i64, tpu.core_type = #tpu.core_type<tc>, window_params = [{transform_indices = @transform_0, window_bounds = array<i64: 1, 256, 16>}, {pipeline_mode = #tpu.pipeline_mode<synchronous>, transform_indices = @transform_1, window_bounds = array<i64: 16, 4>}, {pipeline_mode = #tpu.pipeline_mode<synchronous>, transform_indices = @transform_2, window_bounds = array<i64: 3, 12, 4>}, {pipeline_mode = #tpu.pipeline_mode<synchronous>, transform_indices = @transform_3, window_bounds = array<i64: 4, 16>}, {pipeline_mode = #tpu.pipeline_mode<synchronous>, transform_indices = @transform_4, window_bounds = array<i64: 1, 4>}, {pipeline_mode = #tpu.pipeline_mode<synchronous>, transform_indices = @transform_5, window_bounds = array<i64: 1, 4>}, {pipeline_mode = #tpu.pipeline_mode<synchronous>, transform_indices = @transform_6, window_bounds = array<i64: 1, 4>}, {pipeline_mode = #tpu.pipeline_mode<synchronous>, transform_indices = @transform_7, window_bounds = array<i64: 1, 4>}, {pipeline_mode = #tpu.pipeline_mode<synchronous>, transform_indices = @transform_8, window_bounds = array<i64: 1, 16>}, {pipeline_mode = #tpu.pipeline_mode<synchronous>, transform_indices = @transform_9, window_bounds = array<i64: 1, 16>}, {transform_indices = @transform_10, window_bounds = array<i64: 1, 256, 16>}]} {
    %0 = tpu.iota {dimensions = array<i32: 0>} : vector<256x1xi32>
    %c16_i32 = arith.constant 16 : i32
    %c0_i32 = arith.constant 0 : i32
    %1 = arith.cmpi eq, %c16_i32, %c0_i32 : i32
    %c1_i32 = arith.constant 1 : i32
    %2 = arith.select %1, %c1_i32, %c16_i32 : i32
    %3 = vector.broadcast %2 : i32 to vector<256x1xi32>
    %4 = arith.remsi %0, %3 : vector<256x1xi32>
    %c0_i32_0 = arith.constant 0 : i32
    %5 = vector.broadcast %c0_i32_0 : i32 to vector<256x1xi32>
    %6 = arith.cmpi ne, %4, %5 : vector<256x1xi32>
    %c0_i32_1 = arith.constant 0 : i32
    %7 = vector.broadcast %c0_i32_1 : i32 to vector<256x1xi32>
    %8 = arith.cmpi slt, %4, %7 : vector<256x1xi32>
    %c0_i32_2 = arith.constant 0 : i32
    %9 = arith.cmpi slt, %2, %c0_i32_2 : i32
    %10 = vector.broadcast %9 : i1 to vector<256x1xi1>
    %11 = vector.broadcast %10 : vector<256x1xi1> to vector<256x1xi1>
    %12 = arith.xori %8, %11 : vector<256x1xi1>
    %13 = arith.andi %12, %6 : vector<256x1xi1>
    %14 = vector.broadcast %2 : i32 to vector<256x1xi32>
    %15 = arith.addi %4, %14 : vector<256x1xi32>
    %16 = arith.select %13, %15, %4 : vector<256x1xi1>, vector<256x1xi32>
    %c0_i32_3 = arith.constant 0 : i32
    %17 = vector.broadcast %c0_i32_3 : i32 to vector<256x1xi32>
    %18 = arith.cmpi ne, %16, %17 : vector<256x1xi32>
    %19 = arith.extui %18 : vector<256x1xi1> to vector<256x1xi32>
    %20 = arith.sitofp %19 : vector<256x1xi32> to vector<256x1xf32>
    %c15_i32 = arith.constant 15 : i32
    %21 = vector.broadcast %c15_i32 : i32 to vector<256x1xi32>
    %22 = arith.cmpi ne, %16, %21 : vector<256x1xi32>
    %23 = arith.extui %22 : vector<256x1xi1> to vector<256x1xi32>
    %24 = arith.sitofp %23 : vector<256x1xi32> to vector<256x1xf32>
    %cst = arith.constant 0.000000e+00 : f32
    %25 = vector.broadcast %cst : f32 to vector<24x12xf32>
    %c0 = arith.constant 0 : index
    %c0_4 = arith.constant 0 : index
    %26 = vector.load %arg12[%c0, %c0_4] : memref<304x12xf32, #tpu.memory_space<vmem>>, vector<24x12xf32>
    tpu.vector_store %arg12[%c0, %c0_4], %25 {strides = array<i32>} : memref<304x12xf32, #tpu.memory_space<vmem>>, vector<24x12xf32>,
    %c280 = arith.constant 280 : index
    %c0_5 = arith.constant 0 : index
    %27 = vector.load %arg12[%c280, %c0_5] : memref<304x12xf32, #tpu.memory_space<vmem>>, vector<24x12xf32>
    tpu.vector_store %arg12[%c280, %c0_5], %25 {strides = array<i32>} : memref<304x12xf32, #tpu.memory_space<vmem>>, vector<24x12xf32>,
    %c0_6 = arith.constant 0 : index
    %c0_7 = arith.constant 0 : index
    %c0_8 = arith.constant 0 : index
    %28 = vector.load %arg1[%c0_6, %c0_7, %c0_8] : memref<1x256x16xf32, #tpu.memory_space<vmem>>, vector<1x256x16xf32>
    %29 = vector.shape_cast %28 : vector<1x256x16xf32> to vector<256x16xf32>
    %c0_9 = arith.constant 0 : index
    %c0_10 = arith.constant 0 : index
    %30 = vector.load %arg2[%c0_9, %c0_10] : memref<16x4xf32, #tpu.memory_space<vmem>>, vector<16x4xf32>
    %cst_11 = arith.constant dense<0.000000e+00> : vector<256x4xf32>
    %31 = tpu.matmul %29, %30, %cst_11 {dimension_numbers = #tpu.dot_dimension_numbers<[1], [0], [0], [1], [0, 0, 1, 1], [], []>} : vector<256x16xf32>, vector<16x4xf32>, vector<256x4xf32> -> vector<256x4xf32>
    %c0_12 = arith.constant 0 : index
    %c0_13 = arith.constant 0 : index
    %32 = vector.load %arg5[%c0_12, %c0_13] : memref<1x4xf32, #tpu.memory_space<vmem>>, vector<1x4xf32>
    %33 = vector.broadcast %32 : vector<1x4xf32> to vector<256x4xf32>
    %34 = arith.mulf %31, %33 : vector<256x4xf32>
    %c0_14 = arith.constant 0 : index
    %c0_15 = arith.constant 0 : index
    %35 = vector.load %arg6[%c0_14, %c0_15] : memref<1x4xf32, #tpu.memory_space<vmem>>, vector<1x4xf32>
    %36 = vector.broadcast %35 : vector<1x4xf32> to vector<256x4xf32>
    %37 = arith.addf %34, %36 : vector<256x4xf32>
    %cst_16 = arith.constant 0.000000e+00 : f32
    %38 = vector.broadcast %cst_16 : f32 to vector<256x4xf32>
    %39 = arith.maximumf %37, %38 : vector<256x4xf32>
    %c1_i32_17 = arith.constant 1 : i32
    %40 = tpu.dynamic_rotate %39 by %c1_i32_17 dim 0 : vector<256x4xf32>, i32 -> vector<256x4xf32>
    %41 = vector.broadcast %20 : vector<256x1xf32> to vector<256x4xf32>
    %42 = arith.mulf %40, %41 : vector<256x4xf32>
    %c255_i32 = arith.constant 255 : i32
    %43 = tpu.dynamic_rotate %39 by %c255_i32 dim 0 : vector<256x4xf32>, i32 -> vector<256x4xf32>
    %44 = vector.broadcast %24 : vector<256x1xf32> to vector<256x4xf32>
    %45 = arith.mulf %43, %44 : vector<256x4xf32>
    %46 = tpu.concatenate %42, %39, %45 in 1 : vector<256x4xf32>, vector<256x4xf32>, vector<256x4xf32> -> vector<256x12xf32>
    %c24 = arith.constant 24 : index
    %c0_18 = arith.constant 0 : index
    %47 = vector.load %arg12[%c24, %c0_18] : memref<304x12xf32, #tpu.memory_space<vmem>>, vector<256x12xf32>
    tpu.vector_store %arg12[%c24, %c0_18], %46 {strides = array<i32>} : memref<304x12xf32, #tpu.memory_space<vmem>>, vector<256x12xf32>,
    %cst_19 = arith.constant 0.000000e+00 : f32
    %48 = vector.broadcast %cst_19 : f32 to vector<256x4xf32>
    %c8 = arith.constant 8 : index
    %c0_20 = arith.constant 0 : index
    %49 = vector.load %arg12[%c8, %c0_20] : memref<304x12xf32, #tpu.memory_space<vmem>>, vector<256x12xf32>
    %c0_21 = arith.constant 0 : index
    %c0_22 = arith.constant 0 : index
    %c0_23 = arith.constant 0 : index
    %50 = vector.load %arg3[%c0_21, %c0_22, %c0_23] : memref<3x12x4xf32, #tpu.memory_space<vmem>>, vector<1x12x4xf32>
    %51 = vector.shape_cast %50 : vector<1x12x4xf32> to vector<12x4xf32>
    %cst_24 = arith.constant dense<0.000000e+00> : vector<256x4xf32>
    %52 = tpu.matmul %49, %51, %cst_24 {dimension_numbers = #tpu.dot_dimension_numbers<[1], [0], [0], [1], [0, 0, 1, 1], [], []>} : vector<256x12xf32>, vector<12x4xf32>, vector<256x4xf32> -> vector<256x4xf32>
    %53 = arith.addf %48, %52 : vector<256x4xf32>
    %c24_25 = arith.constant 24 : index
    %c0_26 = arith.constant 0 : index
    %54 = vector.load %arg12[%c24_25, %c0_26] : memref<304x12xf32, #tpu.memory_space<vmem>>, vector<256x12xf32>
    %c1 = arith.constant 1 : index
    %c0_27 = arith.constant 0 : index
    %c0_28 = arith.constant 0 : index
    %55 = vector.load %arg3[%c1, %c0_27, %c0_28] : memref<3x12x4xf32, #tpu.memory_space<vmem>>, vector<1x12x4xf32>
    %56 = vector.shape_cast %55 : vector<1x12x4xf32> to vector<12x4xf32>
    %cst_29 = arith.constant dense<0.000000e+00> : vector<256x4xf32>
    %57 = tpu.matmul %54, %56, %cst_29 {dimension_numbers = #tpu.dot_dimension_numbers<[1], [0], [0], [1], [0, 0, 1, 1], [], []>} : vector<256x12xf32>, vector<12x4xf32>, vector<256x4xf32> -> vector<256x4xf32>
    %58 = arith.addf %53, %57 : vector<256x4xf32>
    %c40 = arith.constant 40 : index
    %c0_30 = arith.constant 0 : index
    %59 = vector.load %arg12[%c40, %c0_30] : memref<304x12xf32, #tpu.memory_space<vmem>>, vector<256x12xf32>
    %c2 = arith.constant 2 : index
    %c0_31 = arith.constant 0 : index
    %c0_32 = arith.constant 0 : index
    %60 = vector.load %arg3[%c2, %c0_31, %c0_32] : memref<3x12x4xf32, #tpu.memory_space<vmem>>, vector<1x12x4xf32>
    %61 = vector.shape_cast %60 : vector<1x12x4xf32> to vector<12x4xf32>
    %cst_33 = arith.constant dense<0.000000e+00> : vector<256x4xf32>
    %62 = tpu.matmul %59, %61, %cst_33 {dimension_numbers = #tpu.dot_dimension_numbers<[1], [0], [0], [1], [0, 0, 1, 1], [], []>} : vector<256x12xf32>, vector<12x4xf32>, vector<256x4xf32> -> vector<256x4xf32>
    %63 = arith.addf %58, %62 : vector<256x4xf32>
    %c0_34 = arith.constant 0 : index
    %c0_35 = arith.constant 0 : index
    %64 = vector.load %arg7[%c0_34, %c0_35] : memref<1x4xf32, #tpu.memory_space<vmem>>, vector<1x4xf32>
    %65 = vector.broadcast %64 : vector<1x4xf32> to vector<256x4xf32>
    %66 = arith.mulf %63, %65 : vector<256x4xf32>
    %c0_36 = arith.constant 0 : index
    %c0_37 = arith.constant 0 : index
    %67 = vector.load %arg8[%c0_36, %c0_37] : memref<1x4xf32, #tpu.memory_space<vmem>>, vector<1x4xf32>
    %68 = vector.broadcast %67 : vector<1x4xf32> to vector<256x4xf32>
    %69 = arith.addf %66, %68 : vector<256x4xf32>
    %cst_38 = arith.constant 0.000000e+00 : f32
    %70 = vector.broadcast %cst_38 : f32 to vector<256x4xf32>
    %71 = arith.maximumf %69, %70 : vector<256x4xf32>
    %c0_39 = arith.constant 0 : index
    %c0_40 = arith.constant 0 : index
    %72 = vector.load %arg4[%c0_39, %c0_40] : memref<4x16xf32, #tpu.memory_space<vmem>>, vector<4x16xf32>
    %cst_41 = arith.constant dense<0.000000e+00> : vector<256x16xf32>
    %73 = tpu.matmul %71, %72, %cst_41 {dimension_numbers = #tpu.dot_dimension_numbers<[1], [0], [0], [1], [0, 0, 1, 1], [], []>} : vector<256x4xf32>, vector<4x16xf32>, vector<256x16xf32> -> vector<256x16xf32>
    %c0_42 = arith.constant 0 : index
    %c0_43 = arith.constant 0 : index
    %74 = vector.load %arg9[%c0_42, %c0_43] : memref<1x16xf32, #tpu.memory_space<vmem>>, vector<1x16xf32>
    %75 = vector.broadcast %74 : vector<1x16xf32> to vector<256x16xf32>
    %76 = arith.mulf %73, %75 : vector<256x16xf32>
    %c0_44 = arith.constant 0 : index
    %c0_45 = arith.constant 0 : index
    %77 = vector.load %arg10[%c0_44, %c0_45] : memref<1x16xf32, #tpu.memory_space<vmem>>, vector<1x16xf32>
    %78 = vector.broadcast %77 : vector<1x16xf32> to vector<256x16xf32>
    %79 = arith.addf %76, %78 : vector<256x16xf32>
    %80 = arith.addf %79, %29 : vector<256x16xf32>
    %cst_46 = arith.constant 0.000000e+00 : f32
    %81 = vector.broadcast %cst_46 : f32 to vector<256x16xf32>
    %82 = arith.maximumf %80, %81 : vector<256x16xf32>
    %c0_47 = arith.constant 0 : index
    %c0_48 = arith.constant 0 : index
    %c0_49 = arith.constant 0 : index
    %83 = vector.load %arg11[%c0_47, %c0_48, %c0_49] : memref<1x256x16xf32, #tpu.memory_space<vmem>>, vector<1x256x16xf32>
    %84 = vector.shape_cast %83 : vector<1x256x16xf32> to vector<256x16xf32>
    %85 = vector.shape_cast %82 : vector<256x16xf32> to vector<1x256x16xf32>
    tpu.vector_store %arg11[%c0_47, %c0_48, %c0_49], %85 {strides = array<i32>} : memref<1x256x16xf32, #tpu.memory_space<vmem>>, vector<1x256x16xf32>,
    return
  }
  func.func @transform_0(%arg0: i32) -> (i32, i32, i32) {
    %c0_i32 = arith.constant 0 : i32
    %c0_i32_0 = arith.constant 0 : i32
    %c0_i32_1 = arith.constant 0 : i32
    return %arg0, %c0_i32, %c0_i32_0 : i32, i32, i32
  }
  func.func @transform_1(%arg0: i32) -> (i32, i32) {
    %c0_i32 = arith.constant 0 : i32
    %c0_i32_0 = arith.constant 0 : i32
    %c0_i32_1 = arith.constant 0 : i32
    return %c0_i32, %c0_i32_0 : i32, i32
  }
  func.func @transform_2(%arg0: i32) -> (i32, i32, i32) {
    %c0_i32 = arith.constant 0 : i32
    %c0_i32_0 = arith.constant 0 : i32
    %c0_i32_1 = arith.constant 0 : i32
    %c0_i32_2 = arith.constant 0 : i32
    return %c0_i32, %c0_i32_0, %c0_i32_1 : i32, i32, i32
  }
  func.func @transform_3(%arg0: i32) -> (i32, i32) {
    %c0_i32 = arith.constant 0 : i32
    %c0_i32_0 = arith.constant 0 : i32
    %c0_i32_1 = arith.constant 0 : i32
    return %c0_i32, %c0_i32_0 : i32, i32
  }
  func.func @transform_4(%arg0: i32) -> (i32, i32) {
    %c0_i32 = arith.constant 0 : i32
    %c0_i32_0 = arith.constant 0 : i32
    %c0_i32_1 = arith.constant 0 : i32
    return %c0_i32, %c0_i32_0 : i32, i32
  }
  func.func @transform_5(%arg0: i32) -> (i32, i32) {
    %c0_i32 = arith.constant 0 : i32
    %c0_i32_0 = arith.constant 0 : i32
    %c0_i32_1 = arith.constant 0 : i32
    return %c0_i32, %c0_i32_0 : i32, i32
  }
  func.func @transform_6(%arg0: i32) -> (i32, i32) {
    %c0_i32 = arith.constant 0 : i32
    %c0_i32_0 = arith.constant 0 : i32
    %c0_i32_1 = arith.constant 0 : i32
    return %c0_i32, %c0_i32_0 : i32, i32
  }
  func.func @transform_7(%arg0: i32) -> (i32, i32) {
    %c0_i32 = arith.constant 0 : i32
    %c0_i32_0 = arith.constant 0 : i32
    %c0_i32_1 = arith.constant 0 : i32
    return %c0_i32, %c0_i32_0 : i32, i32
  }
  func.func @transform_8(%arg0: i32) -> (i32, i32) {
    %c0_i32 = arith.constant 0 : i32
    %c0_i32_0 = arith.constant 0 : i32
    %c0_i32_1 = arith.constant 0 : i32
    return %c0_i32, %c0_i32_0 : i32, i32
  }
  func.func @transform_9(%arg0: i32) -> (i32, i32) {
    %c0_i32 = arith.constant 0 : i32
    %c0_i32_0 = arith.constant 0 : i32
    %c0_i32_1 = arith.constant 0 : i32
    return %c0_i32, %c0_i32_0 : i32, i32
  }
  func.func @transform_10(%arg0: i32) -> (i32, i32, i32) {
    %c0_i32 = arith.constant 0 : i32
    %c0_i32_0 = arith.constant 0 : i32
    %c0_i32_1 = arith.constant 0 : i32
    return %arg0, %c0_i32, %c0_i32_0 : i32, i32, i32
  }
}

</mosaic_0001>

<llo_original>
// kernel: _lambda_.1
$region0: #{_lambda_.1}
  #allocation0 [shape = 'u32[]', space=smem, size = 0x4, offset = 0x4, fixed_abs, tag = 'smem constant byte address 0x4 - core index']
  #allocation1 [shape = 'u32[144,128]{1,0:T(1,128)}', space=vmem, size = 0x12000, scoped, tag = 'internal scratch']
  #allocation2 [shape = 'f32[304,12]{1,0:T(8,128)}', space=vmem, size = 0x26000, scoped, tag = 'scratch operand']
  %s0 = inlined_call_operand.vmem [shape: f32[2,256,16], index: 0, kind: input, shape index: {}]
  %s1 = inlined_call_operand.vmem [shape: f32[16,4], index: 1, kind: input, shape index: {}]
  %s2 = inlined_call_operand.vmem [shape: f32[3,12,4], index: 2, kind: input, shape index: {}]
  %s3 = inlined_call_operand.vmem [shape: f32[4,16], index: 3, kind: input, shape index: {}]
  %s4 = inlined_call_operand.vmem [shape: f32[1,4], index: 4, kind: input, shape index: {}]
  %s5 = inlined_call_operand.vmem [shape: f32[1,4], index: 5, kind: input, shape index: {}]
  %s6 = inlined_call_operand.vmem [shape: f32[1,4], index: 6, kind: input, shape index: {}]
  %s7 = inlined_call_operand.vmem [shape: f32[1,4], index: 7, kind: input, shape index: {}]
  %s8 = inlined_call_operand.vmem [shape: f32[1,16], index: 8, kind: input, shape index: {}]
  %s9 = inlined_call_operand.vmem [shape: f32[1,16], index: 9, kind: input, shape index: {}]
  %s10 = inlined_call_operand.vmem [shape: f32[2,256,16], index: 10, kind: output, shape index: {}]
  %s11 = sld [smem:[#allocation0]]
  $region73: #{_lambda_.1} parent=0
    _
  %s13 = ssub.s32 1, %s11
  %s14 = scalar_select 0, %s13, %s11
  loop: start=0, step=1, limit=4
  $region2: #{_lambda_.1} parent=0 // loop_pre_header
    _
  $region3: #{_lambda_.1} parent=0 // loop_header
    %s16 = sphi 0, %s20
    %p17 = scmp.ge.s32.totalorder %s16, 4
    %s26 = sphi 0, %s28
    %s29 = sphi 0, %s26
    %s30 = sphi 0, %s29
    %s46 = sphi 0, %s30
    %s50 = sphi 0, %s50
    %s52 = sphi 0, %s50
    %s53 = sphi 0, %s52
    %s67 = sphi 0, %s53
    %s71 = sphi 0, %s71
    %s73 = sphi 0, %s71
    %s74 = sphi 0, %s73
    %s88 = sphi 0, %s74
    %s92 = sphi 0, %s92
    %s94 = sphi 0, %s92
    %s95 = sphi 0, %s94
    %s109 = sphi 0, %s95
    %s113 = sphi 0, %s113
    %s115 = sphi 0, %s113
    %s116 = sphi 0, %s115
    %s130 = sphi 0, %s116
    %s134 = sphi 0, %s134
    %s136 = sphi 0, %s134
    %s137 = sphi 0, %s136
    %s151 = sphi 0, %s137
    %s155 = sphi 0, %s155
    %s157 = sphi 0, %s155
    %s158 = sphi 0, %s157
    %s172 = sphi 0, %s158
    %s176 = sphi 0, %s176
    %s178 = sphi 0, %s176
    %s179 = sphi 0, %s178
    %s193 = sphi 0, %s179
    %s197 = sphi 0, %s197
    %s199 = sphi 0, %s197
    %s200 = sphi 0, %s199
    %s214 = sphi 0, %s200
    %s218 = sphi 0, %s218
    %s220 = sphi 0, %s218
    %s221 = sphi 0, %s220
    %s235 = sphi 0, %s221
    %s241 = sphi 0, %s243
    %s244 = sphi 0, %s241
    %s245 = sphi 0, %s244
    %s261 = sphi 0, %s245
  $region4: #{_lambda_.1} parent=0 // loop_header_branch
    %19 = sbr.rel (%p17) target = $region8
  $region5: #{_lambda_.1} parent=0 // loop_body
    %s21 = ssub.s32 %s16, 1
    %s22 = ssub.s32 %s16, 2
    %s23 = sadd.s32 %s16, 1
    %s24 = ssub.s32 %s16, %s23
    %p25 = scmp.eq.s32.totalorder %s24, 0
    %s27 = sadd.s32 %s26, 1
    %s28 = scalar_select %p25, %s26, %s27
    %p31 = pneg %p25
    %p32 = scmp.eq.s32.totalorder %s16, 1
    %p33 = por %p31, %p32
    %p34 = scmp.ne.s32.totalorder %s26, %s29
    %p35 = scmp.eq.s32.totalorder %s16, 0
    %p36 = por %p34, %p35
    %p37 = scmp.ne.s32.totalorder %s26, %s29
    %p38 = scmp.eq.s32.totalorder %s21, 1
    %p39 = por %p37, %p38
    %p40 = scmp.ne.s32.totalorder %s29, %s30
    %p41 = scmp.eq.s32.totalorder %s21, 0
    %p42 = por %p40, %p41
    %p43 = scmp.ne.s32.totalorder %s29, %s30
    %p44 = scmp.eq.s32.totalorder %s22, 1
    %p45 = por %p43, %p44
    %p47 = scmp.ne.s32.totalorder %s30, %s46
    %p48 = scmp.eq.s32.totalorder %s22, 0
    %p49 = por %p47, %p48
    %s51 = sadd.s32 %s50, 1
    %p54 = scmp.eq.s32.totalorder %s16, 1
    %p55 = scmp.ne.s32.totalorder %s50, %s52
    %p56 = scmp.eq.s32.totalorder %s16, 0
    %p57 = por %p55, %p56
    %p58 = scmp.ne.s32.totalorder %s50, %s52
    %p59 = scmp.eq.s32.totalorder %s21, 1
    %p60 = por %p58, %p59
    %p61 = scmp.ne.s32.totalorder %s52, %s53
    %p62 = scmp.eq.s32.totalorder %s21, 0
    %p63 = por %p61, %p62
    %p64 = scmp.ne.s32.totalorder %s52, %s53
    %p65 = scmp.eq.s32.totalorder %s22, 1
    %p66 = por %p64, %p65
    %p68 = scmp.ne.s32.totalorder %s53, %s67
    %p69 = scmp.eq.s32.totalorder %s22, 0
    %p70 = por %p68, %p69
    %s72 = sadd.s32 %s71, 1
    %p75 = scmp.eq.s32.totalorder %s16, 1
    %p76 = scmp.ne.s32.totalorder %s71, %s73
    %p77 = scmp.eq.s32.totalorder %s16, 0
    %p78 = por %p76, %p77
    %p79 = scmp.ne.s32.totalorder %s71, %s73
    %p80 = scmp.eq.s32.totalorder %s21, 1
    %p81 = por %p79, %p80
    %p82 = scmp.ne.s32.totalorder %s73, %s74
    %p83 = scmp.eq.s32.totalorder %s21, 0
    %p84 = por %p82, %p83
    %p85 = scmp.ne.s32.totalorder %s73, %s74
    %p86 = scmp.eq.s32.totalorder %s22, 1
    %p87 = por %p85, %p86
    %p89 = scmp.ne.s32.totalorder %s74, %s88
    %p90 = scmp.eq.s32.totalorder %s22, 0
    %p91 = por %p89, %p90
    %s93 = sadd.s32 %s92, 1
    %p96 = scmp.eq.s32.totalorder %s16, 1
    %p97 = scmp.ne.s32.totalorder %s92, %s94
    %p98 = scmp.eq.s32.totalorder %s16, 0
    %p99 = por %p97, %p98
    %p100 = scmp.ne.s32.totalorder %s92, %s94
    %p101 = scmp.eq.s32.totalorder %s21, 1
    %p102 = por %p100, %p101
    %p103 = scmp.ne.s32.totalorder %s94, %s95
    %p104 = scmp.eq.s32.totalorder %s21, 0
    %p105 = por %p103, %p104
    %p106 = scmp.ne.s32.totalorder %s94, %s95
    %p107 = scmp.eq.s32.totalorder %s22, 1
    %p108 = por %p106, %p107
    %p110 = scmp.ne.s32.totalorder %s95, %s109
    %p111 = scmp.eq.s32.totalorder %s22, 0
    %p112 = por %p110, %p111
    %s114 = sadd.s32 %s113, 1
    %p117 = scmp.eq.s32.totalorder %s16, 1
    %p118 = scmp.ne.s32.totalorder %s113, %s115
    %p119 = scmp.eq.s32.totalorder %s16, 0
    %p120 = por %p118, %p119
    %p121 = scmp.ne.s32.totalorder %s113, %s115
    %p122 = scmp.eq.s32.totalorder %s21, 1
    %p123 = por %p121, %p122
    %p124 = scmp.ne.s32.totalorder %s115, %s116
    %p125 = scmp.eq.s32.totalorder %s21, 0
    %p126 = por %p124, %p125
    %p127 = scmp.ne.s32.totalorder %s115, %s116
    %p128 = scmp.eq.s32.totalorder %s22, 1
    %p129 = por %p127, %p128
    %p131 = scmp.ne.s32.totalorder %s116, %s130
    %p132 = scmp.eq.s32.totalorder %s22, 0
    %p133 = por %p131, %p132
    %s135 = sadd.s32 %s134, 1
    %p138 = scmp.eq.s32.totalorder %s16, 1
    %p139 = scmp.ne.s32.totalorder %s134, %s136
    %p140 = scmp.eq.s32.totalorder %s16, 0
    %p141 = por %p139, %p140
    %p142 = scmp.ne.s32.totalorder %s134, %s136
    %p143 = scmp.eq.s32.totalorder %s21, 1
    %p144 = por %p142, %p143
    %p145 = scmp.ne.s32.totalorder %s136, %s137
    %p146 = scmp.eq.s32.totalorder %s21, 0
    %p147 = por %p145, %p146
    %p148 = scmp.ne.s32.totalorder %s136, %s137
    %p149 = scmp.eq.s32.totalorder %s22, 1
    %p150 = por %p148, %p149
    %p152 = scmp.ne.s32.totalorder %s137, %s151
    %p153 = scmp.eq.s32.totalorder %s22, 0
    %p154 = por %p152, %p153
    %s156 = sadd.s32 %s155, 1
    %p159 = scmp.eq.s32.totalorder %s16, 1
    %p160 = scmp.ne.s32.totalorder %s155, %s157
    %p161 = scmp.eq.s32.totalorder %s16, 0
    %p162 = por %p160, %p161
    %p163 = scmp.ne.s32.totalorder %s155, %s157
    %p164 = scmp.eq.s32.totalorder %s21, 1
    %p165 = por %p163, %p164
    %p166 = scmp.ne.s32.totalorder %s157, %s158
    %p167 = scmp.eq.s32.totalorder %s21, 0
    %p168 = por %p166, %p167
    %p169 = scmp.ne.s32.totalorder %s157, %s158
    %p170 = scmp.eq.s32.totalorder %s22, 1
    %p171 = por %p169, %p170
    %p173 = scmp.ne.s32.totalorder %s158, %s172
    %p174 = scmp.eq.s32.totalorder %s22, 0
    %p175 = por %p173, %p174
    %s177 = sadd.s32 %s176, 1
    %p180 = scmp.eq.s32.totalorder %s16, 1
    %p181 = scmp.ne.s32.totalorder %s176, %s178
    %p182 = scmp.eq.s32.totalorder %s16, 0
    %p183 = por %p181, %p182
    %p184 = scmp.ne.s32.totalorder %s176, %s178
    %p185 = scmp.eq.s32.totalorder %s21, 1
    %p186 = por %p184, %p185
    %p187 = scmp.ne.s32.totalorder %s178, %s179
    %p188 = scmp.eq.s32.totalorder %s21, 0
    %p189 = por %p187, %p188
    %p190 = scmp.ne.s32.totalorder %s178, %s179
    %p191 = scmp.eq.s32.totalorder %s22, 1
    %p192 = por %p190, %p191
    %p194 = scmp.ne.s32.totalorder %s179, %s193
    %p195 = scmp.eq.s32.totalorder %s22, 0
    %p196 = por %p194, %p195
    %s198 = sadd.s32 %s197, 1
    %p201 = scmp.eq.s32.totalorder %s16, 1
    %p202 = scmp.ne.s32.totalorder %s197, %s199
    %p203 = scmp.eq.s32.totalorder %s16, 0
    %p204 = por %p202, %p203
    %p205 = scmp.ne.s32.totalorder %s197, %s199
    %p206 = scmp.eq.s32.totalorder %s21, 1
    %p207 = por %p205, %p206
    %p208 = scmp.ne.s32.totalorder %s199, %s200
    %p209 = scmp.eq.s32.totalorder %s21, 0
    %p210 = por %p208, %p209
    %p211 = scmp.ne.s32.totalorder %s199, %s200
    %p212 = scmp.eq.s32.totalorder %s22, 1
    %p213 = por %p211, %p212
    %p215 = scmp.ne.s32.totalorder %s200, %s214
    %p216 = scmp.eq.s32.totalorder %s22, 0
    %p217 = por %p215, %p216
    %s219 = sadd.s32 %s218, 1
    %p222 = scmp.eq.s32.totalorder %s16, 1
    %p223 = scmp.ne.s32.totalorder %s218, %s220
    %p224 = scmp.eq.s32.totalorder %s16, 0
    %p225 = por %p223, %p224
    %p226 = scmp.ne.s32.totalorder %s218, %s220
    %p227 = scmp.eq.s32.totalorder %s21, 1
    %p228 = por %p226, %p227
    %p229 = scmp.ne.s32.totalorder %s220, %s221
    %p230 = scmp.eq.s32.totalorder %s21, 0
    %p231 = por %p229, %p230
    %p232 = scmp.ne.s32.totalorder %s220, %s221
    %p233 = scmp.eq.s32.totalorder %s22, 1
    %p234 = por %p232, %p233
    %p236 = scmp.ne.s32.totalorder %s221, %s235
    %p237 = scmp.eq.s32.totalorder %s22, 0
    %p238 = por %p236, %p237
    %s239 = ssub.s32 %s16, %s23
    %p240 = scmp.eq.s32.totalorder %s239, 0
    %s242 = sadd.s32 %s241, 1
    %s243 = scalar_select %p240, %s241, %s242
    %p246 = pneg %p240
    %p247 = scmp.eq.s32.totalorder %s16, 1
    %p248 = por %p246, %p247
    %p249 = scmp.ne.s32.totalorder %s241, %s244
    %p250 = scmp.eq.s32.totalorder %s16, 0
    %p251 = por %p249, %p250
    %p252 = scmp.ne.s32.totalorder %s241, %s244
    %p253 = scmp.eq.s32.totalorder %s21, 1
    %p254 = por %p252, %p253
    %p255 = scmp.ne.s32.totalorder %s244, %s245
    %p256 = scmp.eq.s32.totalorder %s21, 0
    %p257 = por %p255, %p256
    %p258 = scmp.ne.s32.totalorder %s244, %s245
    %p259 = scmp.eq.s32.totalorder %s22, 1
    %p260 = por %p258, %p259
    %p262 = scmp.ne.s32.totalorder %s245, %s261
    %p263 = scmp.eq.s32.totalorder %s22, 0
    %p264 = por %p262, %p263
    %p265 = scmp.le.s32.totalorder 1, %s16
    %p266 = scmp.lt.s32.totalorder %s16, 3
    %p267 = pnand %p265, %p266
    %p268 = pneg %p267
    // Predicated region
    $region9: #{_lambda_.1} parent=5 // pred_check
      _
    $region10: #{_lambda_.1} parent=5 // pred_check_branch
      %270 = sbr.rel (%p267) target = $region12
    $region11: #{_lambda_.1} parent=5 // pred_region
      %s271 = ssub.s32 %s16, 1
      // Predicated region
      $region13: #{_lambda_.1} parent=11 // pred_check
        %p272 = pneg %p63
      $region14: #{_lambda_.1} parent=11 // pred_check_branch
        %274 = sbr.rel (%p272) target = $region16
      $region15: #{_lambda_.1} parent=11 // pred_region
        _
      $region16: #{_lambda_.1} parent=11 // pred_fallthru
        _
      // Predicated region
      $region17: #{_lambda_.1} parent=11 // pred_check
        %p275 = pneg %p84
      $region18: #{_lambda_.1} parent=11 // pred_check_branch
        %277 = sbr.rel (%p275) target = $region20
      $region19: #{_lambda_.1} parent=11 // pred_region
        _
      $region20: #{_lambda_.1} parent=11 // pred_fallthru
        _
      // Predicated region
      $region21: #{_lambda_.1} parent=11 // pred_check
        %p278 = pneg %p105
      $region22: #{_lambda_.1} parent=11 // pred_check_branch
        %280 = sbr.rel (%p278) target = $region24
      $region23: #{_lambda_.1} parent=11 // pred_region
        _
      $region24: #{_lambda_.1} parent=11 // pred_fallthru
        _
      // Predicated region
      $region25: #{_lambda_.1} parent=11 // pred_check
        %p281 = pneg %p126
      $region26: #{_lambda_.1} parent=11 // pred_check_branch
        %283 = sbr.rel (%p281) target = $region28
      $region27: #{_lambda_.1} parent=11 // pred_region
        _
      $region28: #{_lambda_.1} parent=11 // pred_fallthru
        _
      // Predicated region
      $region29: #{_lambda_.1} parent=11 // pred_check
        %p284 = pneg %p147
      $region30: #{_lambda_.1} parent=11 // pred_check_branch
        %286 = sbr.rel (%p284) target = $region32
      $region31: #{_lambda_.1} parent=11 // pred_region
        _
      $region32: #{_lambda_.1} parent=11 // pred_fallthru
        _
      // Predicated region
      $region33: #{_lambda_.1} parent=11 // pred_check
        %p287 = pneg %p168
      $region34: #{_lambda_.1} parent=11 // pred_check_branch
        %289 = sbr.rel (%p287) target = $region36
      $region35: #{_lambda_.1} parent=11 // pred_region
        _
      $region36: #{_lambda_.1} parent=11 // pred_fallthru
        _
      // Predicated region
      $region37: #{_lambda_.1} parent=11 // pred_check
        %p290 = pneg %p189
      $region38: #{_lambda_.1} parent=11 // pred_check_branch
        %292 = sbr.rel (%p290) target = $region40
      $region39: #{_lambda_.1} parent=11 // pred_region
        _
      $region40: #{_lambda_.1} parent=11 // pred_fallthru
        _
      // Predicated region
      $region41: #{_lambda_.1} parent=11 // pred_check
        %p293 = pneg %p210
      $region42: #{_lambda_.1} parent=11 // pred_check_branch
        %295 = sbr.rel (%p293) target = $region44
      $region43: #{_lambda_.1} parent=11 // pred_region
        _
      $region44: #{_lambda_.1} parent=11 // pred_fallthru
        _
      // Predicated region
      $region45: #{_lambda_.1} parent=11 // pred_check
        %p296 = pneg %p231
      $region46: #{_lambda_.1} parent=11 // pred_check_branch
        %298 = sbr.rel (%p296) target = $region48
      $region47: #{_lambda_.1} parent=11 // pred_region
        _
      $region48: #{_lambda_.1} parent=11 // pred_fallthru
        _
    $region12: #{_lambda_.1} parent=5 // pred_fallthru
      _
    %p299 = scmp.lt.s32.totalorder %s16, 2
    // Predicated region
    $region49: #{_lambda_.1} parent=5 // pred_check
      %p300 = pneg %p299
    $region50: #{_lambda_.1} parent=5 // pred_check_branch
      %302 = sbr.rel (%p300) target = $region52
    $region51: #{_lambda_.1} parent=5 // pred_region
      // Predicated region
      $region53: #{_lambda_.1} parent=51 // pred_check
        %p303 = pneg %p36
      $region54: #{_lambda_.1} parent=51 // pred_check_branch
        %305 = sbr.rel (%p303) target = $region56
      $region55: #{_lambda_.1} parent=51 // pred_region
        %p306 = scmp.lt.s32.totalorder %s16, 1
        %s307 = scalar_select %p306, %s16, 1
        %s308 = smul.addr %s307, 32
        %s309 = smul.addr %s308, 8
        %s310 = scalar_lea.vmem %s0, %s309
      $region56: #{_lambda_.1} parent=51 // pred_fallthru
        _
    $region52: #{_lambda_.1} parent=5 // pred_fallthru
      _
    %p311 = scmp.le.s32.totalorder 1, %s16
    %p312 = scmp.lt.s32.totalorder %s16, 3
    %p313 = pnand %p311, %p312
    %p314 = pneg %p313
    // Predicated region
    $region57: #{_lambda_.1} parent=5 // pred_check
      _
    $region58: #{_lambda_.1} parent=5 // pred_check_branch
      %316 = sbr.rel (%p313) target = $region60
    $region59: #{_lambda_.1} parent=5 // pred_region
      %s317 = ssub.s32 %s16, 1
      %p318 = scmp.lt.s32.totalorder %s21, 1
      %s319 = scalar_select %p318, %s21, 1
      %s320 = smul.addr %s319, 32
      %s321 = smul.addr %s320, 8
      %s322 = scalar_lea.vmem %s0, %s321
      %p323 = pneg %p42
      %p324 = pneg %p39
      %p325 = pneg %p63
      %p326 = pneg %p60
      %p327 = pneg %p84
      %p328 = pneg %p81
      %p329 = pneg %p105
      %p330 = pneg %p102
      %p331 = pneg %p126
      %p332 = pneg %p123
      %p333 = pneg %p147
      %p334 = pneg %p144
      %p335 = pneg %p168
      %p336 = pneg %p165
      %p337 = pneg %p189
      %p338 = pneg %p186
      %p339 = pneg %p210
      %p340 = pneg %p207
      %p341 = pneg %p231
      %p342 = pneg %p228
      %p343 = pneg %p257
      %p344 = pneg %p254
      %p345 = scmp.lt.s32.totalorder %s21, 1
      %s346 = scalar_select %p345, %s21, 1
      %s347 = smul.addr %s346, 32
      %s348 = smul.addr %s347, 8
      %s349 = scalar_lea.vmem %s10, %s348
      %p350 = scmp.lt.s32.totalorder %s21, 1
      %s351 = scalar_select %p350, %s21, 1
      %s352 = smul.addr %s351, 32
      %s353 = smul.addr %s352, 8
      %s354 = scalar_lea.vmem %s0, %s353
      %p355 = scmp.lt.s32.totalorder %s21, 1
      %s356 = scalar_select %p355, %s21, 1
      %s357 = smul.addr %s356, 32
      %s358 = smul.addr %s357, 8
      %s359 = scalar_lea.vmem %s10, %s358
      %v360 = vlaneseq
      %v361 = vshrl.u32 %v360, 7
      %v362 = vadd.s32 %v361, 8
      %v363 = vadd.s32 %v361, 16
      %v364 = vadd.s32 %v361, 24
      %v365 = vadd.s32 %v361, 32
      %v366 = vadd.s32 %v361, 40
      %v367 = vadd.s32 %v361, 48
      %v368 = vadd.s32 %v361, 56
      %v369 = vadd.s32 %v361, 64
      %v370 = vadd.s32 %v361, 72
      %v371 = vadd.s32 %v361, 80
      %v372 = vadd.s32 %v361, 88
      %v373 = vadd.s32 %v361, 96
      %v374 = vadd.s32 %v361, 104
      %v375 = vadd.s32 %v361, 112
      %v376 = vadd.s32 %v361, 120
      %v377 = vadd.s32 %v361, 128
      %v378 = vadd.s32 %v361, 136
      %v379 = vadd.s32 %v361, 144
      %v380 = vadd.s32 %v361, 152
      %v381 = vadd.s32 %v361, 160
      %v382 = vadd.s32 %v361, 168
      %v383 = vadd.s32 %v361, 176
      %v384 = vadd.s32 %v361, 184
      %v385 = vadd.s32 %v361, 192
      %v386 = vadd.s32 %v361, 200
      %v387 = vadd.s32 %v361, 208
      %v388 = vadd.s32 %v361, 216
      %v389 = vadd.s32 %v361, 224
      %v390 = vadd.s32 %v361, 232
      %v391 = vadd.s32 %v361, 240
      %v392 = vadd.s32 %v361, 248
      %vm393 = vcmp.lt.s32.totalorder %v361, 0
      %v394 = vsub.s32 0, %v361
      %v395 = vsel %vm393, %v394, %v361
      %v396 = vshrl.u32 %v395, 4
      %v397 = vand.u32 %v395, 15
      %v398 = vsub.s32 0, %v397
      %v399 = vsel %vm393, %v398, %v397
      %vm400 = vcmp.lt.s32.totalorder %v362, 0
      %v401 = vsub.s32 0, %v362
      %v402 = vsel %vm400, %v401, %v362
      %v403 = vshrl.u32 %v402, 4
      %v404 = vand.u32 %v402, 15
      %v405 = vsub.s32 0, %v404
      %v406 = vsel %vm400, %v405, %v404
      %vm407 = vcmp.lt.s32.totalorder %v363, 0
      %v408 = vsub.s32 0, %v363
      %v409 = vsel %vm407, %v408, %v363
      %v410 = vshrl.u32 %v409, 4
      %v411 = vand.u32 %v409, 15
      %v412 = vsub.s32 0, %v411
      %v413 = vsel %vm407, %v412, %v411
      %vm414 = vcmp.lt.s32.totalorder %v364, 0
      %v415 = vsub.s32 0, %v364
      %v416 = vsel %vm414, %v415, %v364
      %v417 = vshrl.u32 %v416, 4
      %v418 = vand.u32 %v416, 15
      %v419 = vsub.s32 0, %v418
      %v420 = vsel %vm414, %v419, %v418
      %vm421 = vcmp.lt.s32.totalorder %v365, 0
      %v422 = vsub.s32 0, %v365
      %v423 = vsel %vm421, %v422, %v365
      %v424 = vshrl.u32 %v423, 4
      %v425 = vand.u32 %v423, 15
      %v426 = vsub.s32 0, %v425
      %v427 = vsel %vm421, %v426, %v425
      %vm428 = vcmp.lt.s32.totalorder %v366, 0
      %v429 = vsub.s32 0, %v366
      %v430 = vsel %vm428, %v429, %v366
      %v431 = vshrl.u32 %v430, 4
      %v432 = vand.u32 %v430, 15
      %v433 = vsub.s32 0, %v432
      %v434 = vsel %vm428, %v433, %v432
      %vm435 = vcmp.lt.s32.totalorder %v367, 0
      %v436 = vsub.s32 0, %v367
      %v437 = vsel %vm435, %v436, %v367
      %v438 = vshrl.u32 %v437, 4
      %v439 = vand.u32 %v437, 15
      %v440 = vsub.s32 0, %v439
      %v441 = vsel %vm435, %v440, %v439
      %vm442 = vcmp.lt.s32.totalorder %v368, 0
      %v443 = vsub.s32 0, %v368
      %v444 = vsel %vm442, %v443, %v368
      %v445 = vshrl.u32 %v444, 4
      %v446 = vand.u32 %v444, 15
      %v447 = vsub.s32 0, %v446
      %v448 = vsel %vm442, %v447, %v446
      %vm449 = vcmp.lt.s32.totalorder %v369, 0
      %v450 = vsub.s32 0, %v369
      %v451 = vsel %vm449, %v450, %v369
      %v452 = vshrl.u32 %v451, 4
      %v453 = vand.u32 %v451, 15
      %v454 = vsub.s32 0, %v453
      %v455 = vsel %vm449, %v454, %v453
      %vm456 = vcmp.lt.s32.totalorder %v370, 0
      %v457 = vsub.s32 0, %v370
      %v458 = vsel %vm456, %v457, %v370
      %v459 = vshrl.u32 %v458, 4
      %v460 = vand.u32 %v458, 15
      %v461 = vsub.s32 0, %v460
      %v462 = vsel %vm456, %v461, %v460
      %vm463 = vcmp.lt.s32.totalorder %v371, 0
      %v464 = vsub.s32 0, %v371
      %v465 = vsel %vm463, %v464, %v371
      %v466 = vshrl.u32 %v465, 4
      %v467 = vand.u32 %v465, 15
      %v468 = vsub.s32 0, %v467
      %v469 = vsel %vm463, %v468, %v467
      %vm470 = vcmp.lt.s32.totalorder %v372, 0
      %v471 = vsub.s32 0, %v372
      %v472 = vsel %vm470, %v471, %v372
      %v473 = vshrl.u32 %v472, 4
      %v474 = vand.u32 %v472, 15
      %v475 = vsub.s32 0, %v474
      %v476 = vsel %vm470, %v475, %v474
      %vm477 = vcmp.lt.s32.totalorder %v373, 0
      %v478 = vsub.s32 0, %v373
      %v479 = vsel %vm477, %v478, %v373
      %v480 = vshrl.u32 %v479, 4
      %v481 = vand.u32 %v479, 15
      %v482 = vsub.s32 0, %v481
      %v483 = vsel %vm477, %v482, %v481
      %vm484 = vcmp.lt.s32.totalorder %v374, 0
      %v485 = vsub.s32 0, %v374
      %v486 = vsel %vm484, %v485, %v374
      %v487 = vshrl.u32 %v486, 4
      %v488 = vand.u32 %v486, 15
      %v489 = vsub.s32 0, %v488
      %v490 = vsel %vm484, %v489, %v488
      %vm491 = vcmp.lt.s32.totalorder %v375, 0
      %v492 = vsub.s32 0, %v375
      %v493 = vsel %vm491, %v492, %v375
      %v494 = vshrl.u32 %v493, 4
      %v495 = vand.u32 %v493, 15
      %v496 = vsub.s32 0, %v495
      %v497 = vsel %vm491, %v496, %v495
      %vm498 = vcmp.lt.s32.totalorder %v376, 0
      %v499 = vsub.s32 0, %v376
      %v500 = vsel %vm498, %v499, %v376
      %v501 = vshrl.u32 %v500, 4
      %v502 = vand.u32 %v500, 15
      %v503 = vsub.s32 0, %v502
      %v504 = vsel %vm498, %v503, %v502
      %vm505 = vcmp.lt.s32.totalorder %v377, 0
      %v506 = vsub.s32 0, %v377
      %v507 = vsel %vm505, %v506, %v377
      %v508 = vshrl.u32 %v507, 4
      %v509 = vand.u32 %v507, 15
      %v510 = vsub.s32 0, %v509
      %v511 = vsel %vm505, %v510, %v509
      %vm512 = vcmp.lt.s32.totalorder %v378, 0
      %v513 = vsub.s32 0, %v378
      %v514 = vsel %vm512, %v513, %v378
      %v515 = vshrl.u32 %v514, 4
      %v516 = vand.u32 %v514, 15
      %v517 = vsub.s32 0, %v516
      %v518 = vsel %vm512, %v517, %v516
      %vm519 = vcmp.lt.s32.totalorder %v379, 0
      %v520 = vsub.s32 0, %v379
      %v521 = vsel %vm519, %v520, %v379
      %v522 = vshrl.u32 %v521, 4
      %v523 = vand.u32 %v521, 15
      %v524 = vsub.s32 0, %v523
      %v525 = vsel %vm519, %v524, %v523
      %vm526 = vcmp.lt.s32.totalorder %v380, 0
      %v527 = vsub.s32 0, %v380
      %v528 = vsel %vm526, %v527, %v380
      %v529 = vshrl.u32 %v528, 4
      %v530 = vand.u32 %v528, 15
      %v531 = vsub.s32 0, %v530
      %v532 = vsel %vm526, %v531, %v530
      %vm533 = vcmp.lt.s32.totalorder %v381, 0
      %v534 = vsub.s32 0, %v381
      %v535 = vsel %vm533, %v534, %v381
      %v536 = vshrl.u32 %v535, 4
      %v537 = vand.u32 %v535, 15
      %v538 = vsub.s32 0, %v537
      %v539 = vsel %vm533, %v538, %v537
      %vm540 = vcmp.lt.s32.totalorder %v382, 0
      %v541 = vsub.s32 0, %v382
      %v542 = vsel %vm540, %v541, %v382
      %v543 = vshrl.u32 %v542, 4
      %v544 = vand.u32 %v542, 15
      %v545 = vsub.s32 0, %v544
      %v546 = vsel %vm540, %v545, %v544
      %vm547 = vcmp.lt.s32.totalorder %v383, 0
      %v548 = vsub.s32 0, %v383
      %v549 = vsel %vm547, %v548, %v383
      %v550 = vshrl.u32 %v549, 4
      %v551 = vand.u32 %v549, 15
      %v552 = vsub.s32 0, %v551
      %v553 = vsel %vm547, %v552, %v551
      %vm554 = vcmp.lt.s32.totalorder %v384, 0
      %v555 = vsub.s32 0, %v384
      %v556 = vsel %vm554, %v555, %v384
      %v557 = vshrl.u32 %v556, 4
      %v558 = vand.u32 %v556, 15
      %v559 = vsub.s32 0, %v558
      %v560 = vsel %vm554, %v559, %v558
      %vm561 = vcmp.lt.s32.totalorder %v385, 0
      %v562 = vsub.s32 0, %v385
      %v563 = vsel %vm561, %v562, %v385
      %v564 = vshrl.u32 %v563, 4
      %v565 = vand.u32 %v563, 15
      %v566 = vsub.s32 0, %v565
      %v567 = vsel %vm561, %v566, %v565
      %vm568 = vcmp.lt.s32.totalorder %v386, 0
      %v569 = vsub.s32 0, %v386
      %v570 = vsel %vm568, %v569, %v386
      %v571 = vshrl.u32 %v570, 4
      %v572 = vand.u32 %v570, 15
      %v573 = vsub.s32 0, %v572
      %v574 = vsel %vm568, %v573, %v572
      %vm575 = vcmp.lt.s32.totalorder %v387, 0
      %v576 = vsub.s32 0, %v387
      %v577 = vsel %vm575, %v576, %v387
      %v578 = vshrl.u32 %v577, 4
      %v579 = vand.u32 %v577, 15
      %v580 = vsub.s32 0, %v579
      %v581 = vsel %vm575, %v580, %v579
      %vm582 = vcmp.lt.s32.totalorder %v388, 0
      %v583 = vsub.s32 0, %v388
      %v584 = vsel %vm582, %v583, %v388
      %v585 = vshrl.u32 %v584, 4
      %v586 = vand.u32 %v584, 15
      %v587 = vsub.s32 0, %v586
      %v588 = vsel %vm582, %v587, %v586
      %vm589 = vcmp.lt.s32.totalorder %v389, 0
      %v590 = vsub.s32 0, %v389
      %v591 = vsel %vm589, %v590, %v389
      %v592 = vshrl.u32 %v591, 4
      %v593 = vand.u32 %v591, 15
      %v594 = vsub.s32 0, %v593
      %v595 = vsel %vm589, %v594, %v593
      %vm596 = vcmp.lt.s32.totalorder %v390, 0
      %v597 = vsub.s32 0, %v390
      %v598 = vsel %vm596, %v597, %v390
      %v599 = vshrl.u32 %v598, 4
      %v600 = vand.u32 %v598, 15
      %v601 = vsub.s32 0, %v600
      %v602 = vsel %vm596, %v601, %v600
      %vm603 = vcmp.lt.s32.totalorder %v391, 0
      %v604 = vsub.s32 0, %v391
      %v605 = vsel %vm603, %v604, %v391
      %v606 = vshrl.u32 %v605, 4
      %v607 = vand.u32 %v605, 15
      %v608 = vsub.s32 0, %v607
      %v609 = vsel %vm603, %v608, %v607
      %vm610 = vcmp.lt.s32.totalorder %v392, 0
      %v611 = vsub.s32 0, %v392
      %v612 = vsel %vm610, %v611, %v392
      %v613 = vshrl.u32 %v612, 4
      %v614 = vand.u32 %v612, 15
      %v615 = vsub.s32 0, %v614
      %v616 = vsel %vm610, %v615, %v614
      %vm617 = vcmp.ne.s32.totalorder %v399, 0
      %vm618 = vcmp.ne.s32.totalorder %v406, 0
      %vm619 = vcmp.ne.s32.totalorder %v413, 0
      %vm620 = vcmp.ne.s32.totalorder %v420, 0
      %vm621 = vcmp.ne.s32.totalorder %v427, 0
      %vm622 = vcmp.ne.s32.totalorder %v434, 0
      %vm623 = vcmp.ne.s32.totalorder %v441, 0
      %vm624 = vcmp.ne.s32.totalorder %v448, 0
      %vm625 = vcmp.ne.s32.totalorder %v455, 0
      %vm626 = vcmp.ne.s32.totalorder %v462, 0
      %vm627 = vcmp.ne.s32.totalorder %v469, 0
      %vm628 = vcmp.ne.s32.totalorder %v476, 0
      %vm629 = vcmp.ne.s32.totalorder %v483, 0
      %vm630 = vcmp.ne.s32.totalorder %v490, 0
      %vm631 = vcmp.ne.s32.totalorder %v497, 0
      %vm632 = vcmp.ne.s32.totalorder %v504, 0
      %vm633 = vcmp.ne.s32.totalorder %v511, 0
      %vm634 = vcmp.ne.s32.totalorder %v518, 0
      %vm635 = vcmp.ne.s32.totalorder %v525, 0
      %vm636 = vcmp.ne.s32.totalorder %v532, 0
      %vm637 = vcmp.ne.s32.totalorder %v539, 0
      %vm638 = vcmp.ne.s32.totalorder %v546, 0
      %vm639 = vcmp.ne.s32.totalorder %v553, 0
      %vm640 = vcmp.ne.s32.totalorder %v560, 0
      %vm641 = vcmp.ne.s32.totalorder %v567, 0
      %vm642 = vcmp.ne.s32.totalorder %v574, 0
      %vm643 = vcmp.ne.s32.totalorder %v581, 0
      %vm644 = vcmp.ne.s32.totalorder %v588, 0
      %vm645 = vcmp.ne.s32.totalorder %v595, 0
      %vm646 = vcmp.ne.s32.totalorder %v602, 0
      %vm647 = vcmp.ne.s32.totalorder %v609, 0
      %vm648 = vcmp.ne.s32.totalorder %v616, 0
      %vm649 = vcmp.lt.s32.totalorder %v399, 0
      %vm650 = vcmp.lt.s32.totalorder %v406, 0
      %vm651 = vcmp.lt.s32.totalorder %v413, 0
      %vm652 = vcmp.lt.s32.totalorder %v420, 0
      %vm653 = vcmp.lt.s32.totalorder %v427, 0
      %vm654 = vcmp.lt.s32.totalorder %v434, 0
      %vm655 = vcmp.lt.s32.totalorder %v441, 0
      %vm656 = vcmp.lt.s32.totalorder %v448, 0
      %vm657 = vcmp.lt.s32.totalorder %v455, 0
      %vm658 = vcmp.lt.s32.totalorder %v462, 0
      %vm659 = vcmp.lt.s32.totalorder %v469, 0
      %vm660 = vcmp.lt.s32.totalorder %v476, 0
      %vm661 = vcmp.lt.s32.totalorder %v483, 0
      %vm662 = vcmp.lt.s32.totalorder %v490, 0
      %vm663 = vcmp.lt.s32.totalorder %v497, 0
      %vm664 = vcmp.lt.s32.totalorder %v504, 0
      %vm665 = vcmp.lt.s32.totalorder %v511, 0
      %vm666 = vcmp.lt.s32.totalorder %v518, 0
      %vm667 = vcmp.lt.s32.totalorder %v525, 0
      %vm668 = vcmp.lt.s32.totalorder %v532, 0
      %vm669 = vcmp.lt.s32.totalorder %v539, 0
      %vm670 = vcmp.lt.s32.totalorder %v546, 0
      %vm671 = vcmp.lt.s32.totalorder %v553, 0
      %vm672 = vcmp.lt.s32.totalorder %v560, 0
      %vm673 = vcmp.lt.s32.totalorder %v567, 0
      %vm674 = vcmp.lt.s32.totalorder %v574, 0
      %vm675 = vcmp.lt.s32.totalorder %v581, 0
      %vm676 = vcmp.lt.s32.totalorder %v588, 0
      %vm677 = vcmp.lt.s32.totalorder %v595, 0
      %vm678 = vcmp.lt.s32.totalorder %v602, 0
      %vm679 = vcmp.lt.s32.totalorder %v609, 0
      %vm680 = vcmp.lt.s32.totalorder %v616, 0
      %vm681 = vmand %vm649, %vm617
      %vm682 = vmand %vm650, %vm618
      %vm683 = vmand %vm651, %vm619
      %vm684 = vmand %vm652, %vm620
      %vm685 = vmand %vm653, %vm621
      %vm686 = vmand %vm654, %vm622
      %vm687 = vmand %vm655, %vm623
      %vm688 = vmand %vm656, %vm624
      %vm689 = vmand %vm657, %vm625
      %vm690 = vmand %vm658, %vm626
      %vm691 = vmand %vm659, %vm627
      %vm692 = vmand %vm660, %vm628
      %vm693 = vmand %vm661, %vm629
      %vm694 = vmand %vm662, %vm630
      %vm695 = vmand %vm663, %vm631
      %vm696 = vmand %vm664, %vm632
      %vm697 = vmand %vm665, %vm633
      %vm698 = vmand %vm666, %vm634
      %vm699 = vmand %vm667, %vm635
      %vm700 = vmand %vm668, %vm636
      %vm701 = vmand %vm669, %vm637
      %vm702 = vmand %vm670, %vm638
      %vm703 = vmand %vm671, %vm639
      %vm704 = vmand %vm672, %vm640
      %vm705 = vmand %vm673, %vm641
      %vm706 = vmand %vm674, %vm642
      %vm707 = vmand %vm675, %vm643
      %vm708 = vmand %vm676, %vm644
      %vm709 = vmand %vm677, %vm645
      %vm710 = vmand %vm678, %vm646
      %vm711 = vmand %vm679, %vm647
      %vm712 = vmand %vm680, %vm648
      %v713 = vadd.s32 %v399, 16
      %v714 = vadd.s32 %v406, 16
      %v715 = vadd.s32 %v413, 16
      %v716 = vadd.s32 %v420, 16
      %v717 = vadd.s32 %v427, 16
      %v718 = vadd.s32 %v434, 16
      %v719 = vadd.s32 %v441, 16
      %v720 = vadd.s32 %v448, 16
      %v721 = vadd.s32 %v455, 16
      %v722 = vadd.s32 %v462, 16
      %v723 = vadd.s32 %v469, 16
      %v724 = vadd.s32 %v476, 16
      %v725 = vadd.s32 %v483, 16
      %v726 = vadd.s32 %v490, 16
      %v727 = vadd.s32 %v497, 16
      %v728 = vadd.s32 %v504, 16
      %v729 = vadd.s32 %v511, 16
      %v730 = vadd.s32 %v518, 16
      %v731 = vadd.s32 %v525, 16
      %v732 = vadd.s32 %v532, 16
      %v733 = vadd.s32 %v539, 16
      %v734 = vadd.s32 %v546, 16
      %v735 = vadd.s32 %v553, 16
      %v736 = vadd.s32 %v560, 16
      %v737 = vadd.s32 %v567, 16
      %v738 = vadd.s32 %v574, 16
      %v739 = vadd.s32 %v581, 16
      %v740 = vadd.s32 %v588, 16
      %v741 = vadd.s32 %v595, 16
      %v742 = vadd.s32 %v602, 16
      %v743 = vadd.s32 %v609, 16
      %v744 = vadd.s32 %v616, 16
      %v745 = vsel %vm681, %v713, %v399
      %v746 = vsel %vm682, %v714, %v406
      %v747 = vsel %vm683, %v715, %v413
      %v748 = vsel %vm684, %v716, %v420
      %v749 = vsel %vm685, %v717, %v427
      %v750 = vsel %vm686, %v718, %v434
      %v751 = vsel %vm687, %v719, %v441
      %v752 = vsel %vm688, %v720, %v448
      %v753 = vsel %vm689, %v721, %v455
      %v754 = vsel %vm690, %v722, %v462
      %v755 = vsel %vm691, %v723, %v469
      %v756 = vsel %vm692, %v724, %v476
      %v757 = vsel %vm693, %v725, %v483
      %v758 = vsel %vm694, %v726, %v490
      %v759 = vsel %vm695, %v727, %v497
      %v760 = vsel %vm696, %v728, %v504
      %v761 = vsel %vm697, %v729, %v511
      %v762 = vsel %vm698, %v730, %v518
      %v763 = vsel %vm699, %v731, %v525
      %v764 = vsel %vm700, %v732, %v532
      %v765 = vsel %vm701, %v733, %v539
      %v766 = vsel %vm702, %v734, %v546
      %v767 = vsel %vm703, %v735, %v553
      %v768 = vsel %vm704, %v736, %v560
      %v769 = vsel %vm705, %v737, %v567
      %v770 = vsel %vm706, %v738, %v574
      %v771 = vsel %vm707, %v739, %v581
      %v772 = vsel %vm708, %v740, %v588
      %v773 = vsel %vm709, %v741, %v595
      %v774 = vsel %vm710, %v742, %v602
      %v775 = vsel %vm711, %v743, %v609
      %v776 = vsel %vm712, %v744, %v616
      %vm777 = vcmp.ne.s32.totalorder %v745, 0
      %vm778 = vcmp.ne.s32.totalorder %v746, 0
      %vm779 = vcmp.ne.s32.totalorder %v747, 0
      %vm780 = vcmp.ne.s32.totalorder %v748, 0
      %vm781 = vcmp.ne.s32.totalorder %v749, 0
      %vm782 = vcmp.ne.s32.totalorder %v750, 0
      %vm783 = vcmp.ne.s32.totalorder %v751, 0
      %vm784 = vcmp.ne.s32.totalorder %v752, 0
      %vm785 = vcmp.ne.s32.totalorder %v753, 0
      %vm786 = vcmp.ne.s32.totalorder %v754, 0
      %vm787 = vcmp.ne.s32.totalorder %v755, 0
      %vm788 = vcmp.ne.s32.totalorder %v756, 0
      %vm789 = vcmp.ne.s32.totalorder %v757, 0
      %vm790 = vcmp.ne.s32.totalorder %v758, 0
      %vm791 = vcmp.ne.s32.totalorder %v759, 0
      %vm792 = vcmp.ne.s32.totalorder %v760, 0
      %vm793 = vcmp.ne.s32.totalorder %v761, 0
      %vm794 = vcmp.ne.s32.totalorder %v762, 0
      %vm795 = vcmp.ne.s32.totalorder %v763, 0
      %vm796 = vcmp.ne.s32.totalorder %v764, 0
      %vm797 = vcmp.ne.s32.totalorder %v765, 0
      %vm798 = vcmp.ne.s32.totalorder %v766, 0
      %vm799 = vcmp.ne.s32.totalorder %v767, 0
      %vm800 = vcmp.ne.s32.totalorder %v768, 0
      %vm801 = vcmp.ne.s32.totalorder %v769, 0
      %vm802 = vcmp.ne.s32.totalorder %v770, 0
      %vm803 = vcmp.ne.s32.totalorder %v771, 0
      %vm804 = vcmp.ne.s32.totalorder %v772, 0
      %vm805 = vcmp.ne.s32.totalorder %v773, 0
      %vm806 = vcmp.ne.s32.totalorder %v774, 0
      %vm807 = vcmp.ne.s32.totalorder %v775, 0
      %vm808 = vcmp.ne.s32.totalorder %v776, 0
      %v809 = vsel %vm777, 1, 0
      %v810 = vsel %vm778, 1, 0
      %v811 = vsel %vm779, 1, 0
      %v812 = vsel %vm780, 1, 0
      %v813 = vsel %vm781, 1, 0
      %v814 = vsel %vm782, 1, 0
      %v815 = vsel %vm783, 1, 0
      %v816 = vsel %vm784, 1, 0
      %v817 = vsel %vm785, 1, 0
      %v818 = vsel %vm786, 1, 0
      %v819 = vsel %vm787, 1, 0
      %v820 = vsel %vm788, 1, 0
      %v821 = vsel %vm789, 1, 0
      %v822 = vsel %vm790, 1, 0
      %v823 = vsel %vm791, 1, 0
      %v824 = vsel %vm792, 1, 0
      %v825 = vsel %vm793, 1, 0
      %v826 = vsel %vm794, 1, 0
      %v827 = vsel %vm795, 1, 0
      %v828 = vsel %vm796, 1, 0
      %v829 = vsel %vm797, 1, 0
      %v830 = vsel %vm798, 1, 0
      %v831 = vsel %vm799, 1, 0
      %v832 = vsel %vm800, 1, 0
      %v833 = vsel %vm801, 1, 0
      %v834 = vsel %vm802, 1, 0
      %v835 = vsel %vm803, 1, 0
      %v836 = vsel %vm804, 1, 0
      %v837 = vsel %vm805, 1, 0
      %v838 = vsel %vm806, 1, 0
      %v839 = vsel %vm807, 1, 0
      %v840 = vsel %vm808, 1, 0
      %v841 = vcvt.s32.f32 %v809
      %v842 = vcvt.s32.f32 %v810
      %v843 = vcvt.s32.f32 %v811
      %v844 = vcvt.s32.f32 %v812
      %v845 = vcvt.s32.f32 %v813
      %v846 = vcvt.s32.f32 %v814
      %v847 = vcvt.s32.f32 %v815
      %v848 = vcvt.s32.f32 %v816
      %v849 = vcvt.s32.f32 %v817
      %v850 = vcvt.s32.f32 %v818
      %v851 = vcvt.s32.f32 %v819
      %v852 = vcvt.s32.f32 %v820
      %v853 = vcvt.s32.f32 %v821
      %v854 = vcvt.s32.f32 %v822
      %v855 = vcvt.s32.f32 %v823
      %v856 = vcvt.s32.f32 %v824
      %v857 = vcvt.s32.f32 %v825
      %v858 = vcvt.s32.f32 %v826
      %v859 = vcvt.s32.f32 %v827
      %v860 = vcvt.s32.f32 %v828
      %v861 = vcvt.s32.f32 %v829
      %v862 = vcvt.s32.f32 %v830
      %v863 = vcvt.s32.f32 %v831
      %v864 = vcvt.s32.f32 %v832
      %v865 = vcvt.s32.f32 %v833
      %v866 = vcvt.s32.f32 %v834
      %v867 = vcvt.s32.f32 %v835
      %v868 = vcvt.s32.f32 %v836
      %v869 = vcvt.s32.f32 %v837
      %v870 = vcvt.s32.f32 %v838
      %v871 = vcvt.s32.f32 %v839
      %v872 = vcvt.s32.f32 %v840
      %vm873 = vcmp.ne.s32.totalorder %v745, 15
      %vm874 = vcmp.ne.s32.totalorder %v746, 15
      %vm875 = vcmp.ne.s32.totalorder %v747, 15
      %vm876 = vcmp.ne.s32.totalorder %v748, 15
      %vm877 = vcmp.ne.s32.totalorder %v749, 15
      %vm878 = vcmp.ne.s32.totalorder %v750, 15
      %vm879 = vcmp.ne.s32.totalorder %v751, 15
      %vm880 = vcmp.ne.s32.totalorder %v752, 15
      %vm881 = vcmp.ne.s32.totalorder %v753, 15
      %vm882 = vcmp.ne.s32.totalorder %v754, 15
      %vm883 = vcmp.ne.s32.totalorder %v755, 15
      %vm884 = vcmp.ne.s32.totalorder %v756, 15
      %vm885 = vcmp.ne.s32.totalorder %v757, 15
      %vm886 = vcmp.ne.s32.totalorder %v758, 15
      %vm887 = vcmp.ne.s32.totalorder %v759, 15
      %vm888 = vcmp.ne.s32.totalorder %v760, 15
      %vm889 = vcmp.ne.s32.totalorder %v761, 15
      %vm890 = vcmp.ne.s32.totalorder %v762, 15
      %vm891 = vcmp.ne.s32.totalorder %v763, 15
      %vm892 = vcmp.ne.s32.totalorder %v764, 15
      %vm893 = vcmp.ne.s32.totalorder %v765, 15
      %vm894 = vcmp.ne.s32.totalorder %v766, 15
      %vm895 = vcmp.ne.s32.totalorder %v767, 15
      %vm896 = vcmp.ne.s32.totalorder %v768, 15
      %vm897 = vcmp.ne.s32.totalorder %v769, 15
      %vm898 = vcmp.ne.s32.totalorder %v770, 15
      %vm899 = vcmp.ne.s32.totalorder %v771, 15
      %vm900 = vcmp.ne.s32.totalorder %v772, 15
      %vm901 = vcmp.ne.s32.totalorder %v773, 15
      %vm902 = vcmp.ne.s32.totalorder %v774, 15
      %vm903 = vcmp.ne.s32.totalorder %v775, 15
      %vm904 = vcmp.ne.s32.totalorder %v776, 15
      %v905 = vsel %vm873, 1, 0
      %v906 = vsel %vm874, 1, 0
      %v907 = vsel %vm875, 1, 0
      %v908 = vsel %vm876, 1, 0
      %v909 = vsel %vm877, 1, 0
      %v910 = vsel %vm878, 1, 0
      %v911 = vsel %vm879, 1, 0
      %v912 = vsel %vm880, 1, 0
      %v913 = vsel %vm881, 1, 0
      %v914 = vsel %vm882, 1, 0
      %v915 = vsel %vm883, 1, 0
      %v916 = vsel %vm884, 1, 0
      %v917 = vsel %vm885, 1, 0
      %v918 = vsel %vm886, 1, 0
      %v919 = vsel %vm887, 1, 0
      %v920 = vsel %vm888, 1, 0
      %v921 = vsel %vm889, 1, 0
      %v922 = vsel %vm890, 1, 0
      %v923 = vsel %vm891, 1, 0
      %v924 = vsel %vm892, 1, 0
      %v925 = vsel %vm893, 1, 0
      %v926 = vsel %vm894, 1, 0
      %v927 = vsel %vm895, 1, 0
      %v928 = vsel %vm896, 1, 0
      %v929 = vsel %vm897, 1, 0
      %v930 = vsel %vm898, 1, 0
      %v931 = vsel %vm899, 1, 0
      %v932 = vsel %vm900, 1, 0
      %v933 = vsel %vm901, 1, 0
      %v934 = vsel %vm902, 1, 0
      %v935 = vsel %vm903, 1, 0
      %v936 = vsel %vm904, 1, 0
      %v937 = vcvt.s32.f32 %v905
      %v938 = vcvt.s32.f32 %v906
      %v939 = vcvt.s32.f32 %v907
      %v940 = vcvt.s32.f32 %v908
      %v941 = vcvt.s32.f32 %v909
      %v942 = vcvt.s32.f32 %v910
      %v943 = vcvt.s32.f32 %v911
      %v944 = vcvt.s32.f32 %v912
      %v945 = vcvt.s32.f32 %v913
      %v946 = vcvt.s32.f32 %v914
      %v947 = vcvt.s32.f32 %v915
      %v948 = vcvt.s32.f32 %v916
      %v949 = vcvt.s32.f32 %v917
      %v950 = vcvt.s32.f32 %v918
      %v951 = vcvt.s32.f32 %v919
      %v952 = vcvt.s32.f32 %v920
      %v953 = vcvt.s32.f32 %v921
      %v954 = vcvt.s32.f32 %v922
      %v955 = vcvt.s32.f32 %v923
      %v956 = vcvt.s32.f32 %v924
      %v957 = vcvt.s32.f32 %v925
      %v958 = vcvt.s32.f32 %v926
      %v959 = vcvt.s32.f32 %v927
      %v960 = vcvt.s32.f32 %v928
      %v961 = vcvt.s32.f32 %v929
      %v962 = vcvt.s32.f32 %v930
      %v963 = vcvt.s32.f32 %v931
      %v964 = vcvt.s32.f32 %v932
      %v965 = vcvt.s32.f32 %v933
      %v966 = vcvt.s32.f32 %v934
      %v967 = vcvt.s32.f32 %v935
      %v968 = vcvt.s32.f32 %v936
      %vm969 = vcmask 97280
      %970 = vst.msk [vmem:[#allocation2] sm:$0xff] %vm969, 0.0
      %971 = vst.msk [vmem:[#allocation2 + $0x8] sm:$0xff] %vm969, 0.0
      %972 = vst.msk [vmem:[#allocation2 + $0x10] sm:$0xff] %vm969, 0.0
      %973 = vst.msk [vmem:[#allocation2 + $0x118] sm:$0xff] %vm969, 0.0
      %974 = vst.msk [vmem:[#allocation2 + $0x120] sm:$0xff] %vm969, 0.0
      %975 = vst.msk [vmem:[#allocation2 + $0x128] sm:$0xff] %vm969, 0.0
      %v976 = vld [vmem:[%s354] sm:$0xff]
      %v977 = vld [vmem:[%s354 + $0x8] sm:$0xff]
      %v978 = vld [vmem:[%s354 + $0x10] sm:$0xff]
      %v979 = vld [vmem:[%s354 + $0x18] sm:$0xff]
      %v980 = vld [vmem:[%s354 + $0x20] sm:$0xff]
      %v981 = vld [vmem:[%s354 + $0x28] sm:$0xff]
      %v982 = vld [vmem:[%s354 + $0x30] sm:$0xff]
      %v983 = vld [vmem:[%s354 + $0x38] sm:$0xff]
      %v984 = vld [vmem:[%s354 + $0x40] sm:$0xff]
      %v985 = vld [vmem:[%s354 + $0x48] sm:$0xff]
      %v986 = vld [vmem:[%s354 + $0x50] sm:$0xff]
      %v987 = vld [vmem:[%s354 + $0x58] sm:$0xff]
      %v988 = vld [vmem:[%s354 + $0x60] sm:$0xff]
      %v989 = vld [vmem:[%s354 + $0x68] sm:$0xff]
      %v990 = vld [vmem:[%s354 + $0x70] sm:$0xff]
      %v991 = vld [vmem:[%s354 + $0x78] sm:$0xff]
      %v992 = vld [vmem:[%s354 + $0x80] sm:$0xff]
      %v993 = vld [vmem:[%s354 + $0x88] sm:$0xff]
      %v994 = vld [vmem:[%s354 + $0x90] sm:$0xff]
      %v995 = vld [vmem:[%s354 + $0x98] sm:$0xff]
      %v996 = vld [vmem:[%s354 + $0xa0] sm:$0xff]
      %v997 = vld [vmem:[%s354 + $0xa8] sm:$0xff]
      %v998 = vld [vmem:[%s354 + $0xb0] sm:$0xff]
      %v999 = vld [vmem:[%s354 + $0xb8] sm:$0xff]
      %v1000 = vld [vmem:[%s354 + $0xc0] sm:$0xff]
      %v1001 = vld [vmem:[%s354 + $0xc8] sm:$0xff]
      %v1002 = vld [vmem:[%s354 + $0xd0] sm:$0xff]
      %v1003 = vld [vmem:[%s354 + $0xd8] sm:$0xff]
      %v1004 = vld [vmem:[%s354 + $0xe0] sm:$0xff]
      %v1005 = vld [vmem:[%s354 + $0xe8] sm:$0xff]
      %v1006 = vld [vmem:[%s354 + $0xf0] sm:$0xff]
      %v1007 = vld [vmem:[%s354 + $0xf8] sm:$0xff]
      %v1008 = vld [vmem:[%s1] sm:$0xff]
      %v1009 = vld [vmem:[%s1 + $0x8] sm:$0xff]
      %vm1010 = vcmask 130048
      %v1012 = vsel %vm1010, %v976, 0
      %v1015 = vsel %vm1010, %v977, 0
      %v1018 = vsel %vm1010, %v978, 0
      %v1021 = vsel %vm1010, %v979, 0
      %v1024 = vsel %vm1010, %v980, 0
      %v1027 = vsel %vm1010, %v981, 0
      %v1030 = vsel %vm1010, %v982, 0
      %v1033 = vsel %vm1010, %v983, 0
      %v1036 = vsel %vm1010, %v984, 0
      %v1039 = vsel %vm1010, %v985, 0
      %v1042 = vsel %vm1010, %v986, 0
      %v1045 = vsel %vm1010, %v987, 0
      %v1048 = vsel %vm1010, %v988, 0
      %v1051 = vsel %vm1010, %v989, 0
      %v1054 = vsel %vm1010, %v990, 0
      %v1057 = vsel %vm1010, %v991, 0
      %v1060 = vsel %vm1010, %v992, 0
      %v1063 = vsel %vm1010, %v993, 0
      %v1066 = vsel %vm1010, %v994, 0
      %v1069 = vsel %vm1010, %v995, 0
      %v1072 = vsel %vm1010, %v996, 0
      %v1075 = vsel %vm1010, %v997, 0
      %v1078 = vsel %vm1010, %v998, 0
      %v1081 = vsel %vm1010, %v999, 0
      %v1084 = vsel %vm1010, %v1000, 0
      %v1087 = vsel %vm1010, %v1001, 0
      %v1090 = vsel %vm1010, %v1002, 0
      %v1093 = vsel %vm1010, %v1003, 0
      %v1096 = vsel %vm1010, %v1004, 0
      %v1099 = vsel %vm1010, %v1005, 0
      %v1102 = vsel %vm1010, %v1006, 0
      %v1105 = vsel %vm1010, %v1007, 0
      %1107 = vmatprep.subr.mxu0 0.0
      %1108 = vmatpush1.msra.mxu0 0.0
      %1109 = vmatprep.subr.mxu0 0.0
      %1110 = vmatpush1.msra.mxu0 0.0
      %1111 = vmatprep.subr.mxu0 0.0
      %1112 = vmatpush1.msra.mxu0 0.0
      %1113 = vmatprep.subr.mxu0 0.0
      %1114 = vmatpush1.msra.mxu0 0.0
      %1115 = vmatprep.subr.mxu0 0.0
      %1116 = vmatpush1.msra.mxu0 0.0
      %1117 = vmatprep.subr.mxu0 0.0
      %1118 = vmatpush1.msra.mxu0 0.0
      %1119 = vmatprep.subr.mxu0 0.0
      %1120 = vmatpush1.msra.mxu0 0.0
      %1121 = vmatprep.subr.mxu0 0.0
      %1122 = vmatpush1.msra.mxu0 0.0
      %1123 = vmatprep.subr.mxu0 0.0
      %1124 = vmatpush1.msra.mxu0 0.0
      %1125 = vmatprep.subr.mxu0 0.0
      %1126 = vmatpush1.msra.mxu0 0.0
      %1127 = vmatprep.subr.mxu0 0.0
      %1128 = vmatpush1.msra.mxu0 0.0
      %1129 = vmatprep.subr.mxu0 0.0
      %1130 = vmatpush1.msra.mxu0 0.0
      %1131 = vmatprep.subr.mxu0 0.0
      %1132 = vmatpush1.msra.mxu0 0.0
      %1133 = vmatprep.subr.mxu0 0.0
      %1134 = vmatpush1.msra.mxu0 0.0
      %1135 = vmatprep.subr.mxu0 0.0
      %1136 = vmatpush1.msra.mxu0 %v1009
      %1137 = vmatprep.subr.mxu0 0.0
      %1138 = vmatpush1.msra.mxu0 %v1008
      %1139 = vmatprep.subr.mxu0 0.0
      %1140 = vmatpush2.msra.mxu0 0.0
      %1141 = vmatprep.subr.mxu0 0.0
      %1142 = vmatpush2.msra.mxu0 0.0
      %1143 = vmatprep.subr.mxu0 0.0
      %1144 = vmatpush2.msra.mxu0 0.0
      %1145 = vmatprep.subr.mxu0 0.0
      %1146 = vmatpush2.msra.mxu0 0.0
      %1147 = vmatprep.subr.mxu0 0.0
      %1148 = vmatpush2.msra.mxu0 0.0
      %1149 = vmatprep.subr.mxu0 0.0
      %1150 = vmatpush2.msra.mxu0 0.0
      %1151 = vmatprep.subr.mxu0 0.0
      %1152 = vmatpush2.msra.mxu0 0.0
      %1153 = vmatprep.subr.mxu0 0.0
      %1154 = vmatpush2.msra.mxu0 0.0
      %1155 = vmatprep.subr.mxu0 0.0
      %1156 = vmatpush2.msra.mxu0 0.0
      %1157 = vmatprep.subr.mxu0 0.0
      %1158 = vmatpush2.msra.mxu0 0.0
      %1159 = vmatprep.subr.mxu0 0.0
      %1160 = vmatpush2.msra.mxu0 0.0
      %1161 = vmatprep.subr.mxu0 0.0
      %1162 = vmatpush2.msra.mxu0 0.0
      %1163 = vmatprep.subr.mxu0 0.0
      %1164 = vmatpush2.msra.mxu0 0.0
      %1165 = vmatprep.subr.mxu0 0.0
      %1166 = vmatpush2.msra.mxu0 0.0
      %1167 = vmatprep.subr.mxu0 0.0
      %1168 = vmatpush2.msra.mxu0 0.0
      %1169 = vmatprep.subr.mxu0 0.0
      %1170 = vmatpush2.msra.mxu0 0.0
      %1171 = vmatprep.mubr.f32.mxu0 0.0
      %1172 = vmatmul.mubr.f32.gmra.mxu0 %v1012
      %v1173 = vpop.f32.mrf.mxu0
      %v1174 = vadd.f32 0.0, %v1173
      %v1175 = vpop.f32.mrf.mxu0
      %1176 = vmatprep.mubr.f32.mxu0 0.0
      %1177 = vmatmul.mubr.f32.gmra.mxu0 %v1015
      %v1178 = vpop.f32.mrf.mxu0
      %v1179 = vadd.f32 0.0, %v1178
      %v1180 = vpop.f32.mrf.mxu0
      %1181 = vmatprep.mubr.f32.mxu0 0.0
      %1182 = vmatmul.mubr.f32.gmra.mxu0 %v1018
      %v1183 = vpop.f32.mrf.mxu0
      %v1184 = vadd.f32 0.0, %v1183
      %v1185 = vpop.f32.mrf.mxu0
      %1186 = vmatprep.mubr.f32.mxu0 0.0
      %1187 = vmatmul.mubr.f32.gmra.mxu0 %v1021
      %v1188 = vpop.f32.mrf.mxu0
      %v1189 = vadd.f32 0.0, %v1188
      %v1190 = vpop.f32.mrf.mxu0
      %1191 = vmatprep.mubr.f32.mxu0 0.0
      %1192 = vmatmul.mubr.f32.gmra.mxu0 %v1024
      %v1193 = vpop.f32.mrf.mxu0
      %v1194 = vadd.f32 0.0, %v1193
      %v1195 = vpop.f32.mrf.mxu0
      %1196 = vmatprep.mubr.f32.mxu0 0.0
      %1197 = vmatmul.mubr.f32.gmra.mxu0 %v1027
      %v1198 = vpop.f32.mrf.mxu0
      %v1199 = vadd.f32 0.0, %v1198
      %v1200 = vpop.f32.mrf.mxu0
      %1201 = vmatprep.mubr.f32.mxu0 0.0
      %1202 = vmatmul.mubr.f32.gmra.mxu0 %v1030
      %v1203 = vpop.f32.mrf.mxu0
      %v1204 = vadd.f32 0.0, %v1203
      %v1205 = vpop.f32.mrf.mxu0
      %1206 = vmatprep.mubr.f32.mxu0 0.0
      %1207 = vmatmul.mubr.f32.gmra.mxu0 %v1033
      %v1208 = vpop.f32.mrf.mxu0
      %v1209 = vadd.f32 0.0, %v1208
      %v1210 = vpop.f32.mrf.mxu0
      %1211 = vmatprep.mubr.f32.mxu0 0.0
      %1212 = vmatmul.mubr.f32.gmra.mxu0 %v1036
      %v1213 = vpop.f32.mrf.mxu0
      %v1214 = vadd.f32 0.0, %v1213
      %v1215 = vpop.f32.mrf.mxu0
      %1216 = vmatprep.mubr.f32.mxu0 0.0
      %1217 = vmatmul.mubr.f32.gmra.mxu0 %v1039
      %v1218 = vpop.f32.mrf.mxu0
      %v1219 = vadd.f32 0.0, %v1218
      %v1220 = vpop.f32.mrf.mxu0
      %1221 = vmatprep.mubr.f32.mxu0 0.0
      %1222 = vmatmul.mubr.f32.gmra.mxu0 %v1042
      %v1223 = vpop.f32.mrf.mxu0
      %v1224 = vadd.f32 0.0, %v1223
      %v1225 = vpop.f32.mrf.mxu0
      %1226 = vmatprep.mubr.f32.mxu0 0.0
      %1227 = vmatmul.mubr.f32.gmra.mxu0 %v1045
      %v1228 = vpop.f32.mrf.mxu0
      %v1229 = vadd.f32 0.0, %v1228
      %v1230 = vpop.f32.mrf.mxu0
      %1231 = vmatprep.mubr.f32.mxu0 0.0
      %1232 = vmatmul.mubr.f32.gmra.mxu0 %v1048
      %v1233 = vpop.f32.mrf.mxu0
      %v1234 = vadd.f32 0.0, %v1233
      %v1235 = vpop.f32.mrf.mxu0
      %1236 = vmatprep.mubr.f32.mxu0 0.0
      %1237 = vmatmul.mubr.f32.gmra.mxu0 %v1051
      %v1238 = vpop.f32.mrf.mxu0
      %v1239 = vadd.f32 0.0, %v1238
      %v1240 = vpop.f32.mrf.mxu0
      %1241 = vmatprep.mubr.f32.mxu0 0.0
      %1242 = vmatmul.mubr.f32.gmra.mxu0 %v1054
      %v1243 = vpop.f32.mrf.mxu0
      %v1244 = vadd.f32 0.0, %v1243
      %v1245 = vpop.f32.mrf.mxu0
      %1246 = vmatprep.mubr.f32.mxu0 0.0
      %1247 = vmatmul.mubr.f32.gmra.mxu0 %v1057
      %v1248 = vpop.f32.mrf.mxu0
      %v1249 = vadd.f32 0.0, %v1248
      %v1250 = vpop.f32.mrf.mxu0
      %1251 = vmatprep.mubr.f32.mxu0 0.0
      %1252 = vmatmul.mubr.f32.gmra.mxu0 %v1060
      %v1253 = vpop.f32.mrf.mxu0
      %v1254 = vadd.f32 0.0, %v1253
      %v1255 = vpop.f32.mrf.mxu0
      %1256 = vmatprep.mubr.f32.mxu0 0.0
      %1257 = vmatmul.mubr.f32.gmra.mxu0 %v1063
      %v1258 = vpop.f32.mrf.mxu0
      %v1259 = vadd.f32 0.0, %v1258
      %v1260 = vpop.f32.mrf.mxu0
      %1261 = vmatprep.mubr.f32.mxu0 0.0
      %1262 = vmatmul.mubr.f32.gmra.mxu0 %v1066
      %v1263 = vpop.f32.mrf.mxu0
      %v1264 = vadd.f32 0.0, %v1263
      %v1265 = vpop.f32.mrf.mxu0
      %1266 = vmatprep.mubr.f32.mxu0 0.0
      %1267 = vmatmul.mubr.f32.gmra.mxu0 %v1069
      %v1268 = vpop.f32.mrf.mxu0
      %v1269 = vadd.f32 0.0, %v1268
      %v1270 = vpop.f32.mrf.mxu0
      %1271 = vmatprep.mubr.f32.mxu0 0.0
      %1272 = vmatmul.mubr.f32.gmra.mxu0 %v1072
      %v1273 = vpop.f32.mrf.mxu0
      %v1274 = vadd.f32 0.0, %v1273
      %v1275 = vpop.f32.mrf.mxu0
      %1276 = vmatprep.mubr.f32.mxu0 0.0
      %1277 = vmatmul.mubr.f32.gmra.mxu0 %v1075
      %v1278 = vpop.f32.mrf.mxu0
      %v1279 = vadd.f32 0.0, %v1278
      %v1280 = vpop.f32.mrf.mxu0
      %1281 = vmatprep.mubr.f32.mxu0 0.0
      %1282 = vmatmul.mubr.f32.gmra.mxu0 %v1078
      %v1283 = vpop.f32.mrf.mxu0
      %v1284 = vadd.f32 0.0, %v1283
      %v1285 = vpop.f32.mrf.mxu0
      %1286 = vmatprep.mubr.f32.mxu0 0.0
      %1287 = vmatmul.mubr.f32.gmra.mxu0 %v1081
      %v1288 = vpop.f32.mrf.mxu0
      %v1289 = vadd.f32 0.0, %v1288
      %v1290 = vpop.f32.mrf.mxu0
      %1291 = vmatprep.mubr.f32.mxu0 0.0
      %1292 = vmatmul.mubr.f32.gmra.mxu0 %v1084
      %v1293 = vpop.f32.mrf.mxu0
      %v1294 = vadd.f32 0.0, %v1293
      %v1295 = vpop.f32.mrf.mxu0
      %1296 = vmatprep.mubr.f32.mxu0 0.0
      %1297 = vmatmul.mubr.f32.gmra.mxu0 %v1087
      %v1298 = vpop.f32.mrf.mxu0
      %v1299 = vadd.f32 0.0, %v1298
      %v1300 = vpop.f32.mrf.mxu0
      %1301 = vmatprep.mubr.f32.mxu0 0.0
      %1302 = vmatmul.mubr.f32.gmra.mxu0 %v1090
      %v1303 = vpop.f32.mrf.mxu0
      %v1304 = vadd.f32 0.0, %v1303
      %v1305 = vpop.f32.mrf.mxu0
      %1306 = vmatprep.mubr.f32.mxu0 0.0
      %1307 = vmatmul.mubr.f32.gmra.mxu0 %v1093
      %v1308 = vpop.f32.mrf.mxu0
      %v1309 = vadd.f32 0.0, %v1308
      %v1310 = vpop.f32.mrf.mxu0
      %1311 = vmatprep.mubr.f32.mxu0 0.0
      %1312 = vmatmul.mubr.f32.gmra.mxu0 %v1096
      %v1313 = vpop.f32.mrf.mxu0
      %v1314 = vadd.f32 0.0, %v1313
      %v1315 = vpop.f32.mrf.mxu0
      %1316 = vmatprep.mubr.f32.mxu0 0.0
      %1317 = vmatmul.mubr.f32.gmra.mxu0 %v1099
      %v1318 = vpop.f32.mrf.mxu0
      %v1319 = vadd.f32 0.0, %v1318
      %v1320 = vpop.f32.mrf.mxu0
      %1321 = vmatprep.mubr.f32.mxu0 0.0
      %1322 = vmatmul.mubr.f32.gmra.mxu0 %v1102
      %v1323 = vpop.f32.mrf.mxu0
      %v1324 = vadd.f32 0.0, %v1323
      %v1325 = vpop.f32.mrf.mxu0
      %1326 = vmatprep.mubr.f32.mxu0 0.0
      %1327 = vmatmul.mubr.f32.gmra.mxu0 %v1105
      %v1328 = vpop.f32.mrf.mxu0
      %v1329 = vadd.f32 0.0, %v1328
      %v1330 = vpop.f32.mrf.mxu0
      %1331 = vdwg.mxu0
      %v1332 = vld [vmem:[%s4] sm:$0x1]
      %v1334 = vlaneseq
      %v1335 = vshrl.u32 %v1334, 7
      %v1336 = vsub.s32 0, %v1335
      %v1337 = vrot.slane %v1332, %v1336
      %v1339 = vmul.f32 %v1174, %v1337
      %v1340 = vmul.f32 %v1179, %v1337
      %v1341 = vmul.f32 %v1184, %v1337
      %v1342 = vmul.f32 %v1189, %v1337
      %v1343 = vmul.f32 %v1194, %v1337
      %v1344 = vmul.f32 %v1199, %v1337
      %v1345 = vmul.f32 %v1204, %v1337
      %v1346 = vmul.f32 %v1209, %v1337
      %v1347 = vmul.f32 %v1214, %v1337
      %v1348 = vmul.f32 %v1219, %v1337
      %v1349 = vmul.f32 %v1224, %v1337
      %v1350 = vmul.f32 %v1229, %v1337
      %v1351 = vmul.f32 %v1234, %v1337
      %v1352 = vmul.f32 %v1239, %v1337
      %v1353 = vmul.f32 %v1244, %v1337
      %v1354 = vmul.f32 %v1249, %v1337
      %v1355 = vmul.f32 %v1254, %v1337
      %v1356 = vmul.f32 %v1259, %v1337
      %v1357 = vmul.f32 %v1264, %v1337
      %v1358 = vmul.f32 %v1269, %v1337
      %v1359 = vmul.f32 %v1274, %v1337
      %v1360 = vmul.f32 %v1279, %v1337
      %v1361 = vmul.f32 %v1284, %v1337
      %v1362 = vmul.f32 %v1289, %v1337
      %v1363 = vmul.f32 %v1294, %v1337
      %v1364 = vmul.f32 %v1299, %v1337
      %v1365 = vmul.f32 %v1304, %v1337
      %v1366 = vmul.f32 %v1309, %v1337
      %v1367 = vmul.f32 %v1314, %v1337
      %v1368 = vmul.f32 %v1319, %v1337
      %v1369 = vmul.f32 %v1324, %v1337
      %v1370 = vmul.f32 %v1329, %v1337
      %v1371 = vld [vmem:[%s5] sm:$0x1]
      %v1373 = vlaneseq
      %v1374 = vshrl.u32 %v1373, 7
      %v1375 = vsub.s32 0, %v1374
      %v1376 = vrot.slane %v1371, %v1375
      %v1378 = vadd.f32 %v1339, %v1376
      %v1379 = vadd.f32 %v1340, %v1376
      %v1380 = vadd.f32 %v1341, %v1376
      %v1381 = vadd.f32 %v1342, %v1376
      %v1382 = vadd.f32 %v1343, %v1376
      %v1383 = vadd.f32 %v1344, %v1376
      %v1384 = vadd.f32 %v1345, %v1376
      %v1385 = vadd.f32 %v1346, %v1376
      %v1386 = vadd.f32 %v1347, %v1376
      %v1387 = vadd.f32 %v1348, %v1376
      %v1388 = vadd.f32 %v1349, %v1376
      %v1389 = vadd.f32 %v1350, %v1376
      %v1390 = vadd.f32 %v1351, %v1376
      %v1391 = vadd.f32 %v1352, %v1376
      %v1392 = vadd.f32 %v1353, %v1376
      %v1393 = vadd.f32 %v1354, %v1376
      %v1394 = vadd.f32 %v1355, %v1376
      %v1395 = vadd.f32 %v1356, %v1376
      %v1396 = vadd.f32 %v1357, %v1376
      %v1397 = vadd.f32 %v1358, %v1376
      %v1398 = vadd.f32 %v1359, %v1376
      %v1399 = vadd.f32 %v1360, %v1376
      %v1400 = vadd.f32 %v1361, %v1376
      %v1401 = vadd.f32 %v1362, %v1376
      %v1402 = vadd.f32 %v1363, %v1376
      %v1403 = vadd.f32 %v1364, %v1376
      %v1404 = vadd.f32 %v1365, %v1376
      %v1405 = vadd.f32 %v1366, %v1376
      %v1406 = vadd.f32 %v1367, %v1376
      %v1407 = vadd.f32 %v1368, %v1376
      %v1408 = vadd.f32 %v1369, %v1376
      %v1409 = vadd.f32 %v1370, %v1376
      %v1410 = vmax.f32 %v1378, 0.0
      %v1411 = vmax.f32 %v1379, 0.0
      %v1412 = vmax.f32 %v1380, 0.0
      %v1413 = vmax.f32 %v1381, 0.0
      %v1414 = vmax.f32 %v1382, 0.0
      %v1415 = vmax.f32 %v1383, 0.0
      %v1416 = vmax.f32 %v1384, 0.0
      %v1417 = vmax.f32 %v1385, 0.0
      %v1418 = vmax.f32 %v1386, 0.0
      %v1419 = vmax.f32 %v1387, 0.0
      %v1420 = vmax.f32 %v1388, 0.0
      %v1421 = vmax.f32 %v1389, 0.0
      %v1422 = vmax.f32 %v1390, 0.0
      %v1423 = vmax.f32 %v1391, 0.0
      %v1424 = vmax.f32 %v1392, 0.0
      %v1425 = vmax.f32 %v1393, 0.0
      %v1426 = vmax.f32 %v1394, 0.0
      %v1427 = vmax.f32 %v1395, 0.0
      %v1428 = vmax.f32 %v1396, 0.0
      %v1429 = vmax.f32 %v1397, 0.0
      %v1430 = vmax.f32 %v1398, 0.0
      %v1431 = vmax.f32 %v1399, 0.0
      %v1432 = vmax.f32 %v1400, 0.0
      %v1433 = vmax.f32 %v1401, 0.0
      %v1434 = vmax.f32 %v1402, 0.0
      %v1435 = vmax.f32 %v1403, 0.0
      %v1436 = vmax.f32 %v1404, 0.0
      %v1437 = vmax.f32 %v1405, 0.0
      %v1438 = vmax.f32 %v1406, 0.0
      %v1439 = vmax.f32 %v1407, 0.0
      %v1440 = vmax.f32 %v1408, 0.0
      %v1441 = vmax.f32 %v1409, 0.0
      %v1442 = vrot.slane %v1410, 7
      %v1443 = vrot.slane %v1411, 7
      %v1444 = vrot.slane %v1412, 7
      %v1445 = vrot.slane %v1413, 7
      %v1446 = vrot.slane %v1414, 7
      %v1447 = vrot.slane %v1415, 7
      %v1448 = vrot.slane %v1416, 7
      %v1449 = vrot.slane %v1417, 7
      %v1450 = vrot.slane %v1418, 7
      %v1451 = vrot.slane %v1419, 7
      %v1452 = vrot.slane %v1420, 7
      %v1453 = vrot.slane %v1421, 7
      %v1454 = vrot.slane %v1422, 7
      %v1455 = vrot.slane %v1423, 7
      %v1456 = vrot.slane %v1424, 7
      %v1457 = vrot.slane %v1425, 7
      %v1458 = vrot.slane %v1426, 7
      %v1459 = vrot.slane %v1427, 7
      %v1460 = vrot.slane %v1428, 7
      %v1461 = vrot.slane %v1429, 7
      %v1462 = vrot.slane %v1430, 7
      %v1463 = vrot.slane %v1431, 7
      %v1464 = vrot.slane %v1432, 7
      %v1465 = vrot.slane %v1433, 7
      %v1466 = vrot.slane %v1434, 7
      %v1467 = vrot.slane %v1435, 7
      %v1468 = vrot.slane %v1436, 7
      %v1469 = vrot.slane %v1437, 7
      %v1470 = vrot.slane %v1438, 7
      %v1471 = vrot.slane %v1439, 7
      %v1472 = vrot.slane %v1440, 7
      %v1473 = vrot.slane %v1441, 7
      %vm1474 = vcmp.lt.s32.totalorder %v361, 1
      %v1475 = vsel %vm1474, %v1472, %v1473
      %v1476 = vsel %vm1474, %v1471, %v1472
      %v1477 = vsel %vm1474, %v1470, %v1471
      %v1478 = vsel %vm1474, %v1469, %v1470
      %v1479 = vsel %vm1474, %v1468, %v1469
      %v1480 = vsel %vm1474, %v1467, %v1468
      %v1481 = vsel %vm1474, %v1466, %v1467
      %v1482 = vsel %vm1474, %v1465, %v1466
      %v1483 = vsel %vm1474, %v1464, %v1465
      %v1484 = vsel %vm1474, %v1463, %v1464
      %v1485 = vsel %vm1474, %v1462, %v1463
      %v1486 = vsel %vm1474, %v1461, %v1462
      %v1487 = vsel %vm1474, %v1460, %v1461
      %v1488 = vsel %vm1474, %v1459, %v1460
      %v1489 = vsel %vm1474, %v1458, %v1459
      %v1490 = vsel %vm1474, %v1457, %v1458
      %v1491 = vsel %vm1474, %v1456, %v1457
      %v1492 = vsel %vm1474, %v1455, %v1456
      %v1493 = vsel %vm1474, %v1454, %v1455
      %v1494 = vsel %vm1474, %v1453, %v1454
      %v1495 = vsel %vm1474, %v1452, %v1453
      %v1496 = vsel %vm1474, %v1451, %v1452
      %v1497 = vsel %vm1474, %v1450, %v1451
      %v1498 = vsel %vm1474, %v1449, %v1450
      %v1499 = vsel %vm1474, %v1448, %v1449
      %v1500 = vsel %vm1474, %v1447, %v1448
      %v1501 = vsel %vm1474, %v1446, %v1447
      %v1502 = vsel %vm1474, %v1445, %v1446
      %v1503 = vsel %vm1474, %v1444, %v1445
      %v1504 = vsel %vm1474, %v1443, %v1444
      %v1505 = vsel %vm1474, %v1442, %v1443
      %v1506 = vsel %vm1474, %v1473, %v1442
      %v1507 = vmul.f32 %v1506, %v841
      %v1508 = vmul.f32 %v1505, %v842
      %v1509 = vmul.f32 %v1504, %v843
      %v1510 = vmul.f32 %v1503, %v844
      %v1511 = vmul.f32 %v1502, %v845
      %v1512 = vmul.f32 %v1501, %v846
      %v1513 = vmul.f32 %v1500, %v847
      %v1514 = vmul.f32 %v1499, %v848
      %v1515 = vmul.f32 %v1498, %v849
      %v1516 = vmul.f32 %v1497, %v850
      %v1517 = vmul.f32 %v1496, %v851
      %v1518 = vmul.f32 %v1495, %v852
      %v1519 = vmul.f32 %v1494, %v853
      %v1520 = vmul.f32 %v1493, %v854
      %v1521 = vmul.f32 %v1492, %v855
      %v1522 = vmul.f32 %v1491, %v856
      %v1523 = vmul.f32 %v1490, %v857
      %v1524 = vmul.f32 %v1489, %v858
      %v1525 = vmul.f32 %v1488, %v859
      %v1526 = vmul.f32 %v1487, %v860
      %v1527 = vmul.f32 %v1486, %v861
      %v1528 = vmul.f32 %v1485, %v862
      %v1529 = vmul.f32 %v1484, %v863
      %v1530 = vmul.f32 %v1483, %v864
      %v1531 = vmul.f32 %v1482, %v865
      %v1532 = vmul.f32 %v1481, %v866
      %v1533 = vmul.f32 %v1480, %v867
      %v1534 = vmul.f32 %v1479, %v868
      %v1535 = vmul.f32 %v1478, %v869
      %v1536 = vmul.f32 %v1477, %v870
      %v1537 = vmul.f32 %v1476, %v871
      %v1538 = vmul.f32 %v1475, %v872
      %v1539 = vrot.slane %v1410, 1
      %v1540 = vrot.slane %v1411, 1
      %v1541 = vrot.slane %v1412, 1
      %v1542 = vrot.slane %v1413, 1
      %v1543 = vrot.slane %v1414, 1
      %v1544 = vrot.slane %v1415, 1
      %v1545 = vrot.slane %v1416, 1
      %v1546 = vrot.slane %v1417, 1
      %v1547 = vrot.slane %v1418, 1
      %v1548 = vrot.slane %v1419, 1
      %v1549 = vrot.slane %v1420, 1
      %v1550 = vrot.slane %v1421, 1
      %v1551 = vrot.slane %v1422, 1
      %v1552 = vrot.slane %v1423, 1
      %v1553 = vrot.slane %v1424, 1
      %v1554 = vrot.slane %v1425, 1
      %v1555 = vrot.slane %v1426, 1
      %v1556 = vrot.slane %v1427, 1
      %v1557 = vrot.slane %v1428, 1
      %v1558 = vrot.slane %v1429, 1
      %v1559 = vrot.slane %v1430, 1
      %v1560 = vrot.slane %v1431, 1
      %v1561 = vrot.slane %v1432, 1
      %v1562 = vrot.slane %v1433, 1
      %v1563 = vrot.slane %v1434, 1
      %v1564 = vrot.slane %v1435, 1
      %v1565 = vrot.slane %v1436, 1
      %v1566 = vrot.slane %v1437, 1
      %v1567 = vrot.slane %v1438, 1
      %v1568 = vrot.slane %v1439, 1
      %v1569 = vrot.slane %v1440, 1
      %v1570 = vrot.slane %v1441, 1
      %vm1571 = vcmp.lt.s32.totalorder %v361, 7
      %v1572 = vsel %vm1571, %v1569, %v1570
      %v1573 = vsel %vm1571, %v1568, %v1569
      %v1574 = vsel %vm1571, %v1567, %v1568
      %v1575 = vsel %vm1571, %v1566, %v1567
      %v1576 = vsel %vm1571, %v1565, %v1566
      %v1577 = vsel %vm1571, %v1564, %v1565
      %v1578 = vsel %vm1571, %v1563, %v1564
      %v1579 = vsel %vm1571, %v1562, %v1563
      %v1580 = vsel %vm1571, %v1561, %v1562
      %v1581 = vsel %vm1571, %v1560, %v1561
      %v1582 = vsel %vm1571, %v1559, %v1560
      %v1583 = vsel %vm1571, %v1558, %v1559
      %v1584 = vsel %vm1571, %v1557, %v1558
      %v1585 = vsel %vm1571, %v1556, %v1557
      %v1586 = vsel %vm1571, %v1555, %v1556
      %v1587 = vsel %vm1571, %v1554, %v1555
      %v1588 = vsel %vm1571, %v1553, %v1554
      %v1589 = vsel %vm1571, %v1552, %v1553
      %v1590 = vsel %vm1571, %v1551, %v1552
      %v1591 = vsel %vm1571, %v1550, %v1551
      %v1592 = vsel %vm1571, %v1549, %v1550
      %v1593 = vsel %vm1571, %v1548, %v1549
      %v1594 = vsel %vm1571, %v1547, %v1548
      %v1595 = vsel %vm1571, %v1546, %v1547
      %v1596 = vsel %vm1571, %v1545, %v1546
      %v1597 = vsel %vm1571, %v1544, %v1545
      %v1598 = vsel %vm1571, %v1543, %v1544
      %v1599 = vsel %vm1571, %v1542, %v1543
      %v1600 = vsel %vm1571, %v1541, %v1542
      %v1601 = vsel %vm1571, %v1540, %v1541
      %v1602 = vsel %vm1571, %v1539, %v1540
      %v1603 = vsel %vm1571, %v1570, %v1539
      %v1604 = vmul.f32 %v1602, %v937
      %v1605 = vmul.f32 %v1601, %v938
      %v1606 = vmul.f32 %v1600, %v939
      %v1607 = vmul.f32 %v1599, %v940
      %v1608 = vmul.f32 %v1598, %v941
      %v1609 = vmul.f32 %v1597, %v942
      %v1610 = vmul.f32 %v1596, %v943
      %v1611 = vmul.f32 %v1595, %v944
      %v1612 = vmul.f32 %v1594, %v945
      %v1613 = vmul.f32 %v1593, %v946
      %v1614 = vmul.f32 %v1592, %v947
      %v1615 = vmul.f32 %v1591, %v948
      %v1616 = vmul.f32 %v1590, %v949
      %v1617 = vmul.f32 %v1589, %v950
      %v1618 = vmul.f32 %v1588, %v951
      %v1619 = vmul.f32 %v1587, %v952
      %v1620 = vmul.f32 %v1586, %v953
      %v1621 = vmul.f32 %v1585, %v954
      %v1622 = vmul.f32 %v1584, %v955
      %v1623 = vmul.f32 %v1583, %v956
      %v1624 = vmul.f32 %v1582, %v957
      %v1625 = vmul.f32 %v1581, %v958
      %v1626 = vmul.f32 %v1580, %v959
      %v1627 = vmul.f32 %v1579, %v960
      %v1628 = vmul.f32 %v1578, %v961
      %v1629 = vmul.f32 %v1577, %v962
      %v1630 = vmul.f32 %v1576, %v963
      %v1631 = vmul.f32 %v1575, %v964
      %v1632 = vmul.f32 %v1574, %v965
      %v1633 = vmul.f32 %v1573, %v966
      %v1634 = vmul.f32 %v1572, %v967
      %v1635 = vmul.f32 %v1603, %v968
      %1668 = vrot.lane.b32.xlu0 %v1410, 4
      %v1669 = vpop.permute.xlu0 %1668
      %1670 = vrot.lane.b32.xlu0 %v1411, 4
      %v1671 = vpop.permute.xlu0 %1670
      %1672 = vrot.lane.b32.xlu0 %v1412, 4
      %v1673 = vpop.permute.xlu0 %1672
      %1674 = vrot.lane.b32.xlu0 %v1413, 4
      %v1675 = vpop.permute.xlu0 %1674
      %1676 = vrot.lane.b32.xlu0 %v1414, 4
      %v1677 = vpop.permute.xlu0 %1676
      %1678 = vrot.lane.b32.xlu0 %v1415, 4
      %v1679 = vpop.permute.xlu0 %1678
      %1680 = vrot.lane.b32.xlu0 %v1416, 4
      %v1681 = vpop.permute.xlu0 %1680
      %1682 = vrot.lane.b32.xlu0 %v1417, 4
      %v1683 = vpop.permute.xlu0 %1682
      %1684 = vrot.lane.b32.xlu0 %v1418, 4
      %v1685 = vpop.permute.xlu0 %1684
      %1686 = vrot.lane.b32.xlu0 %v1419, 4
      %v1687 = vpop.permute.xlu0 %1686
      %1688 = vrot.lane.b32.xlu0 %v1420, 4
      %v1689 = vpop.permute.xlu0 %1688
      %1690 = vrot.lane.b32.xlu0 %v1421, 4
      %v1691 = vpop.permute.xlu0 %1690
      %1692 = vrot.lane.b32.xlu0 %v1422, 4
      %v1693 = vpop.permute.xlu0 %1692
      %1694 = vrot.lane.b32.xlu0 %v1423, 4
      %v1695 = vpop.permute.xlu0 %1694
      %1696 = vrot.lane.b32.xlu0 %v1424, 4
      %v1697 = vpop.permute.xlu0 %1696
      %1698 = vrot.lane.b32.xlu0 %v1425, 4
      %v1699 = vpop.permute.xlu0 %1698
      %1700 = vrot.lane.b32.xlu0 %v1426, 4
      %v1701 = vpop.permute.xlu0 %1700
      %1702 = vrot.lane.b32.xlu0 %v1427, 4
      %v1703 = vpop.permute.xlu0 %1702
      %1704 = vrot.lane.b32.xlu0 %v1428, 4
      %v1705 = vpop.permute.xlu0 %1704
      %1706 = vrot.lane.b32.xlu0 %v1429, 4
      %v1707 = vpop.permute.xlu0 %1706
      %1708 = vrot.lane.b32.xlu0 %v1430, 4
      %v1709 = vpop.permute.xlu0 %1708
      %1710 = vrot.lane.b32.xlu0 %v1431, 4
      %v1711 = vpop.permute.xlu0 %1710
      %1712 = vrot.lane.b32.xlu0 %v1432, 4
      %v1713 = vpop.permute.xlu0 %1712
      %1714 = vrot.lane.b32.xlu0 %v1433, 4
      %v1715 = vpop.permute.xlu0 %1714
      %1716 = vrot.lane.b32.xlu0 %v1434, 4
      %v1717 = vpop.permute.xlu0 %1716
      %1718 = vrot.lane.b32.xlu0 %v1435, 4
      %v1719 = vpop.permute.xlu0 %1718
      %1720 = vrot.lane.b32.xlu0 %v1436, 4
      %v1721 = vpop.permute.xlu0 %1720
      %1722 = vrot.lane.b32.xlu0 %v1437, 4
      %v1723 = vpop.permute.xlu0 %1722
      %1724 = vrot.lane.b32.xlu0 %v1438, 4
      %v1725 = vpop.permute.xlu0 %1724
      %1726 = vrot.lane.b32.xlu0 %v1439, 4
      %v1727 = vpop.permute.xlu0 %1726
      %1728 = vrot.lane.b32.xlu0 %v1440, 4
      %v1729 = vpop.permute.xlu0 %1728
      %1730 = vrot.lane.b32.xlu0 %v1441, 4
      %v1731 = vpop.permute.xlu0 %1730
      %1796 = vrot.lane.b32.xlu0 %v1604, 8
      %v1797 = vpop.permute.xlu0 %1796
      %1798 = vrot.lane.b32.xlu0 %v1605, 8
      %v1799 = vpop.permute.xlu0 %1798
      %1800 = vrot.lane.b32.xlu0 %v1606, 8
      %v1801 = vpop.permute.xlu0 %1800
      %1802 = vrot.lane.b32.xlu0 %v1607, 8
      %v1803 = vpop.permute.xlu0 %1802
      %1804 = vrot.lane.b32.xlu0 %v1608, 8
      %v1805 = vpop.permute.xlu0 %1804
      %1806 = vrot.lane.b32.xlu0 %v1609, 8
      %v1807 = vpop.permute.xlu0 %1806
      %1808 = vrot.lane.b32.xlu0 %v1610, 8
      %v1809 = vpop.permute.xlu0 %1808
      %1810 = vrot.lane.b32.xlu0 %v1611, 8
      %v1811 = vpop.permute.xlu0 %1810
      %1812 = vrot.lane.b32.xlu0 %v1612, 8
      %v1813 = vpop.permute.xlu0 %1812
      %1814 = vrot.lane.b32.xlu0 %v1613, 8
      %v1815 = vpop.permute.xlu0 %1814
      %1816 = vrot.lane.b32.xlu0 %v1614, 8
      %v1817 = vpop.permute.xlu0 %1816
      %1818 = vrot.lane.b32.xlu0 %v1615, 8
      %v1819 = vpop.permute.xlu0 %1818
      %1820 = vrot.lane.b32.xlu0 %v1616, 8
      %v1821 = vpop.permute.xlu0 %1820
      %1822 = vrot.lane.b32.xlu0 %v1617, 8
      %v1823 = vpop.permute.xlu0 %1822
      %1824 = vrot.lane.b32.xlu0 %v1618, 8
      %v1825 = vpop.permute.xlu0 %1824
      %1826 = vrot.lane.b32.xlu0 %v1619, 8
      %v1827 = vpop.permute.xlu0 %1826
      %1828 = vrot.lane.b32.xlu0 %v1620, 8
      %v1829 = vpop.permute.xlu0 %1828
      %1830 = vrot.lane.b32.xlu0 %v1621, 8
      %v1831 = vpop.permute.xlu0 %1830
      %1832 = vrot.lane.b32.xlu0 %v1622, 8
      %v1833 = vpop.permute.xlu0 %1832
      %1834 = vrot.lane.b32.xlu0 %v1623, 8
      %v1835 = vpop.permute.xlu0 %1834
      %1836 = vrot.lane.b32.xlu0 %v1624, 8
      %v1837 = vpop.permute.xlu0 %1836
      %1838 = vrot.lane.b32.xlu0 %v1625, 8
      %v1839 = vpop.permute.xlu0 %1838
      %1840 = vrot.lane.b32.xlu0 %v1626, 8
      %v1841 = vpop.permute.xlu0 %1840
      %1842 = vrot.lane.b32.xlu0 %v1627, 8
      %v1843 = vpop.permute.xlu0 %1842
      %1844 = vrot.lane.b32.xlu0 %v1628, 8
      %v1845 = vpop.permute.xlu0 %1844
      %1846 = vrot.lane.b32.xlu0 %v1629, 8
      %v1847 = vpop.permute.xlu0 %1846
      %1848 = vrot.lane.b32.xlu0 %v1630, 8
      %v1849 = vpop.permute.xlu0 %1848
      %1850 = vrot.lane.b32.xlu0 %v1631, 8
      %v1851 = vpop.permute.xlu0 %1850
      %1852 = vrot.lane.b32.xlu0 %v1632, 8
      %v1853 = vpop.permute.xlu0 %1852
      %1854 = vrot.lane.b32.xlu0 %v1633, 8
      %v1855 = vpop.permute.xlu0 %1854
      %1856 = vrot.lane.b32.xlu0 %v1634, 8
      %v1857 = vpop.permute.xlu0 %1856
      %1858 = vrot.lane.b32.xlu0 %v1635, 8
      %v1859 = vpop.permute.xlu0 %1858
      %vm1892 = vcmask 31744
      %v1893 = vsel %vm1892, %v1507, %v1669
      %v1894 = vsel %vm1892, %v1508, %v1671
      %v1895 = vsel %vm1892, %v1509, %v1673
      %v1896 = vsel %vm1892, %v1510, %v1675
      %v1897 = vsel %vm1892, %v1511, %v1677
      %v1898 = vsel %vm1892, %v1512, %v1679
      %v1899 = vsel %vm1892, %v1513, %v1681
      %v1900 = vsel %vm1892, %v1514, %v1683
      %v1901 = vsel %vm1892, %v1515, %v1685
      %v1902 = vsel %vm1892, %v1516, %v1687
      %v1903 = vsel %vm1892, %v1517, %v1689
      %v1904 = vsel %vm1892, %v1518, %v1691
      %v1905 = vsel %vm1892, %v1519, %v1693
      %v1906 = vsel %vm1892, %v1520, %v1695
      %v1907 = vsel %vm1892, %v1521, %v1697
      %v1908 = vsel %vm1892, %v1522, %v1699
      %v1909 = vsel %vm1892, %v1523, %v1701
      %v1910 = vsel %vm1892, %v1524, %v1703
      %v1911 = vsel %vm1892, %v1525, %v1705
      %v1912 = vsel %vm1892, %v1526, %v1707
      %v1913 = vsel %vm1892, %v1527, %v1709
      %v1914 = vsel %vm1892, %v1528, %v1711
      %v1915 = vsel %vm1892, %v1529, %v1713
      %v1916 = vsel %vm1892, %v1530, %v1715
      %v1917 = vsel %vm1892, %v1531, %v1717
      %v1918 = vsel %vm1892, %v1532, %v1719
      %v1919 = vsel %vm1892, %v1533, %v1721
      %v1920 = vsel %vm1892, %v1534, %v1723
      %v1921 = vsel %vm1892, %v1535, %v1725
      %v1922 = vsel %vm1892, %v1536, %v1727
      %v1923 = vsel %vm1892, %v1537, %v1729
      %v1924 = vsel %vm1892, %v1538, %v1731
      %vm1925 = vcmask 64512
      %v1926 = vsel %vm1925, %v1893, %v1797
      %v1927 = vsel %vm1925, %v1894, %v1799
      %v1928 = vsel %vm1925, %v1895, %v1801
      %v1929 = vsel %vm1925, %v1896, %v1803
      %v1930 = vsel %vm1925, %v1897, %v1805
      %v1931 = vsel %vm1925, %v1898, %v1807
      %v1932 = vsel %vm1925, %v1899, %v1809
      %v1933 = vsel %vm1925, %v1900, %v1811
      %v1934 = vsel %vm1925, %v1901, %v1813
      %v1935 = vsel %vm1925, %v1902, %v1815
      %v1936 = vsel %vm1925, %v1903, %v1817
      %v1937 = vsel %vm1925, %v1904, %v1819
      %v1938 = vsel %vm1925, %v1905, %v1821
      %v1939 = vsel %vm1925, %v1906, %v1823
      %v1940 = vsel %vm1925, %v1907, %v1825
      %v1941 = vsel %vm1925, %v1908, %v1827
      %v1942 = vsel %vm1925, %v1909, %v1829
      %v1943 = vsel %vm1925, %v1910, %v1831
      %v1944 = vsel %vm1925, %v1911, %v1833
      %v1945 = vsel %vm1925, %v1912, %v1835
      %v1946 = vsel %vm1925, %v1913, %v1837
      %v1947 = vsel %vm1925, %v1914, %v1839
      %v1948 = vsel %vm1925, %v1915, %v1841
      %v1949 = vsel %vm1925, %v1916, %v1843
      %v1950 = vsel %vm1925, %v1917, %v1845
      %v1951 = vsel %vm1925, %v1918, %v1847
      %v1952 = vsel %vm1925, %v1919, %v1849
      %v1953 = vsel %vm1925, %v1920, %v1851
      %v1954 = vsel %vm1925, %v1921, %v1853
      %v1955 = vsel %vm1925, %v1922, %v1855
      %v1956 = vsel %vm1925, %v1923, %v1857
      %v1957 = vsel %vm1925, %v1924, %v1859
      %1958 = vst.msk [vmem:[#allocation2 + $0x18] sm:$0xff] %vm969, %v1926
      %1959 = vst.msk [vmem:[#allocation2 + $0x20] sm:$0xff] %vm969, %v1927
      %1960 = vst.msk [vmem:[#allocation2 + $0x28] sm:$0xff] %vm969, %v1928
      %1961 = vst.msk [vmem:[#allocation2 + $0x30] sm:$0xff] %vm969, %v1929
      %1962 = vst.msk [vmem:[#allocation2 + $0x38] sm:$0xff] %vm969, %v1930
      %1963 = vst.msk [vmem:[#allocation2 + $0x40] sm:$0xff] %vm969, %v1931
      %1964 = vst.msk [vmem:[#allocation2 + $0x48] sm:$0xff] %vm969, %v1932
      %1965 = vst.msk [vmem:[#allocation2 + $0x50] sm:$0xff] %vm969, %v1933
      %1966 = vst.msk [vmem:[#allocation2 + $0x58] sm:$0xff] %vm969, %v1934
      %1967 = vst.msk [vmem:[#allocation2 + $0x60] sm:$0xff] %vm969, %v1935
      %1968 = vst.msk [vmem:[#allocation2 + $0x68] sm:$0xff] %vm969, %v1936
      %1969 = vst.msk [vmem:[#allocation2 + $0x70] sm:$0xff] %vm969, %v1937
      %1970 = vst.msk [vmem:[#allocation2 + $0x78] sm:$0xff] %vm969, %v1938
      %1971 = vst.msk [vmem:[#allocation2 + $0x80] sm:$0xff] %vm969, %v1939
      %1972 = vst.msk [vmem:[#allocation2 + $0x88] sm:$0xff] %vm969, %v1940
      %1973 = vst.msk [vmem:[#allocation2 + $0x90] sm:$0xff] %vm969, %v1941
      %1974 = vst.msk [vmem:[#allocation2 + $0x98] sm:$0xff] %vm969, %v1942
      %1975 = vst.msk [vmem:[#allocation2 + $0xa0] sm:$0xff] %vm969, %v1943
      %1976 = vst.msk [vmem:[#allocation2 + $0xa8] sm:$0xff] %vm969, %v1944
      %1977 = vst.msk [vmem:[#allocation2 + $0xb0] sm:$0xff] %vm969, %v1945
      %1978 = vst.msk [vmem:[#allocation2 + $0xb8] sm:$0xff] %vm969, %v1946
      %1979 = vst.msk [vmem:[#allocation2 + $0xc0] sm:$0xff] %vm969, %v1947
      %1980 = vst.msk [vmem:[#allocation2 + $0xc8] sm:$0xff] %vm969, %v1948
      %1981 = vst.msk [vmem:[#allocation2 + $0xd0] sm:$0xff] %vm969, %v1949
      %1982 = vst.msk [vmem:[#allocation2 + $0xd8] sm:$0xff] %vm969, %v1950
      %1983 = vst.msk [vmem:[#allocation2 + $0xe0] sm:$0xff] %vm969, %v1951
      %1984 = vst.msk [vmem:[#allocation2 + $0xe8] sm:$0xff] %vm969, %v1952
      %1985 = vst.msk [vmem:[#allocation2 + $0xf0] sm:$0xff] %vm969, %v1953
      %1986 = vst.msk [vmem:[#allocation2 + $0xf8] sm:$0xff] %vm969, %v1954
      %1987 = vst.msk [vmem:[#allocation2 + $0x100] sm:$0xff] %vm969, %v1955
      %1988 = vst.msk [vmem:[#allocation2 + $0x108] sm:$0xff] %vm969, %v1956
      %1989 = vst.msk [vmem:[#allocation2 + $0x110] sm:$0xff] %vm969, %v1957
      %v1990 = vld [vmem:[#allocation2 + $0x8] sm:$0xff]
      %v1991 = vld [vmem:[#allocation2 + $0x10] sm:$0xff]
      %v1992 = vld [vmem:[#allocation2 + $0x18] sm:$0xff]
      %v1993 = vld [vmem:[#allocation2 + $0x20] sm:$0xff]
      %v1994 = vld [vmem:[#allocation2 + $0x28] sm:$0xff]
      %v1995 = vld [vmem:[#allocation2 + $0x30] sm:$0xff]
      %v1996 = vld [vmem:[#allocation2 + $0x38] sm:$0xff]
      %v1997 = vld [vmem:[#allocation2 + $0x40] sm:$0xff]
      %v1998 = vld [vmem:[#allocation2 + $0x48] sm:$0xff]
      %v1999 = vld [vmem:[#allocation2 + $0x50] sm:$0xff]
      %v2000 = vld [vmem:[#allocation2 + $0x58] sm:$0xff]
      %v2001 = vld [vmem:[#allocation2 + $0x60] sm:$0xff]
      %v2002 = vld [vmem:[#allocation2 + $0x68] sm:$0xff]
      %v2003 = vld [vmem:[#allocation2 + $0x70] sm:$0xff]
      %v2004 = vld [vmem:[#allocation2 + $0x78] sm:$0xff]
      %v2005 = vld [vmem:[#allocation2 + $0x80] sm:$0xff]
      %v2006 = vld [vmem:[#allocation2 + $0x88] sm:$0xff]
      %v2007 = vld [vmem:[#allocation2 + $0x90] sm:$0xff]
      %v2008 = vld [vmem:[#allocation2 + $0x98] sm:$0xff]
      %v2009 = vld [vmem:[#allocation2 + $0xa0] sm:$0xff]
      %v2010 = vld [vmem:[#allocation2 + $0xa8] sm:$0xff]
      %v2011 = vld [vmem:[#allocation2 + $0xb0] sm:$0xff]
      %v2012 = vld [vmem:[#allocation2 + $0xb8] sm:$0xff]
      %v2013 = vld [vmem:[#allocation2 + $0xc0] sm:$0xff]
      %v2014 = vld [vmem:[#allocation2 + $0xc8] sm:$0xff]
      %v2015 = vld [vmem:[#allocation2 + $0xd0] sm:$0xff]
      %v2016 = vld [vmem:[#allocation2 + $0xd8] sm:$0xff]
      %v2017 = vld [vmem:[#allocation2 + $0xe0] sm:$0xff]
      %v2018 = vld [vmem:[#allocation2 + $0xe8] sm:$0xff]
      %v2019 = vld [vmem:[#allocation2 + $0xf0] sm:$0xff]
      %v2020 = vld [vmem:[#allocation2 + $0xf8] sm:$0xff]
      %v2021 = vld [vmem:[#allocation2 + $0x100] sm:$0xff]
      %v2022 = vld [vmem:[%s2] sm:$0xff]
      %v2023 = vld [vmem:[%s2 + $0x8] sm:$0xf]
      %v2024 = vld [vmem:[#allocation2 + $0x108] sm:$0xff]
      %v2025 = vld [vmem:[#allocation2 + $0x110] sm:$0xff]
      %s2026 = scalar_lea.vmem %s2, 16
      %v2027 = vld [vmem:[%s2026] sm:$0xff]
      %v2028 = vld [vmem:[%s2026 + $0x8] sm:$0xf]
      %v2030 = vsel %vm969, %v1992, 0
      %v2033 = vsel %vm969, %v1993, 0
      %v2036 = vsel %vm969, %v1994, 0
      %v2039 = vsel %vm969, %v1995, 0
      %v2042 = vsel %vm969, %v1996, 0
      %v2045 = vsel %vm969, %v1997, 0
      %v2048 = vsel %vm969, %v1998, 0
      %v2051 = vsel %vm969, %v1999, 0
      %v2054 = vsel %vm969, %v2000, 0
      %v2057 = vsel %vm969, %v2001, 0
      %v2060 = vsel %vm969, %v2002, 0
      %v2063 = vsel %vm969, %v2003, 0
      %v2066 = vsel %vm969, %v2004, 0
      %v2069 = vsel %vm969, %v2005, 0
      %v2072 = vsel %vm969, %v2006, 0
      %v2075 = vsel %vm969, %v2007, 0
      %v2078 = vsel %vm969, %v2008, 0
      %v2081 = vsel %vm969, %v2009, 0
      %v2084 = vsel %vm969, %v2010, 0
      %v2087 = vsel %vm969, %v2011, 0
      %v2090 = vsel %vm969, %v2012, 0
      %v2093 = vsel %vm969, %v2013, 0
      %v2096 = vsel %vm969, %v2014, 0
      %v2099 = vsel %vm969, %v2015, 0
      %v2102 = vsel %vm969, %v2016, 0
      %v2105 = vsel %vm969, %v2017, 0
      %v2108 = vsel %vm969, %v2018, 0
      %v2111 = vsel %vm969, %v2019, 0
      %v2114 = vsel %vm969, %v2020, 0
      %v2117 = vsel %vm969, %v2021, 0
      %v2120 = vsel %vm969, %v2024, 0
      %v2123 = vsel %vm969, %v2025, 0
      %vm2125 = vcmask 1043456
      %v2127 = vsel %vm2125, %v2028, 0
      %2129 = vmatprep.subr.mxu0 0.0
      %2130 = vmatpush1.msra.mxu0 0.0
      %2131 = vmatprep.subr.mxu0 0.0
      %2132 = vmatpush1.msra.mxu0 0.0
      %2133 = vmatprep.subr.mxu0 0.0
      %2134 = vmatpush1.msra.mxu0 0.0
      %2135 = vmatprep.subr.mxu0 0.0
      %2136 = vmatpush1.msra.mxu0 0.0
      %2137 = vmatprep.subr.mxu0 0.0
      %2138 = vmatpush1.msra.mxu0 0.0
      %2139 = vmatprep.subr.mxu0 0.0
      %2140 = vmatpush1.msra.mxu0 0.0
      %2141 = vmatprep.subr.mxu0 0.0
      %2142 = vmatpush1.msra.mxu0 0.0
      %2143 = vmatprep.subr.mxu0 0.0
      %2144 = vmatpush1.msra.mxu0 0.0
      %2145 = vmatprep.subr.mxu0 0.0
      %2146 = vmatpush1.msra.mxu0 0.0
      %2147 = vmatprep.subr.mxu0 0.0
      %2148 = vmatpush1.msra.mxu0 0.0
      %2149 = vmatprep.subr.mxu0 0.0
      %2150 = vmatpush1.msra.mxu0 0.0
      %2151 = vmatprep.subr.mxu0 0.0
      %2152 = vmatpush1.msra.mxu0 0.0
      %2153 = vmatprep.subr.mxu0 0.0
      %2154 = vmatpush1.msra.mxu0 0.0
      %2155 = vmatprep.subr.mxu0 0.0
      %2156 = vmatpush1.msra.mxu0 0.0
      %2157 = vmatprep.subr.mxu0 0.0
      %2158 = vmatpush1.msra.mxu0 %v2127
      %2159 = vmatprep.subr.mxu0 0.0
      %2160 = vmatpush1.msra.mxu0 %v2027
      %2161 = vmatprep.subr.mxu0 0.0
      %2162 = vmatpush2.msra.mxu0 0.0
      %2163 = vmatprep.subr.mxu0 0.0
      %2164 = vmatpush2.msra.mxu0 0.0
      %2165 = vmatprep.subr.mxu0 0.0
      %2166 = vmatpush2.msra.mxu0 0.0
      %2167 = vmatprep.subr.mxu0 0.0
      %2168 = vmatpush2.msra.mxu0 0.0
      %2169 = vmatprep.subr.mxu0 0.0
      %2170 = vmatpush2.msra.mxu0 0.0
      %2171 = vmatprep.subr.mxu0 0.0
      %2172 = vmatpush2.msra.mxu0 0.0
      %2173 = vmatprep.subr.mxu0 0.0
      %2174 = vmatpush2.msra.mxu0 0.0
      %2175 = vmatprep.subr.mxu0 0.0
      %2176 = vmatpush2.msra.mxu0 0.0
      %2177 = vmatprep.subr.mxu0 0.0
      %2178 = vmatpush2.msra.mxu0 0.0
      %2179 = vmatprep.subr.mxu0 0.0
      %2180 = vmatpush2.msra.mxu0 0.0
      %2181 = vmatprep.subr.mxu0 0.0
      %2182 = vmatpush2.msra.mxu0 0.0
      %2183 = vmatprep.subr.mxu0 0.0
      %2184 = vmatpush2.msra.mxu0 0.0
      %2185 = vmatprep.subr.mxu0 0.0
      %2186 = vmatpush2.msra.mxu0 0.0
      %2187 = vmatprep.subr.mxu0 0.0
      %2188 = vmatpush2.msra.mxu0 0.0
      %2189 = vmatprep.subr.mxu0 0.0
      %2190 = vmatpush2.msra.mxu0 0.0
      %2191 = vmatprep.subr.mxu0 0.0
      %2192 = vmatpush2.msra.mxu0 0.0
      %2193 = vmatprep.mubr.f32.mxu0 0.0
      %2194 = vmatmul.mubr.f32.gmra.mxu0 %v2030
      %v2195 = vpop.f32.mrf.mxu0
      %v2196 = vadd.f32 0.0, %v2195
      %v2197 = vpop.f32.mrf.mxu0
      %2198 = vmatprep.mubr.f32.mxu0 0.0
      %2199 = vmatmul.mubr.f32.gmra.mxu0 %v2033
      %v2200 = vpop.f32.mrf.mxu0
      %v2201 = vadd.f32 0.0, %v2200
      %v2202 = vpop.f32.mrf.mxu0
      %2203 = vmatprep.mubr.f32.mxu0 0.0
      %2204 = vmatmul.mubr.f32.gmra.mxu0 %v2036
      %v2205 = vpop.f32.mrf.mxu0
      %v2206 = vadd.f32 0.0, %v2205
      %v2207 = vpop.f32.mrf.mxu0
      %2208 = vmatprep.mubr.f32.mxu0 0.0
      %2209 = vmatmul.mubr.f32.gmra.mxu0 %v2039
      %v2210 = vpop.f32.mrf.mxu0
      %v2211 = vadd.f32 0.0, %v2210
      %v2212 = vpop.f32.mrf.mxu0
      %2213 = vmatprep.mubr.f32.mxu0 0.0
      %2214 = vmatmul.mubr.f32.gmra.mxu0 %v2042
      %v2215 = vpop.f32.mrf.mxu0
      %v2216 = vadd.f32 0.0, %v2215
      %v2217 = vpop.f32.mrf.mxu0
      %2218 = vmatprep.mubr.f32.mxu0 0.0
      %2219 = vmatmul.mubr.f32.gmra.mxu0 %v2045
      %v2220 = vpop.f32.mrf.mxu0
      %v2221 = vadd.f32 0.0, %v2220
      %v2222 = vpop.f32.mrf.mxu0
      %2223 = vmatprep.mubr.f32.mxu0 0.0
      %2224 = vmatmul.mubr.f32.gmra.mxu0 %v2048
      %v2225 = vpop.f32.mrf.mxu0
      %v2226 = vadd.f32 0.0, %v2225
      %v2227 = vpop.f32.mrf.mxu0
      %2228 = vmatprep.mubr.f32.mxu0 0.0
      %2229 = vmatmul.mubr.f32.gmra.mxu0 %v2051
      %v2230 = vpop.f32.mrf.mxu0
      %v2231 = vadd.f32 0.0, %v2230
      %v2232 = vpop.f32.mrf.mxu0
      %2233 = vmatprep.mubr.f32.mxu0 0.0
      %2234 = vmatmul.mubr.f32.gmra.mxu0 %v2054
      %v2235 = vpop.f32.mrf.mxu0
      %v2236 = vadd.f32 0.0, %v2235
      %v2237 = vpop.f32.mrf.mxu0
      %2238 = vmatprep.mubr.f32.mxu0 0.0
      %2239 = vmatmul.mubr.f32.gmra.mxu0 %v2057
      %v2240 = vpop.f32.mrf.mxu0
      %v2241 = vadd.f32 0.0, %v2240
      %v2242 = vpop.f32.mrf.mxu0
      %2243 = vmatprep.mubr.f32.mxu0 0.0
      %2244 = vmatmul.mubr.f32.gmra.mxu0 %v2060
      %v2245 = vpop.f32.mrf.mxu0
      %v2246 = vadd.f32 0.0, %v2245
      %v2247 = vpop.f32.mrf.mxu0
      %2248 = vmatprep.mubr.f32.mxu0 0.0
      %2249 = vmatmul.mubr.f32.gmra.mxu0 %v2063
      %v2250 = vpop.f32.mrf.mxu0
      %v2251 = vadd.f32 0.0, %v2250
      %v2252 = vpop.f32.mrf.mxu0
      %2253 = vmatprep.mubr.f32.mxu0 0.0
      %2254 = vmatmul.mubr.f32.gmra.mxu0 %v2066
      %v2255 = vpop.f32.mrf.mxu0
      %v2256 = vadd.f32 0.0, %v2255
      %v2257 = vpop.f32.mrf.mxu0
      %2258 = vmatprep.mubr.f32.mxu0 0.0
      %2259 = vmatmul.mubr.f32.gmra.mxu0 %v2069
      %v2260 = vpop.f32.mrf.mxu0
      %v2261 = vadd.f32 0.0, %v2260
      %v2262 = vpop.f32.mrf.mxu0
      %2263 = vmatprep.mubr.f32.mxu0 0.0
      %2264 = vmatmul.mubr.f32.gmra.mxu0 %v2072
      %v2265 = vpop.f32.mrf.mxu0
      %v2266 = vadd.f32 0.0, %v2265
      %v2267 = vpop.f32.mrf.mxu0
      %2268 = vmatprep.mubr.f32.mxu0 0.0
      %2269 = vmatmul.mubr.f32.gmra.mxu0 %v2075
      %v2270 = vpop.f32.mrf.mxu0
      %v2271 = vadd.f32 0.0, %v2270
      %v2272 = vpop.f32.mrf.mxu0
      %2273 = vmatprep.mubr.f32.mxu0 0.0
      %2274 = vmatmul.mubr.f32.gmra.mxu0 %v2078
      %v2275 = vpop.f32.mrf.mxu0
      %v2276 = vadd.f32 0.0, %v2275
      %v2277 = vpop.f32.mrf.mxu0
      %2278 = vmatprep.mubr.f32.mxu0 0.0
      %2279 = vmatmul.mubr.f32.gmra.mxu0 %v2081
      %v2280 = vpop.f32.mrf.mxu0
      %v2281 = vadd.f32 0.0, %v2280
      %v2282 = vpop.f32.mrf.mxu0
      %2283 = vmatprep.mubr.f32.mxu0 0.0
      %2284 = vmatmul.mubr.f32.gmra.mxu0 %v2084
      %v2285 = vpop.f32.mrf.mxu0
      %v2286 = vadd.f32 0.0, %v2285
      %v2287 = vpop.f32.mrf.mxu0
      %2288 = vmatprep.mubr.f32.mxu0 0.0
      %2289 = vmatmul.mubr.f32.gmra.mxu0 %v2087
      %v2290 = vpop.f32.mrf.mxu0
      %v2291 = vadd.f32 0.0, %v2290
      %v2292 = vpop.f32.mrf.mxu0
      %2293 = vmatprep.mubr.f32.mxu0 0.0
      %2294 = vmatmul.mubr.f32.gmra.mxu0 %v2090
      %v2295 = vpop.f32.mrf.mxu0
      %v2296 = vadd.f32 0.0, %v2295
      %v2297 = vpop.f32.mrf.mxu0
      %2298 = vmatprep.mubr.f32.mxu0 0.0
      %2299 = vmatmul.mubr.f32.gmra.mxu0 %v2093
      %v2300 = vpop.f32.mrf.mxu0
      %v2301 = vadd.f32 0.0, %v2300
      %v2302 = vpop.f32.mrf.mxu0
      %2303 = vmatprep.mubr.f32.mxu0 0.0
      %2304 = vmatmul.mubr.f32.gmra.mxu0 %v2096
      %v2305 = vpop.f32.mrf.mxu0
      %v2306 = vadd.f32 0.0, %v2305
      %v2307 = vpop.f32.mrf.mxu0
      %2308 = vmatprep.mubr.f32.mxu0 0.0
      %2309 = vmatmul.mubr.f32.gmra.mxu0 %v2099
      %v2310 = vpop.f32.mrf.mxu0
      %v2311 = vadd.f32 0.0, %v2310
      %v2312 = vpop.f32.mrf.mxu0
      %2313 = vmatprep.mubr.f32.mxu0 0.0
      %2314 = vmatmul.mubr.f32.gmra.mxu0 %v2102
      %v2315 = vpop.f32.mrf.mxu0
      %v2316 = vadd.f32 0.0, %v2315
      %v2317 = vpop.f32.mrf.mxu0
      %2318 = vmatprep.mubr.f32.mxu0 0.0
      %2319 = vmatmul.mubr.f32.gmra.mxu0 %v2105
      %v2320 = vpop.f32.mrf.mxu0
      %v2321 = vadd.f32 0.0, %v2320
      %v2322 = vpop.f32.mrf.mxu0
      %2323 = vmatprep.mubr.f32.mxu0 0.0
      %2324 = vmatmul.mubr.f32.gmra.mxu0 %v2108
      %v2325 = vpop.f32.mrf.mxu0
      %v2326 = vadd.f32 0.0, %v2325
      %v2327 = vpop.f32.mrf.mxu0
      %2328 = vmatprep.mubr.f32.mxu0 0.0
      %2329 = vmatmul.mubr.f32.gmra.mxu0 %v2111
      %v2330 = vpop.f32.mrf.mxu0
      %v2331 = vadd.f32 0.0, %v2330
      %v2332 = vpop.f32.mrf.mxu0
      %2333 = vmatprep.mubr.f32.mxu0 0.0
      %2334 = vmatmul.mubr.f32.gmra.mxu0 %v2114
      %v2335 = vpop.f32.mrf.mxu0
      %v2336 = vadd.f32 0.0, %v2335
      %v2337 = vpop.f32.mrf.mxu0
      %2338 = vmatprep.mubr.f32.mxu0 0.0
      %2339 = vmatmul.mubr.f32.gmra.mxu0 %v2117
      %v2340 = vpop.f32.mrf.mxu0
      %v2341 = vadd.f32 0.0, %v2340
      %v2342 = vpop.f32.mrf.mxu0
      %2343 = vmatprep.mubr.f32.mxu0 0.0
      %2344 = vmatmul.mubr.f32.gmra.mxu0 %v2120
      %v2345 = vpop.f32.mrf.mxu0
      %v2346 = vadd.f32 0.0, %v2345
      %v2347 = vpop.f32.mrf.mxu0
      %2348 = vmatprep.mubr.f32.mxu0 0.0
      %2349 = vmatmul.mubr.f32.gmra.mxu0 %v2123
      %v2350 = vpop.f32.mrf.mxu0
      %v2351 = vadd.f32 0.0, %v2350
      %v2352 = vpop.f32.mrf.mxu0
      %2353 = vdwg.mxu0
      %v2355 = vsel %vm969, %v1990, 0
      %v2358 = vsel %vm969, %v1991, 0
      %v2361 = vsel %vm2125, %v2023, 0
      %2363 = vmatprep.subr.mxu0 0.0
      %2364 = vmatpush1.msra.mxu0 0.0
      %2365 = vmatprep.subr.mxu0 0.0
      %2366 = vmatpush1.msra.mxu0 0.0
      %2367 = vmatprep.subr.mxu0 0.0
      %2368 = vmatpush1.msra.mxu0 0.0
      %2369 = vmatprep.subr.mxu0 0.0
      %2370 = vmatpush1.msra.mxu0 0.0
      %2371 = vmatprep.subr.mxu0 0.0
      %2372 = vmatpush1.msra.mxu0 0.0
      %2373 = vmatprep.subr.mxu0 0.0
      %2374 = vmatpush1.msra.mxu0 0.0
      %2375 = vmatprep.subr.mxu0 0.0
      %2376 = vmatpush1.msra.mxu0 0.0
      %2377 = vmatprep.subr.mxu0 0.0
      %2378 = vmatpush1.msra.mxu0 0.0
      %2379 = vmatprep.subr.mxu0 0.0
      %2380 = vmatpush1.msra.mxu0 0.0
      %2381 = vmatprep.subr.mxu0 0.0
      %2382 = vmatpush1.msra.mxu0 0.0
      %2383 = vmatprep.subr.mxu0 0.0
      %2384 = vmatpush1.msra.mxu0 0.0
      %2385 = vmatprep.subr.mxu0 0.0
      %2386 = vmatpush1.msra.mxu0 0.0
      %2387 = vmatprep.subr.mxu0 0.0
      %2388 = vmatpush1.msra.mxu0 0.0
      %2389 = vmatprep.subr.mxu0 0.0
      %2390 = vmatpush1.msra.mxu0 0.0
      %2391 = vmatprep.subr.mxu0 0.0
      %2392 = vmatpush1.msra.mxu0 %v2361
      %2393 = vmatprep.subr.mxu0 0.0
      %2394 = vmatpush1.msra.mxu0 %v2022
      %2395 = vmatprep.subr.mxu0 0.0
      %2396 = vmatpush2.msra.mxu0 0.0
      %2397 = vmatprep.subr.mxu0 0.0
      %2398 = vmatpush2.msra.mxu0 0.0
      %2399 = vmatprep.subr.mxu0 0.0
      %2400 = vmatpush2.msra.mxu0 0.0
      %2401 = vmatprep.subr.mxu0 0.0
      %2402 = vmatpush2.msra.mxu0 0.0
      %2403 = vmatprep.subr.mxu0 0.0
      %2404 = vmatpush2.msra.mxu0 0.0
      %2405 = vmatprep.subr.mxu0 0.0
      %2406 = vmatpush2.msra.mxu0 0.0
      %2407 = vmatprep.subr.mxu0 0.0
      %2408 = vmatpush2.msra.mxu0 0.0
      %2409 = vmatprep.subr.mxu0 0.0
      %2410 = vmatpush2.msra.mxu0 0.0
      %2411 = vmatprep.subr.mxu0 0.0
      %2412 = vmatpush2.msra.mxu0 0.0
      %2413 = vmatprep.subr.mxu0 0.0
      %2414 = vmatpush2.msra.mxu0 0.0
      %2415 = vmatprep.subr.mxu0 0.0
      %2416 = vmatpush2.msra.mxu0 0.0
      %2417 = vmatprep.subr.mxu0 0.0
      %2418 = vmatpush2.msra.mxu0 0.0
      %2419 = vmatprep.subr.mxu0 0.0
      %2420 = vmatpush2.msra.mxu0 0.0
      %2421 = vmatprep.subr.mxu0 0.0
      %2422 = vmatpush2.msra.mxu0 0.0
      %2423 = vmatprep.subr.mxu0 0.0
      %2424 = vmatpush2.msra.mxu0 0.0
      %2425 = vmatprep.subr.mxu0 0.0
      %2426 = vmatpush2.msra.mxu0 0.0
      %2427 = vmatprep.mubr.f32.mxu0 0.0
      %2428 = vmatmul.mubr.f32.gmra.mxu0 %v2355
      %v2429 = vpop.f32.mrf.mxu0
      %v2430 = vadd.f32 %v2196, %v2429
      %v2431 = vpop.f32.mrf.mxu0
      %2432 = vmatprep.mubr.f32.mxu0 0.0
      %2433 = vmatmul.mubr.f32.gmra.mxu0 %v2358
      %v2434 = vpop.f32.mrf.mxu0
      %v2435 = vadd.f32 %v2201, %v2434
      %v2436 = vpop.f32.mrf.mxu0
      %2437 = vmatprep.mubr.f32.mxu0 0.0
      %2438 = vmatmul.mubr.f32.gmra.mxu0 %v2030
      %v2439 = vpop.f32.mrf.mxu0
      %v2440 = vadd.f32 %v2206, %v2439
      %v2441 = vpop.f32.mrf.mxu0
      %2442 = vmatprep.mubr.f32.mxu0 0.0
      %2443 = vmatmul.mubr.f32.gmra.mxu0 %v2033
      %v2444 = vpop.f32.mrf.mxu0
      %v2445 = vadd.f32 %v2211, %v2444
      %v2446 = vpop.f32.mrf.mxu0
      %2447 = vmatprep.mubr.f32.mxu0 0.0
      %2448 = vmatmul.mubr.f32.gmra.mxu0 %v2036
      %v2449 = vpop.f32.mrf.mxu0
      %v2450 = vadd.f32 %v2216, %v2449
      %v2451 = vpop.f32.mrf.mxu0
      %2452 = vmatprep.mubr.f32.mxu0 0.0
      %2453 = vmatmul.mubr.f32.gmra.mxu0 %v2039
      %v2454 = vpop.f32.mrf.mxu0
      %v2455 = vadd.f32 %v2221, %v2454
      %v2456 = vpop.f32.mrf.mxu0
      %2457 = vmatprep.mubr.f32.mxu0 0.0
      %2458 = vmatmul.mubr.f32.gmra.mxu0 %v2042
      %v2459 = vpop.f32.mrf.mxu0
      %v2460 = vadd.f32 %v2226, %v2459
      %v2461 = vpop.f32.mrf.mxu0
      %2462 = vmatprep.mubr.f32.mxu0 0.0
      %2463 = vmatmul.mubr.f32.gmra.mxu0 %v2045
      %v2464 = vpop.f32.mrf.mxu0
      %v2465 = vadd.f32 %v2231, %v2464
      %v2466 = vpop.f32.mrf.mxu0
      %2467 = vmatprep.mubr.f32.mxu0 0.0
      %2468 = vmatmul.mubr.f32.gmra.mxu0 %v2048
      %v2469 = vpop.f32.mrf.mxu0
      %v2470 = vadd.f32 %v2236, %v2469
      %v2471 = vpop.f32.mrf.mxu0
      %2472 = vmatprep.mubr.f32.mxu0 0.0
      %2473 = vmatmul.mubr.f32.gmra.mxu0 %v2051
      %v2474 = vpop.f32.mrf.mxu0
      %v2475 = vadd.f32 %v2241, %v2474
      %v2476 = vpop.f32.mrf.mxu0
      %2477 = vmatprep.mubr.f32.mxu0 0.0
      %2478 = vmatmul.mubr.f32.gmra.mxu0 %v2054
      %v2479 = vpop.f32.mrf.mxu0
      %v2480 = vadd.f32 %v2246, %v2479
      %v2481 = vpop.f32.mrf.mxu0
      %2482 = vmatprep.mubr.f32.mxu0 0.0
      %2483 = vmatmul.mubr.f32.gmra.mxu0 %v2057
      %v2484 = vpop.f32.mrf.mxu0
      %v2485 = vadd.f32 %v2251, %v2484
      %v2486 = vpop.f32.mrf.mxu0
      %2487 = vmatprep.mubr.f32.mxu0 0.0
      %2488 = vmatmul.mubr.f32.gmra.mxu0 %v2060
      %v2489 = vpop.f32.mrf.mxu0
      %v2490 = vadd.f32 %v2256, %v2489
      %v2491 = vpop.f32.mrf.mxu0
      %2492 = vmatprep.mubr.f32.mxu0 0.0
      %2493 = vmatmul.mubr.f32.gmra.mxu0 %v2063
      %v2494 = vpop.f32.mrf.mxu0
      %v2495 = vadd.f32 %v2261, %v2494
      %v2496 = vpop.f32.mrf.mxu0
      %2497 = vmatprep.mubr.f32.mxu0 0.0
      %2498 = vmatmul.mubr.f32.gmra.mxu0 %v2066
      %v2499 = vpop.f32.mrf.mxu0
      %v2500 = vadd.f32 %v2266, %v2499
      %v2501 = vpop.f32.mrf.mxu0
      %2502 = vmatprep.mubr.f32.mxu0 0.0
      %2503 = vmatmul.mubr.f32.gmra.mxu0 %v2069
      %v2504 = vpop.f32.mrf.mxu0
      %v2505 = vadd.f32 %v2271, %v2504
      %v2506 = vpop.f32.mrf.mxu0
      %2507 = vmatprep.mubr.f32.mxu0 0.0
      %2508 = vmatmul.mubr.f32.gmra.mxu0 %v2072
      %v2509 = vpop.f32.mrf.mxu0
      %v2510 = vadd.f32 %v2276, %v2509
      %v2511 = vpop.f32.mrf.mxu0
      %2512 = vmatprep.mubr.f32.mxu0 0.0
      %2513 = vmatmul.mubr.f32.gmra.mxu0 %v2075
      %v2514 = vpop.f32.mrf.mxu0
      %v2515 = vadd.f32 %v2281, %v2514
      %v2516 = vpop.f32.mrf.mxu0
      %2517 = vmatprep.mubr.f32.mxu0 0.0
      %2518 = vmatmul.mubr.f32.gmra.mxu0 %v2078
      %v2519 = vpop.f32.mrf.mxu0
      %v2520 = vadd.f32 %v2286, %v2519
      %v2521 = vpop.f32.mrf.mxu0
      %2522 = vmatprep.mubr.f32.mxu0 0.0
      %2523 = vmatmul.mubr.f32.gmra.mxu0 %v2081
      %v2524 = vpop.f32.mrf.mxu0
      %v2525 = vadd.f32 %v2291, %v2524
      %v2526 = vpop.f32.mrf.mxu0
      %2527 = vmatprep.mubr.f32.mxu0 0.0
      %2528 = vmatmul.mubr.f32.gmra.mxu0 %v2084
      %v2529 = vpop.f32.mrf.mxu0
      %v2530 = vadd.f32 %v2296, %v2529
      %v2531 = vpop.f32.mrf.mxu0
      %2532 = vmatprep.mubr.f32.mxu0 0.0
      %2533 = vmatmul.mubr.f32.gmra.mxu0 %v2087
      %v2534 = vpop.f32.mrf.mxu0
      %v2535 = vadd.f32 %v2301, %v2534
      %v2536 = vpop.f32.mrf.mxu0
      %2537 = vmatprep.mubr.f32.mxu0 0.0
      %2538 = vmatmul.mubr.f32.gmra.mxu0 %v2090
      %v2539 = vpop.f32.mrf.mxu0
      %v2540 = vadd.f32 %v2306, %v2539
      %v2541 = vpop.f32.mrf.mxu0
      %2542 = vmatprep.mubr.f32.mxu0 0.0
      %2543 = vmatmul.mubr.f32.gmra.mxu0 %v2093
      %v2544 = vpop.f32.mrf.mxu0
      %v2545 = vadd.f32 %v2311, %v2544
      %v2546 = vpop.f32.mrf.mxu0
      %2547 = vmatprep.mubr.f32.mxu0 0.0
      %2548 = vmatmul.mubr.f32.gmra.mxu0 %v2096
      %v2549 = vpop.f32.mrf.mxu0
      %v2550 = vadd.f32 %v2316, %v2549
      %v2551 = vpop.f32.mrf.mxu0
      %2552 = vmatprep.mubr.f32.mxu0 0.0
      %2553 = vmatmul.mubr.f32.gmra.mxu0 %v2099
      %v2554 = vpop.f32.mrf.mxu0
      %v2555 = vadd.f32 %v2321, %v2554
      %v2556 = vpop.f32.mrf.mxu0
      %2557 = vmatprep.mubr.f32.mxu0 0.0
      %2558 = vmatmul.mubr.f32.gmra.mxu0 %v2102
      %v2559 = vpop.f32.mrf.mxu0
      %v2560 = vadd.f32 %v2326, %v2559
      %v2561 = vpop.f32.mrf.mxu0
      %2562 = vmatprep.mubr.f32.mxu0 0.0
      %2563 = vmatmul.mubr.f32.gmra.mxu0 %v2105
      %v2564 = vpop.f32.mrf.mxu0
      %v2565 = vadd.f32 %v2331, %v2564
      %v2566 = vpop.f32.mrf.mxu0
      %2567 = vmatprep.mubr.f32.mxu0 0.0
      %2568 = vmatmul.mubr.f32.gmra.mxu0 %v2108
      %v2569 = vpop.f32.mrf.mxu0
      %v2570 = vadd.f32 %v2336, %v2569
      %v2571 = vpop.f32.mrf.mxu0
      %2572 = vmatprep.mubr.f32.mxu0 0.0
      %2573 = vmatmul.mubr.f32.gmra.mxu0 %v2111
      %v2574 = vpop.f32.mrf.mxu0
      %v2575 = vadd.f32 %v2341, %v2574
      %v2576 = vpop.f32.mrf.mxu0
      %2577 = vmatprep.mubr.f32.mxu0 0.0
      %2578 = vmatmul.mubr.f32.gmra.mxu0 %v2114
      %v2579 = vpop.f32.mrf.mxu0
      %v2580 = vadd.f32 %v2346, %v2579
      %v2581 = vpop.f32.mrf.mxu0
      %2582 = vmatprep.mubr.f32.mxu0 0.0
      %2583 = vmatmul.mubr.f32.gmra.mxu0 %v2117
      %v2584 = vpop.f32.mrf.mxu0
      %v2585 = vadd.f32 %v2351, %v2584
      %v2586 = vpop.f32.mrf.mxu0
      %2587 = vdwg.mxu0
      %v2588 = vld [vmem:[#allocation2 + $0x28] sm:$0xff]
      %v2589 = vld [vmem:[#allocation2 + $0x30] sm:$0xff]
      %v2590 = vld [vmem:[#allocation2 + $0x38] sm:$0xff]
      %v2591 = vld [vmem:[#allocation2 + $0x40] sm:$0xff]
      %v2592 = vld [vmem:[#allocation2 + $0x48] sm:$0xff]
      %v2593 = vld [vmem:[#allocation2 + $0x50] sm:$0xff]
      %v2594 = vld [vmem:[#allocation2 + $0x58] sm:$0xff]
      %v2595 = vld [vmem:[#allocation2 + $0x60] sm:$0xff]
      %v2596 = vld [vmem:[#allocation2 + $0x68] sm:$0xff]
      %v2597 = vld [vmem:[#allocation2 + $0x70] sm:$0xff]
      %v2598 = vld [vmem:[#allocation2 + $0x78] sm:$0xff]
      %v2599 = vld [vmem:[#allocation2 + $0x80] sm:$0xff]
      %v2600 = vld [vmem:[#allocation2 + $0x88] sm:$0xff]
      %v2601 = vld [vmem:[#allocation2 + $0x90] sm:$0xff]
      %v2602 = vld [vmem:[#allocation2 + $0x98] sm:$0xff]
      %v2603 = vld [vmem:[#allocation2 + $0xa0] sm:$0xff]
      %v2604 = vld [vmem:[#allocation2 + $0xa8] sm:$0xff]
      %v2605 = vld [vmem:[#allocation2 + $0xb0] sm:$0xff]
      %v2606 = vld [vmem:[#allocation2 + $0xb8] sm:$0xff]
      %v2607 = vld [vmem:[#allocation2 + $0xc0] sm:$0xff]
      %v2608 = vld [vmem:[#allocation2 + $0xc8] sm:$0xff]
      %v2609 = vld [vmem:[#allocation2 + $0xd0] sm:$0xff]
      %v2610 = vld [vmem:[#allocation2 + $0xd8] sm:$0xff]
      %v2611 = vld [vmem:[#allocation2 + $0xe0] sm:$0xff]
      %v2612 = vld [vmem:[#allocation2 + $0xe8] sm:$0xff]
      %v2613 = vld [vmem:[#allocation2 + $0xf0] sm:$0xff]
      %v2614 = vld [vmem:[#allocation2 + $0xf8] sm:$0xff]
      %v2615 = vld [vmem:[#allocation2 + $0x100] sm:$0xff]
      %v2616 = vld [vmem:[#allocation2 + $0x108] sm:$0xff]
      %v2617 = vld [vmem:[#allocation2 + $0x110] sm:$0xff]
      %v2618 = vld [vmem:[#allocation2 + $0x118] sm:$0xff]
      %v2619 = vld [vmem:[#allocation2 + $0x120] sm:$0xff]
      %s2620 = scalar_lea.vmem %s2, 32
      %v2621 = vld [vmem:[%s2620] sm:$0xff]
      %v2622 = vld [vmem:[%s2620 + $0x8] sm:$0xf]
      %v2624 = vsel %vm969, %v2588, 0
      %v2627 = vsel %vm969, %v2589, 0
      %v2630 = vsel %vm969, %v2590, 0
      %v2633 = vsel %vm969, %v2591, 0
      %v2636 = vsel %vm969, %v2592, 0
      %v2639 = vsel %vm969, %v2593, 0
      %v2642 = vsel %vm969, %v2594, 0
      %v2645 = vsel %vm969, %v2595, 0
      %v2648 = vsel %vm969, %v2596, 0
      %v2651 = vsel %vm969, %v2597, 0
      %v2654 = vsel %vm969, %v2598, 0
      %v2657 = vsel %vm969, %v2599, 0
      %v2660 = vsel %vm969, %v2600, 0
      %v2663 = vsel %vm969, %v2601, 0
      %v2666 = vsel %vm969, %v2602, 0
      %v2669 = vsel %vm969, %v2603, 0
      %v2672 = vsel %vm969, %v2604, 0
      %v2675 = vsel %vm969, %v2605, 0
      %v2678 = vsel %vm969, %v2606, 0
      %v2681 = vsel %vm969, %v2607, 0
      %v2684 = vsel %vm969, %v2608, 0
      %v2687 = vsel %vm969, %v2609, 0
      %v2690 = vsel %vm969, %v2610, 0
      %v2693 = vsel %vm969, %v2611, 0
      %v2696 = vsel %vm969, %v2612, 0
      %v2699 = vsel %vm969, %v2613, 0
      %v2702 = vsel %vm969, %v2614, 0
      %v2705 = vsel %vm969, %v2615, 0
      %v2708 = vsel %vm969, %v2616, 0
      %v2711 = vsel %vm969, %v2617, 0
      %v2714 = vsel %vm969, %v2618, 0
      %v2717 = vsel %vm969, %v2619, 0
      %v2720 = vsel %vm2125, %v2622, 0
      %2722 = vmatprep.subr.mxu0 0.0
      %2723 = vmatpush1.msra.mxu0 0.0
      %2724 = vmatprep.subr.mxu0 0.0
      %2725 = vmatpush1.msra.mxu0 0.0
      %2726 = vmatprep.subr.mxu0 0.0
      %2727 = vmatpush1.msra.mxu0 0.0
      %2728 = vmatprep.subr.mxu0 0.0
      %2729 = vmatpush1.msra.mxu0 0.0
      %2730 = vmatprep.subr.mxu0 0.0
      %2731 = vmatpush1.msra.mxu0 0.0
      %2732 = vmatprep.subr.mxu0 0.0
      %2733 = vmatpush1.msra.mxu0 0.0
      %2734 = vmatprep.subr.mxu0 0.0
      %2735 = vmatpush1.msra.mxu0 0.0
      %2736 = vmatprep.subr.mxu0 0.0
      %2737 = vmatpush1.msra.mxu0 0.0
      %2738 = vmatprep.subr.mxu0 0.0
      %2739 = vmatpush1.msra.mxu0 0.0
      %2740 = vmatprep.subr.mxu0 0.0
      %2741 = vmatpush1.msra.mxu0 0.0
      %2742 = vmatprep.subr.mxu0 0.0
      %2743 = vmatpush1.msra.mxu0 0.0
      %2744 = vmatprep.subr.mxu0 0.0
      %2745 = vmatpush1.msra.mxu0 0.0
      %2746 = vmatprep.subr.mxu0 0.0
      %2747 = vmatpush1.msra.mxu0 0.0
      %2748 = vmatprep.subr.mxu0 0.0
      %2749 = vmatpush1.msra.mxu0 0.0
      %2750 = vmatprep.subr.mxu0 0.0
      %2751 = vmatpush1.msra.mxu0 %v2720
      %2752 = vmatprep.subr.mxu0 0.0
      %2753 = vmatpush1.msra.mxu0 %v2621
      %2754 = vmatprep.subr.mxu0 0.0
      %2755 = vmatpush2.msra.mxu0 0.0
      %2756 = vmatprep.subr.mxu0 0.0
      %2757 = vmatpush2.msra.mxu0 0.0
      %2758 = vmatprep.subr.mxu0 0.0
      %2759 = vmatpush2.msra.mxu0 0.0
      %2760 = vmatprep.subr.mxu0 0.0
      %2761 = vmatpush2.msra.mxu0 0.0
      %2762 = vmatprep.subr.mxu0 0.0
      %2763 = vmatpush2.msra.mxu0 0.0
      %2764 = vmatprep.subr.mxu0 0.0
      %2765 = vmatpush2.msra.mxu0 0.0
      %2766 = vmatprep.subr.mxu0 0.0
      %2767 = vmatpush2.msra.mxu0 0.0
      %2768 = vmatprep.subr.mxu0 0.0
      %2769 = vmatpush2.msra.mxu0 0.0
      %2770 = vmatprep.subr.mxu0 0.0
      %2771 = vmatpush2.msra.mxu0 0.0
      %2772 = vmatprep.subr.mxu0 0.0
      %2773 = vmatpush2.msra.mxu0 0.0
      %2774 = vmatprep.subr.mxu0 0.0
      %2775 = vmatpush2.msra.mxu0 0.0
      %2776 = vmatprep.subr.mxu0 0.0
      %2777 = vmatpush2.msra.mxu0 0.0
      %2778 = vmatprep.subr.mxu0 0.0
      %2779 = vmatpush2.msra.mxu0 0.0
      %2780 = vmatprep.subr.mxu0 0.0
      %2781 = vmatpush2.msra.mxu0 0.0
      %2782 = vmatprep.subr.mxu0 0.0
      %2783 = vmatpush2.msra.mxu0 0.0
      %2784 = vmatprep.subr.mxu0 0.0
      %2785 = vmatpush2.msra.mxu0 0.0
      %2786 = vmatprep.mubr.f32.mxu0 0.0
      %2787 = vmatmul.mubr.f32.gmra.mxu0 %v2624
      %v2788 = vpop.f32.mrf.mxu0
      %v2789 = vadd.f32 0.0, %v2788
      %v2790 = vpop.f32.mrf.mxu0
      %2791 = vmatprep.mubr.f32.mxu0 0.0
      %2792 = vmatmul.mubr.f32.gmra.mxu0 %v2627
      %v2793 = vpop.f32.mrf.mxu0
      %v2794 = vadd.f32 0.0, %v2793
      %v2795 = vpop.f32.mrf.mxu0
      %2796 = vmatprep.mubr.f32.mxu0 0.0
      %2797 = vmatmul.mubr.f32.gmra.mxu0 %v2630
      %v2798 = vpop.f32.mrf.mxu0
      %v2799 = vadd.f32 0.0, %v2798
      %v2800 = vpop.f32.mrf.mxu0
      %2801 = vmatprep.mubr.f32.mxu0 0.0
      %2802 = vmatmul.mubr.f32.gmra.mxu0 %v2633
      %v2803 = vpop.f32.mrf.mxu0
      %v2804 = vadd.f32 0.0, %v2803
      %v2805 = vpop.f32.mrf.mxu0
      %2806 = vmatprep.mubr.f32.mxu0 0.0
      %2807 = vmatmul.mubr.f32.gmra.mxu0 %v2636
      %v2808 = vpop.f32.mrf.mxu0
      %v2809 = vadd.f32 0.0, %v2808
      %v2810 = vpop.f32.mrf.mxu0
      %2811 = vmatprep.mubr.f32.mxu0 0.0
      %2812 = vmatmul.mubr.f32.gmra.mxu0 %v2639
      %v2813 = vpop.f32.mrf.mxu0
      %v2814 = vadd.f32 0.0, %v2813
      %v2815 = vpop.f32.mrf.mxu0
      %2816 = vmatprep.mubr.f32.mxu0 0.0
      %2817 = vmatmul.mubr.f32.gmra.mxu0 %v2642
      %v2818 = vpop.f32.mrf.mxu0
      %v2819 = vadd.f32 0.0, %v2818
      %v2820 = vpop.f32.mrf.mxu0
      %2821 = vmatprep.mubr.f32.mxu0 0.0
      %2822 = vmatmul.mubr.f32.gmra.mxu0 %v2645
      %v2823 = vpop.f32.mrf.mxu0
      %v2824 = vadd.f32 0.0, %v2823
      %v2825 = vpop.f32.mrf.mxu0
      %2826 = vmatprep.mubr.f32.mxu0 0.0
      %2827 = vmatmul.mubr.f32.gmra.mxu0 %v2648
      %v2828 = vpop.f32.mrf.mxu0
      %v2829 = vadd.f32 0.0, %v2828
      %v2830 = vpop.f32.mrf.mxu0
      %2831 = vmatprep.mubr.f32.mxu0 0.0
      %2832 = vmatmul.mubr.f32.gmra.mxu0 %v2651
      %v2833 = vpop.f32.mrf.mxu0
      %v2834 = vadd.f32 0.0, %v2833
      %v2835 = vpop.f32.mrf.mxu0
      %2836 = vmatprep.mubr.f32.mxu0 0.0
      %2837 = vmatmul.mubr.f32.gmra.mxu0 %v2654
      %v2838 = vpop.f32.mrf.mxu0
      %v2839 = vadd.f32 0.0, %v2838
      %v2840 = vpop.f32.mrf.mxu0
      %2841 = vmatprep.mubr.f32.mxu0 0.0
      %2842 = vmatmul.mubr.f32.gmra.mxu0 %v2657
      %v2843 = vpop.f32.mrf.mxu0
      %v2844 = vadd.f32 0.0, %v2843
      %v2845 = vpop.f32.mrf.mxu0
      %2846 = vmatprep.mubr.f32.mxu0 0.0
      %2847 = vmatmul.mubr.f32.gmra.mxu0 %v2660
      %v2848 = vpop.f32.mrf.mxu0
      %v2849 = vadd.f32 0.0, %v2848
      %v2850 = vpop.f32.mrf.mxu0
      %2851 = vmatprep.mubr.f32.mxu0 0.0
      %2852 = vmatmul.mubr.f32.gmra.mxu0 %v2663
      %v2853 = vpop.f32.mrf.mxu0
      %v2854 = vadd.f32 0.0, %v2853
      %v2855 = vpop.f32.mrf.mxu0
      %2856 = vmatprep.mubr.f32.mxu0 0.0
      %2857 = vmatmul.mubr.f32.gmra.mxu0 %v2666
      %v2858 = vpop.f32.mrf.mxu0
      %v2859 = vadd.f32 0.0, %v2858
      %v2860 = vpop.f32.mrf.mxu0
      %2861 = vmatprep.mubr.f32.mxu0 0.0
      %2862 = vmatmul.mubr.f32.gmra.mxu0 %v2669
      %v2863 = vpop.f32.mrf.mxu0
      %v2864 = vadd.f32 0.0, %v2863
      %v2865 = vpop.f32.mrf.mxu0
      %2866 = vmatprep.mubr.f32.mxu0 0.0
      %2867 = vmatmul.mubr.f32.gmra.mxu0 %v2672
      %v2868 = vpop.f32.mrf.mxu0
      %v2869 = vadd.f32 0.0, %v2868
      %v2870 = vpop.f32.mrf.mxu0
      %2871 = vmatprep.mubr.f32.mxu0 0.0
      %2872 = vmatmul.mubr.f32.gmra.mxu0 %v2675
      %v2873 = vpop.f32.mrf.mxu0
      %v2874 = vadd.f32 0.0, %v2873
      %v2875 = vpop.f32.mrf.mxu0
      %2876 = vmatprep.mubr.f32.mxu0 0.0
      %2877 = vmatmul.mubr.f32.gmra.mxu0 %v2678
      %v2878 = vpop.f32.mrf.mxu0
      %v2879 = vadd.f32 0.0, %v2878
      %v2880 = vpop.f32.mrf.mxu0
      %2881 = vmatprep.mubr.f32.mxu0 0.0
      %2882 = vmatmul.mubr.f32.gmra.mxu0 %v2681
      %v2883 = vpop.f32.mrf.mxu0
      %v2884 = vadd.f32 0.0, %v2883
      %v2885 = vpop.f32.mrf.mxu0
      %2886 = vmatprep.mubr.f32.mxu0 0.0
      %2887 = vmatmul.mubr.f32.gmra.mxu0 %v2684
      %v2888 = vpop.f32.mrf.mxu0
      %v2889 = vadd.f32 0.0, %v2888
      %v2890 = vpop.f32.mrf.mxu0
      %2891 = vmatprep.mubr.f32.mxu0 0.0
      %2892 = vmatmul.mubr.f32.gmra.mxu0 %v2687
      %v2893 = vpop.f32.mrf.mxu0
      %v2894 = vadd.f32 0.0, %v2893
      %v2895 = vpop.f32.mrf.mxu0
      %2896 = vmatprep.mubr.f32.mxu0 0.0
      %2897 = vmatmul.mubr.f32.gmra.mxu0 %v2690
      %v2898 = vpop.f32.mrf.mxu0
      %v2899 = vadd.f32 0.0, %v2898
      %v2900 = vpop.f32.mrf.mxu0
      %2901 = vmatprep.mubr.f32.mxu0 0.0
      %2902 = vmatmul.mubr.f32.gmra.mxu0 %v2693
      %v2903 = vpop.f32.mrf.mxu0
      %v2904 = vadd.f32 0.0, %v2903
      %v2905 = vpop.f32.mrf.mxu0
      %2906 = vmatprep.mubr.f32.mxu0 0.0
      %2907 = vmatmul.mubr.f32.gmra.mxu0 %v2696
      %v2908 = vpop.f32.mrf.mxu0
      %v2909 = vadd.f32 0.0, %v2908
      %v2910 = vpop.f32.mrf.mxu0
      %2911 = vmatprep.mubr.f32.mxu0 0.0
      %2912 = vmatmul.mubr.f32.gmra.mxu0 %v2699
      %v2913 = vpop.f32.mrf.mxu0
      %v2914 = vadd.f32 0.0, %v2913
      %v2915 = vpop.f32.mrf.mxu0
      %2916 = vmatprep.mubr.f32.mxu0 0.0
      %2917 = vmatmul.mubr.f32.gmra.mxu0 %v2702
      %v2918 = vpop.f32.mrf.mxu0
      %v2919 = vadd.f32 0.0, %v2918
      %v2920 = vpop.f32.mrf.mxu0
      %2921 = vmatprep.mubr.f32.mxu0 0.0
      %2922 = vmatmul.mubr.f32.gmra.mxu0 %v2705
      %v2923 = vpop.f32.mrf.mxu0
      %v2924 = vadd.f32 0.0, %v2923
      %v2925 = vpop.f32.mrf.mxu0
      %2926 = vmatprep.mubr.f32.mxu0 0.0
      %2927 = vmatmul.mubr.f32.gmra.mxu0 %v2708
      %v2928 = vpop.f32.mrf.mxu0
      %v2929 = vadd.f32 0.0, %v2928
      %v2930 = vpop.f32.mrf.mxu0
      %2931 = vmatprep.mubr.f32.mxu0 0.0
      %2932 = vmatmul.mubr.f32.gmra.mxu0 %v2711
      %v2933 = vpop.f32.mrf.mxu0
      %v2934 = vadd.f32 0.0, %v2933
      %v2935 = vpop.f32.mrf.mxu0
      %2936 = vmatprep.mubr.f32.mxu0 0.0
      %2937 = vmatmul.mubr.f32.gmra.mxu0 %v2714
      %v2938 = vpop.f32.mrf.mxu0
      %v2939 = vadd.f32 0.0, %v2938
      %v2940 = vpop.f32.mrf.mxu0
      %2941 = vmatprep.mubr.f32.mxu0 0.0
      %2942 = vmatmul.mubr.f32.gmra.mxu0 %v2717
      %v2943 = vpop.f32.mrf.mxu0
      %v2944 = vadd.f32 0.0, %v2943
      %v2945 = vpop.f32.mrf.mxu0
      %2946 = vdwg.mxu0
      %v2947 = vadd.f32 %v2430, %v2789
      %v2948 = vadd.f32 %v2435, %v2794
      %v2949 = vadd.f32 %v2440, %v2799
      %v2950 = vadd.f32 %v2445, %v2804
      %v2951 = vadd.f32 %v2450, %v2809
      %v2952 = vadd.f32 %v2455, %v2814
      %v2953 = vadd.f32 %v2460, %v2819
      %v2954 = vadd.f32 %v2465, %v2824
      %v2955 = vadd.f32 %v2470, %v2829
      %v2956 = vadd.f32 %v2475, %v2834
      %v2957 = vadd.f32 %v2480, %v2839
      %v2958 = vadd.f32 %v2485, %v2844
      %v2959 = vadd.f32 %v2490, %v2849
      %v2960 = vadd.f32 %v2495, %v2854
      %v2961 = vadd.f32 %v2500, %v2859
      %v2962 = vadd.f32 %v2505, %v2864
      %v2963 = vadd.f32 %v2510, %v2869
      %v2964 = vadd.f32 %v2515, %v2874
      %v2965 = vadd.f32 %v2520, %v2879
      %v2966 = vadd.f32 %v2525, %v2884
      %v2967 = vadd.f32 %v2530, %v2889
      %v2968 = vadd.f32 %v2535, %v2894
      %v2969 = vadd.f32 %v2540, %v2899
      %v2970 = vadd.f32 %v2545, %v2904
      %v2971 = vadd.f32 %v2550, %v2909
      %v2972 = vadd.f32 %v2555, %v2914
      %v2973 = vadd.f32 %v2560, %v2919
      %v2974 = vadd.f32 %v2565, %v2924
      %v2975 = vadd.f32 %v2570, %v2929
      %v2976 = vadd.f32 %v2575, %v2934
      %v2977 = vadd.f32 %v2580, %v2939
      %v2978 = vadd.f32 %v2585, %v2944
      %v2979 = vld [vmem:[%s6] sm:$0x1]
      %v2981 = vlaneseq
      %v2982 = vshrl.u32 %v2981, 7
      %v2983 = vsub.s32 0, %v2982
      %v2984 = vrot.slane %v2979, %v2983
      %v2986 = vmul.f32 %v2947, %v2984
      %v2987 = vmul.f32 %v2948, %v2984
      %v2988 = vmul.f32 %v2949, %v2984
      %v2989 = vmul.f32 %v2950, %v2984
      %v2990 = vmul.f32 %v2951, %v2984
      %v2991 = vmul.f32 %v2952, %v2984
      %v2992 = vmul.f32 %v2953, %v2984
      %v2993 = vmul.f32 %v2954, %v2984
      %v2994 = vmul.f32 %v2955, %v2984
      %v2995 = vmul.f32 %v2956, %v2984
      %v2996 = vmul.f32 %v2957, %v2984
      %v2997 = vmul.f32 %v2958, %v2984
      %v2998 = vmul.f32 %v2959, %v2984
      %v2999 = vmul.f32 %v2960, %v2984
      %v3000 = vmul.f32 %v2961, %v2984
      %v3001 = vmul.f32 %v2962, %v2984
      %v3002 = vmul.f32 %v2963, %v2984
      %v3003 = vmul.f32 %v2964, %v2984
      %v3004 = vmul.f32 %v2965, %v2984
      %v3005 = vmul.f32 %v2966, %v2984
      %v3006 = vmul.f32 %v2967, %v2984
      %v3007 = vmul.f32 %v2968, %v2984
      %v3008 = vmul.f32 %v2969, %v2984
      %v3009 = vmul.f32 %v2970, %v2984
      %v3010 = vmul.f32 %v2971, %v2984
      %v3011 = vmul.f32 %v2972, %v2984
      %v3012 = vmul.f32 %v2973, %v2984
      %v3013 = vmul.f32 %v2974, %v2984
      %v3014 = vmul.f32 %v2975, %v2984
      %v3015 = vmul.f32 %v2976, %v2984
      %v3016 = vmul.f32 %v2977, %v2984
      %v3017 = vmul.f32 %v2978, %v2984
      %v3018 = vld [vmem:[%s7] sm:$0x1]
      %v3020 = vlaneseq
      %v3021 = vshrl.u32 %v3020, 7
      %v3022 = vsub.s32 0, %v3021
      %v3023 = vrot.slane %v3018, %v3022
      %v3025 = vadd.f32 %v2986, %v3023
      %v3026 = vadd.f32 %v2987, %v3023
      %v3027 = vadd.f32 %v2988, %v3023
      %v3028 = vadd.f32 %v2989, %v3023
      %v3029 = vadd.f32 %v2990, %v3023
      %v3030 = vadd.f32 %v2991, %v3023
      %v3031 = vadd.f32 %v2992, %v3023
      %v3032 = vadd.f32 %v2993, %v3023
      %v3033 = vadd.f32 %v2994, %v3023
      %v3034 = vadd.f32 %v2995, %v3023
      %v3035 = vadd.f32 %v2996, %v3023
      %v3036 = vadd.f32 %v2997, %v3023
      %v3037 = vadd.f32 %v2998, %v3023
      %v3038 = vadd.f32 %v2999, %v3023
      %v3039 = vadd.f32 %v3000, %v3023
      %v3040 = vadd.f32 %v3001, %v3023
      %v3041 = vadd.f32 %v3002, %v3023
      %v3042 = vadd.f32 %v3003, %v3023
      %v3043 = vadd.f32 %v3004, %v3023
      %v3044 = vadd.f32 %v3005, %v3023
      %v3045 = vadd.f32 %v3006, %v3023
      %v3046 = vadd.f32 %v3007, %v3023
      %v3047 = vadd.f32 %v3008, %v3023
      %v3048 = vadd.f32 %v3009, %v3023
      %v3049 = vadd.f32 %v3010, %v3023
      %v3050 = vadd.f32 %v3011, %v3023
      %v3051 = vadd.f32 %v3012, %v3023
      %v3052 = vadd.f32 %v3013, %v3023
      %v3053 = vadd.f32 %v3014, %v3023
      %v3054 = vadd.f32 %v3015, %v3023
      %v3055 = vadd.f32 %v3016, %v3023
      %v3056 = vadd.f32 %v3017, %v3023
      %v3057 = vmax.f32 %v3025, 0.0
      %v3058 = vmax.f32 %v3026, 0.0
      %v3059 = vmax.f32 %v3027, 0.0
      %v3060 = vmax.f32 %v3028, 0.0
      %v3061 = vmax.f32 %v3029, 0.0
      %v3062 = vmax.f32 %v3030, 0.0
      %v3063 = vmax.f32 %v3031, 0.0
      %v3064 = vmax.f32 %v3032, 0.0
      %v3065 = vmax.f32 %v3033, 0.0
      %v3066 = vmax.f32 %v3034, 0.0
      %v3067 = vmax.f32 %v3035, 0.0
      %v3068 = vmax.f32 %v3036, 0.0
      %v3069 = vmax.f32 %v3037, 0.0
      %v3070 = vmax.f32 %v3038, 0.0
      %v3071 = vmax.f32 %v3039, 0.0
      %v3072 = vmax.f32 %v3040, 0.0
      %v3073 = vmax.f32 %v3041, 0.0
      %v3074 = vmax.f32 %v3042, 0.0
      %v3075 = vmax.f32 %v3043, 0.0
      %v3076 = vmax.f32 %v3044, 0.0
      %v3077 = vmax.f32 %v3045, 0.0
      %v3078 = vmax.f32 %v3046, 0.0
      %v3079 = vmax.f32 %v3047, 0.0
      %v3080 = vmax.f32 %v3048, 0.0
      %v3081 = vmax.f32 %v3049, 0.0
      %v3082 = vmax.f32 %v3050, 0.0
      %v3083 = vmax.f32 %v3051, 0.0
      %v3084 = vmax.f32 %v3052, 0.0
      %v3085 = vmax.f32 %v3053, 0.0
      %v3086 = vmax.f32 %v3054, 0.0
      %v3087 = vmax.f32 %v3055, 0.0
      %v3088 = vmax.f32 %v3056, 0.0
      %v3089 = vld [vmem:[%s3] sm:$0xf]
      %v3091 = vsel %vm1892, %v3057, 0
      %v3094 = vsel %vm1892, %v3058, 0
      %v3097 = vsel %vm1892, %v3059, 0
      %v3100 = vsel %vm1892, %v3060, 0
      %v3103 = vsel %vm1892, %v3061, 0
      %v3106 = vsel %vm1892, %v3062, 0
      %v3109 = vsel %vm1892, %v3063, 0
      %v3112 = vsel %vm1892, %v3064, 0
      %v3115 = vsel %vm1892, %v3065, 0
      %v3118 = vsel %vm1892, %v3066, 0
      %v3121 = vsel %vm1892, %v3067, 0
      %v3124 = vsel %vm1892, %v3068, 0
      %v3127 = vsel %vm1892, %v3069, 0
      %v3130 = vsel %vm1892, %v3070, 0
      %v3133 = vsel %vm1892, %v3071, 0
      %v3136 = vsel %vm1892, %v3072, 0
      %v3139 = vsel %vm1892, %v3073, 0
      %v3142 = vsel %vm1892, %v3074, 0
      %v3145 = vsel %vm1892, %v3075, 0
      %v3148 = vsel %vm1892, %v3076, 0
      %v3151 = vsel %vm1892, %v3077, 0
      %v3154 = vsel %vm1892, %v3078, 0
      %v3157 = vsel %vm1892, %v3079, 0
      %v3160 = vsel %vm1892, %v3080, 0
      %v3163 = vsel %vm1892, %v3081, 0
      %v3166 = vsel %vm1892, %v3082, 0
      %v3169 = vsel %vm1892, %v3083, 0
      %v3172 = vsel %vm1892, %v3084, 0
      %v3175 = vsel %vm1892, %v3085, 0
      %v3178 = vsel %vm1892, %v3086, 0
      %v3181 = vsel %vm1892, %v3087, 0
      %v3184 = vsel %vm1892, %v3088, 0
      %v3187 = vsel %vm2125, %v3089, 0
      %3189 = vmatprep.subr.mxu0 0.0
      %3190 = vmatpush1.msra.mxu0 0.0
      %3191 = vmatprep.subr.mxu0 0.0
      %3192 = vmatpush1.msra.mxu0 0.0
      %3193 = vmatprep.subr.mxu0 0.0
      %3194 = vmatpush1.msra.mxu0 0.0
      %3195 = vmatprep.subr.mxu0 0.0
      %3196 = vmatpush1.msra.mxu0 0.0
      %3197 = vmatprep.subr.mxu0 0.0
      %3198 = vmatpush1.msra.mxu0 0.0
      %3199 = vmatprep.subr.mxu0 0.0
      %3200 = vmatpush1.msra.mxu0 0.0
      %3201 = vmatprep.subr.mxu0 0.0
      %3202 = vmatpush1.msra.mxu0 0.0
      %3203 = vmatprep.subr.mxu0 0.0
      %3204 = vmatpush1.msra.mxu0 0.0
      %3205 = vmatprep.subr.mxu0 0.0
      %3206 = vmatpush1.msra.mxu0 0.0
      %3207 = vmatprep.subr.mxu0 0.0
      %3208 = vmatpush1.msra.mxu0 0.0
      %3209 = vmatprep.subr.mxu0 0.0
      %3210 = vmatpush1.msra.mxu0 0.0
      %3211 = vmatprep.subr.mxu0 0.0
      %3212 = vmatpush1.msra.mxu0 0.0
      %3213 = vmatprep.subr.mxu0 0.0
      %3214 = vmatpush1.msra.mxu0 0.0
      %3215 = vmatprep.subr.mxu0 0.0
      %3216 = vmatpush1.msra.mxu0 0.0
      %3217 = vmatprep.subr.mxu0 0.0
      %3218 = vmatpush1.msra.mxu0 0.0
      %3219 = vmatprep.subr.mxu0 0.0
      %3220 = vmatpush1.msra.mxu0 %v3187
      %3221 = vmatprep.subr.mxu0 0.0
      %3222 = vmatpush2.msra.mxu0 0.0
      %3223 = vmatprep.subr.mxu0 0.0
      %3224 = vmatpush2.msra.mxu0 0.0
      %3225 = vmatprep.subr.mxu0 0.0
      %3226 = vmatpush2.msra.mxu0 0.0
      %3227 = vmatprep.subr.mxu0 0.0
      %3228 = vmatpush2.msra.mxu0 0.0
      %3229 = vmatprep.subr.mxu0 0.0
      %3230 = vmatpush2.msra.mxu0 0.0
      %3231 = vmatprep.subr.mxu0 0.0
      %3232 = vmatpush2.msra.mxu0 0.0
      %3233 = vmatprep.subr.mxu0 0.0
      %3234 = vmatpush2.msra.mxu0 0.0
      %3235 = vmatprep.subr.mxu0 0.0
      %3236 = vmatpush2.msra.mxu0 0.0
      %3237 = vmatprep.subr.mxu0 0.0
      %3238 = vmatpush2.msra.mxu0 0.0
      %3239 = vmatprep.subr.mxu0 0.0
      %3240 = vmatpush2.msra.mxu0 0.0
      %3241 = vmatprep.subr.mxu0 0.0
      %3242 = vmatpush2.msra.mxu0 0.0
      %3243 = vmatprep.subr.mxu0 0.0
      %3244 = vmatpush2.msra.mxu0 0.0
      %3245 = vmatprep.subr.mxu0 0.0
      %3246 = vmatpush2.msra.mxu0 0.0
      %3247 = vmatprep.subr.mxu0 0.0
      %3248 = vmatpush2.msra.mxu0 0.0
      %3249 = vmatprep.subr.mxu0 0.0
      %3250 = vmatpush2.msra.mxu0 0.0
      %3251 = vmatprep.subr.mxu0 0.0
      %3252 = vmatpush2.msra.mxu0 0.0
      %3253 = vmatprep.mubr.f32.mxu0 0.0
      %3254 = vmatmul.mubr.f32.gmra.mxu0 %v3091
      %v3255 = vpop.f32.mrf.mxu0
      %v3256 = vadd.f32 0.0, %v3255
      %v3257 = vpop.f32.mrf.mxu0
      %3258 = vmatprep.mubr.f32.mxu0 0.0
      %3259 = vmatmul.mubr.f32.gmra.mxu0 %v3094
      %v3260 = vpop.f32.mrf.mxu0
      %v3261 = vadd.f32 0.0, %v3260
      %v3262 = vpop.f32.mrf.mxu0
      %3263 = vmatprep.mubr.f32.mxu0 0.0
      %3264 = vmatmul.mubr.f32.gmra.mxu0 %v3097
      %v3265 = vpop.f32.mrf.mxu0
      %v3266 = vadd.f32 0.0, %v3265
      %v3267 = vpop.f32.mrf.mxu0
      %3268 = vmatprep.mubr.f32.mxu0 0.0
      %3269 = vmatmul.mubr.f32.gmra.mxu0 %v3100
      %v3270 = vpop.f32.mrf.mxu0
      %v3271 = vadd.f32 0.0, %v3270
      %v3272 = vpop.f32.mrf.mxu0
      %3273 = vmatprep.mubr.f32.mxu0 0.0
      %3274 = vmatmul.mubr.f32.gmra.mxu0 %v3103
      %v3275 = vpop.f32.mrf.mxu0
      %v3276 = vadd.f32 0.0, %v3275
      %v3277 = vpop.f32.mrf.mxu0
      %3278 = vmatprep.mubr.f32.mxu0 0.0
      %3279 = vmatmul.mubr.f32.gmra.mxu0 %v3106
      %v3280 = vpop.f32.mrf.mxu0
      %v3281 = vadd.f32 0.0, %v3280
      %v3282 = vpop.f32.mrf.mxu0
      %3283 = vmatprep.mubr.f32.mxu0 0.0
      %3284 = vmatmul.mubr.f32.gmra.mxu0 %v3109
      %v3285 = vpop.f32.mrf.mxu0
      %v3286 = vadd.f32 0.0, %v3285
      %v3287 = vpop.f32.mrf.mxu0
      %3288 = vmatprep.mubr.f32.mxu0 0.0
      %3289 = vmatmul.mubr.f32.gmra.mxu0 %v3112
      %v3290 = vpop.f32.mrf.mxu0
      %v3291 = vadd.f32 0.0, %v3290
      %v3292 = vpop.f32.mrf.mxu0
      %3293 = vmatprep.mubr.f32.mxu0 0.0
      %3294 = vmatmul.mubr.f32.gmra.mxu0 %v3115
      %v3295 = vpop.f32.mrf.mxu0
      %v3296 = vadd.f32 0.0, %v3295
      %v3297 = vpop.f32.mrf.mxu0
      %3298 = vmatprep.mubr.f32.mxu0 0.0
      %3299 = vmatmul.mubr.f32.gmra.mxu0 %v3118
      %v3300 = vpop.f32.mrf.mxu0
      %v3301 = vadd.f32 0.0, %v3300
      %v3302 = vpop.f32.mrf.mxu0
      %3303 = vmatprep.mubr.f32.mxu0 0.0
      %3304 = vmatmul.mubr.f32.gmra.mxu0 %v3121
      %v3305 = vpop.f32.mrf.mxu0
      %v3306 = vadd.f32 0.0, %v3305
      %v3307 = vpop.f32.mrf.mxu0
      %3308 = vmatprep.mubr.f32.mxu0 0.0
      %3309 = vmatmul.mubr.f32.gmra.mxu0 %v3124
      %v3310 = vpop.f32.mrf.mxu0
      %v3311 = vadd.f32 0.0, %v3310
      %v3312 = vpop.f32.mrf.mxu0
      %3313 = vmatprep.mubr.f32.mxu0 0.0
      %3314 = vmatmul.mubr.f32.gmra.mxu0 %v3127
      %v3315 = vpop.f32.mrf.mxu0
      %v3316 = vadd.f32 0.0, %v3315
      %v3317 = vpop.f32.mrf.mxu0
      %3318 = vmatprep.mubr.f32.mxu0 0.0
      %3319 = vmatmul.mubr.f32.gmra.mxu0 %v3130
      %v3320 = vpop.f32.mrf.mxu0
      %v3321 = vadd.f32 0.0, %v3320
      %v3322 = vpop.f32.mrf.mxu0
      %3323 = vmatprep.mubr.f32.mxu0 0.0
      %3324 = vmatmul.mubr.f32.gmra.mxu0 %v3133
      %v3325 = vpop.f32.mrf.mxu0
      %v3326 = vadd.f32 0.0, %v3325
      %v3327 = vpop.f32.mrf.mxu0
      %3328 = vmatprep.mubr.f32.mxu0 0.0
      %3329 = vmatmul.mubr.f32.gmra.mxu0 %v3136
      %v3330 = vpop.f32.mrf.mxu0
      %v3331 = vadd.f32 0.0, %v3330
      %v3332 = vpop.f32.mrf.mxu0
      %3333 = vmatprep.mubr.f32.mxu0 0.0
      %3334 = vmatmul.mubr.f32.gmra.mxu0 %v3139
      %v3335 = vpop.f32.mrf.mxu0
      %v3336 = vadd.f32 0.0, %v3335
      %v3337 = vpop.f32.mrf.mxu0
      %3338 = vmatprep.mubr.f32.mxu0 0.0
      %3339 = vmatmul.mubr.f32.gmra.mxu0 %v3142
      %v3340 = vpop.f32.mrf.mxu0
      %v3341 = vadd.f32 0.0, %v3340
      %v3342 = vpop.f32.mrf.mxu0
      %3343 = vmatprep.mubr.f32.mxu0 0.0
      %3344 = vmatmul.mubr.f32.gmra.mxu0 %v3145
      %v3345 = vpop.f32.mrf.mxu0
      %v3346 = vadd.f32 0.0, %v3345
      %v3347 = vpop.f32.mrf.mxu0
      %3348 = vmatprep.mubr.f32.mxu0 0.0
      %3349 = vmatmul.mubr.f32.gmra.mxu0 %v3148
      %v3350 = vpop.f32.mrf.mxu0
      %v3351 = vadd.f32 0.0, %v3350
      %v3352 = vpop.f32.mrf.mxu0
      %3353 = vmatprep.mubr.f32.mxu0 0.0
      %3354 = vmatmul.mubr.f32.gmra.mxu0 %v3151
      %v3355 = vpop.f32.mrf.mxu0
      %v3356 = vadd.f32 0.0, %v3355
      %v3357 = vpop.f32.mrf.mxu0
      %3358 = vmatprep.mubr.f32.mxu0 0.0
      %3359 = vmatmul.mubr.f32.gmra.mxu0 %v3154
      %v3360 = vpop.f32.mrf.mxu0
      %v3361 = vadd.f32 0.0, %v3360
      %v3362 = vpop.f32.mrf.mxu0
      %3363 = vmatprep.mubr.f32.mxu0 0.0
      %3364 = vmatmul.mubr.f32.gmra.mxu0 %v3157
      %v3365 = vpop.f32.mrf.mxu0
      %v3366 = vadd.f32 0.0, %v3365
      %v3367 = vpop.f32.mrf.mxu0
      %3368 = vmatprep.mubr.f32.mxu0 0.0
      %3369 = vmatmul.mubr.f32.gmra.mxu0 %v3160
      %v3370 = vpop.f32.mrf.mxu0
      %v3371 = vadd.f32 0.0, %v3370
      %v3372 = vpop.f32.mrf.mxu0
      %3373 = vmatprep.mubr.f32.mxu0 0.0
      %3374 = vmatmul.mubr.f32.gmra.mxu0 %v3163
      %v3375 = vpop.f32.mrf.mxu0
      %v3376 = vadd.f32 0.0, %v3375
      %v3377 = vpop.f32.mrf.mxu0
      %3378 = vmatprep.mubr.f32.mxu0 0.0
      %3379 = vmatmul.mubr.f32.gmra.mxu0 %v3166
      %v3380 = vpop.f32.mrf.mxu0
      %v3381 = vadd.f32 0.0, %v3380
      %v3382 = vpop.f32.mrf.mxu0
      %3383 = vmatprep.mubr.f32.mxu0 0.0
      %3384 = vmatmul.mubr.f32.gmra.mxu0 %v3169
      %v3385 = vpop.f32.mrf.mxu0
      %v3386 = vadd.f32 0.0, %v3385
      %v3387 = vpop.f32.mrf.mxu0
      %3388 = vmatprep.mubr.f32.mxu0 0.0
      %3389 = vmatmul.mubr.f32.gmra.mxu0 %v3172
      %v3390 = vpop.f32.mrf.mxu0
      %v3391 = vadd.f32 0.0, %v3390
      %v3392 = vpop.f32.mrf.mxu0
      %3393 = vmatprep.mubr.f32.mxu0 0.0
      %3394 = vmatmul.mubr.f32.gmra.mxu0 %v3175
      %v3395 = vpop.f32.mrf.mxu0
      %v3396 = vadd.f32 0.0, %v3395
      %v3397 = vpop.f32.mrf.mxu0
      %3398 = vmatprep.mubr.f32.mxu0 0.0
      %3399 = vmatmul.mubr.f32.gmra.mxu0 %v3178
      %v3400 = vpop.f32.mrf.mxu0
      %v3401 = vadd.f32 0.0, %v3400
      %v3402 = vpop.f32.mrf.mxu0
      %3403 = vmatprep.mubr.f32.mxu0 0.0
      %3404 = vmatmul.mubr.f32.gmra.mxu0 %v3181
      %v3405 = vpop.f32.mrf.mxu0
      %v3406 = vadd.f32 0.0, %v3405
      %v3407 = vpop.f32.mrf.mxu0
      %3408 = vmatprep.mubr.f32.mxu0 0.0
      %3409 = vmatmul.mubr.f32.gmra.mxu0 %v3184
      %v3410 = vpop.f32.mrf.mxu0
      %v3411 = vadd.f32 0.0, %v3410
      %v3412 = vpop.f32.mrf.mxu0
      %3413 = vdwg.mxu0
      %v3414 = vld [vmem:[%s8] sm:$0x1]
      %v3416 = vlaneseq
      %v3417 = vshrl.u32 %v3416, 7
      %v3418 = vsub.s32 0, %v3417
      %v3419 = vrot.slane %v3414, %v3418
      %v3421 = vmul.f32 %v3256, %v3419
      %v3422 = vmul.f32 %v3261, %v3419
      %v3423 = vmul.f32 %v3266, %v3419
      %v3424 = vmul.f32 %v3271, %v3419
      %v3425 = vmul.f32 %v3276, %v3419
      %v3426 = vmul.f32 %v3281, %v3419
      %v3427 = vmul.f32 %v3286, %v3419
      %v3428 = vmul.f32 %v3291, %v3419
      %v3429 = vmul.f32 %v3296, %v3419
      %v3430 = vmul.f32 %v3301, %v3419
      %v3431 = vmul.f32 %v3306, %v3419
      %v3432 = vmul.f32 %v3311, %v3419
      %v3433 = vmul.f32 %v3316, %v3419
      %v3434 = vmul.f32 %v3321, %v3419
      %v3435 = vmul.f32 %v3326, %v3419
      %v3436 = vmul.f32 %v3331, %v3419
      %v3437 = vmul.f32 %v3336, %v3419
      %v3438 = vmul.f32 %v3341, %v3419
      %v3439 = vmul.f32 %v3346, %v3419
      %v3440 = vmul.f32 %v3351, %v3419
      %v3441 = vmul.f32 %v3356, %v3419
      %v3442 = vmul.f32 %v3361, %v3419
      %v3443 = vmul.f32 %v3366, %v3419
      %v3444 = vmul.f32 %v3371, %v3419
      %v3445 = vmul.f32 %v3376, %v3419
      %v3446 = vmul.f32 %v3381, %v3419
      %v3447 = vmul.f32 %v3386, %v3419
      %v3448 = vmul.f32 %v3391, %v3419
      %v3449 = vmul.f32 %v3396, %v3419
      %v3450 = vmul.f32 %v3401, %v3419
      %v3451 = vmul.f32 %v3406, %v3419
      %v3452 = vmul.f32 %v3411, %v3419
      %v3453 = vld [vmem:[%s9] sm:$0x1]
      %v3455 = vlaneseq
      %v3456 = vshrl.u32 %v3455, 7
      %v3457 = vsub.s32 0, %v3456
      %v3458 = vrot.slane %v3453, %v3457
      %v3460 = vadd.f32 %v3421, %v3458
      %v3461 = vadd.f32 %v3422, %v3458
      %v3462 = vadd.f32 %v3423, %v3458
      %v3463 = vadd.f32 %v3424, %v3458
      %v3464 = vadd.f32 %v3425, %v3458
      %v3465 = vadd.f32 %v3426, %v3458
      %v3466 = vadd.f32 %v3427, %v3458
      %v3467 = vadd.f32 %v3428, %v3458
      %v3468 = vadd.f32 %v3429, %v3458
      %v3469 = vadd.f32 %v3430, %v3458
      %v3470 = vadd.f32 %v3431, %v3458
      %v3471 = vadd.f32 %v3432, %v3458
      %v3472 = vadd.f32 %v3433, %v3458
      %v3473 = vadd.f32 %v3434, %v3458
      %v3474 = vadd.f32 %v3435, %v3458
      %v3475 = vadd.f32 %v3436, %v3458
      %v3476 = vadd.f32 %v3437, %v3458
      %v3477 = vadd.f32 %v3438, %v3458
      %v3478 = vadd.f32 %v3439, %v3458
      %v3479 = vadd.f32 %v3440, %v3458
      %v3480 = vadd.f32 %v3441, %v3458
      %v3481 = vadd.f32 %v3442, %v3458
      %v3482 = vadd.f32 %v3443, %v3458
      %v3483 = vadd.f32 %v3444, %v3458
      %v3484 = vadd.f32 %v3445, %v3458
      %v3485 = vadd.f32 %v3446, %v3458
      %v3486 = vadd.f32 %v3447, %v3458
      %v3487 = vadd.f32 %v3448, %v3458
      %v3488 = vadd.f32 %v3449, %v3458
      %v3489 = vadd.f32 %v3450, %v3458
      %v3490 = vadd.f32 %v3451, %v3458
      %v3491 = vadd.f32 %v3452, %v3458
      %v3492 = vadd.f32 %v3460, %v976
      %v3493 = vadd.f32 %v3461, %v977
      %v3494 = vadd.f32 %v3462, %v978
      %v3495 = vadd.f32 %v3463, %v979
      %v3496 = vadd.f32 %v3464, %v980
      %v3497 = vadd.f32 %v3465, %v981
      %v3498 = vadd.f32 %v3466, %v982
      %v3499 = vadd.f32 %v3467, %v983
      %v3500 = vadd.f32 %v3468, %v984
      %v3501 = vadd.f32 %v3469, %v985
      %v3502 = vadd.f32 %v3470, %v986
      %v3503 = vadd.f32 %v3471, %v987
      %v3504 = vadd.f32 %v3472, %v988
      %v3505 = vadd.f32 %v3473, %v989
      %v3506 = vadd.f32 %v3474, %v990
      %v3507 = vadd.f32 %v3475, %v991
      %v3508 = vadd.f32 %v3476, %v992
      %v3509 = vadd.f32 %v3477, %v993
      %v3510 = vadd.f32 %v3478, %v994
      %v3511 = vadd.f32 %v3479, %v995
      %v3512 = vadd.f32 %v3480, %v996
      %v3513 = vadd.f32 %v3481, %v997
      %v3514 = vadd.f32 %v3482, %v998
      %v3515 = vadd.f32 %v3483, %v999
      %v3516 = vadd.f32 %v3484, %v1000
      %v3517 = vadd.f32 %v3485, %v1001
      %v3518 = vadd.f32 %v3486, %v1002
      %v3519 = vadd.f32 %v3487, %v1003
      %v3520 = vadd.f32 %v3488, %v1004
      %v3521 = vadd.f32 %v3489, %v1005
      %v3522 = vadd.f32 %v3490, %v1006
      %v3523 = vadd.f32 %v3491, %v1007
      %v3524 = vmax.f32 %v3492, 0.0
      %v3525 = vmax.f32 %v3493, 0.0
      %v3526 = vmax.f32 %v3494, 0.0
      %v3527 = vmax.f32 %v3495, 0.0
      %v3528 = vmax.f32 %v3496, 0.0
      %v3529 = vmax.f32 %v3497, 0.0
      %v3530 = vmax.f32 %v3498, 0.0
      %v3531 = vmax.f32 %v3499, 0.0
      %v3532 = vmax.f32 %v3500, 0.0
      %v3533 = vmax.f32 %v3501, 0.0
      %v3534 = vmax.f32 %v3502, 0.0
      %v3535 = vmax.f32 %v3503, 0.0
      %v3536 = vmax.f32 %v3504, 0.0
      %v3537 = vmax.f32 %v3505, 0.0
      %v3538 = vmax.f32 %v3506, 0.0
      %v3539 = vmax.f32 %v3507, 0.0
      %v3540 = vmax.f32 %v3508, 0.0
      %v3541 = vmax.f32 %v3509, 0.0
      %v3542 = vmax.f32 %v3510, 0.0
      %v3543 = vmax.f32 %v3511, 0.0
      %v3544 = vmax.f32 %v3512, 0.0
      %v3545 = vmax.f32 %v3513, 0.0
      %v3546 = vmax.f32 %v3514, 0.0
      %v3547 = vmax.f32 %v3515, 0.0
      %v3548 = vmax.f32 %v3516, 0.0
      %v3549 = vmax.f32 %v3517, 0.0
      %v3550 = vmax.f32 %v3518, 0.0
      %v3551 = vmax.f32 %v3519, 0.0
      %v3552 = vmax.f32 %v3520, 0.0
      %v3553 = vmax.f32 %v3521, 0.0
      %v3554 = vmax.f32 %v3522, 0.0
      %v3555 = vmax.f32 %v3523, 0.0
      %3556 = vst.msk [vmem:[%s359] sm:$0xff] %vm1010, %v3524
      %3557 = vst.msk [vmem:[%s359 + $0x8] sm:$0xff] %vm1010, %v3525
      %3558 = vst.msk [vmem:[%s359 + $0x10] sm:$0xff] %vm1010, %v3526
      %3559 = vst.msk [vmem:[%s359 + $0x18] sm:$0xff] %vm1010, %v3527
      %3560 = vst.msk [vmem:[%s359 + $0x20] sm:$0xff] %vm1010, %v3528
      %3561 = vst.msk [vmem:[%s359 + $0x28] sm:$0xff] %vm1010, %v3529
      %3562 = vst.msk [vmem:[%s359 + $0x30] sm:$0xff] %vm1010, %v3530
      %3563 = vst.msk [vmem:[%s359 + $0x38] sm:$0xff] %vm1010, %v3531
      %3564 = vst.msk [vmem:[%s359 + $0x40] sm:$0xff] %vm1010, %v3532
      %3565 = vst.msk [vmem:[%s359 + $0x48] sm:$0xff] %vm1010, %v3533
      %3566 = vst.msk [vmem:[%s359 + $0x50] sm:$0xff] %vm1010, %v3534
      %3567 = vst.msk [vmem:[%s359 + $0x58] sm:$0xff] %vm1010, %v3535
      %3568 = vst.msk [vmem:[%s359 + $0x60] sm:$0xff] %vm1010, %v3536
      %3569 = vst.msk [vmem:[%s359 + $0x68] sm:$0xff] %vm1010, %v3537
      %3570 = vst.msk [vmem:[%s359 + $0x70] sm:$0xff] %vm1010, %v3538
      %3571 = vst.msk [vmem:[%s359 + $0x78] sm:$0xff] %vm1010, %v3539
      %3572 = vst.msk [vmem:[%s359 + $0x80] sm:$0xff] %vm1010, %v3540
      %3573 = vst.msk [vmem:[%s359 + $0x88] sm:$0xff] %vm1010, %v3541
      %3574 = vst.msk [vmem:[%s359 + $0x90] sm:$0xff] %vm1010, %v3542
      %3575 = vst.msk [vmem:[%s359 + $0x98] sm:$0xff] %vm1010, %v3543
      %3576 = vst.msk [vmem:[%s359 + $0xa0] sm:$0xff] %vm1010, %v3544
      %3577 = vst.msk [vmem:[%s359 + $0xa8] sm:$0xff] %vm1010, %v3545
      %3578 = vst.msk [vmem:[%s359 + $0xb0] sm:$0xff] %vm1010, %v3546
      %3579 = vst.msk [vmem:[%s359 + $0xb8] sm:$0xff] %vm1010, %v3547
      %3580 = vst.msk [vmem:[%s359 + $0xc0] sm:$0xff] %vm1010, %v3548
      %3581 = vst.msk [vmem:[%s359 + $0xc8] sm:$0xff] %vm1010, %v3549
      %3582 = vst.msk [vmem:[%s359 + $0xd0] sm:$0xff] %vm1010, %v3550
      %3583 = vst.msk [vmem:[%s359 + $0xd8] sm:$0xff] %vm1010, %v3551
      %3584 = vst.msk [vmem:[%s359 + $0xe0] sm:$0xff] %vm1010, %v3552
      %3585 = vst.msk [vmem:[%s359 + $0xe8] sm:$0xff] %vm1010, %v3553
      %3586 = vst.msk [vmem:[%s359 + $0xf0] sm:$0xff] %vm1010, %v3554
      %3587 = vst.msk [vmem:[%s359 + $0xf8] sm:$0xff] %vm1010, %v3555
      %p3588 = scmp.lt.s32.totalorder %s21, 1
      %s3589 = scalar_select %p3588, %s21, 1
      %s3590 = smul.addr %s3589, 32
      %s3591 = smul.addr %s3590, 8
      %s3592 = scalar_lea.vmem %s10, %s3591
      // Predicated region
      $region61: #{_lambda_.1} parent=59 // pred_check
        %p3593 = pneg %p254
      $region62: #{_lambda_.1} parent=59 // pred_check_branch
        %3595 = sbr.rel (%p3593) target = $region64
      $region63: #{_lambda_.1} parent=59 // pred_region
        _
      $region64: #{_lambda_.1} parent=59 // pred_fallthru
        _
    $region60: #{_lambda_.1} parent=5 // pred_fallthru
      _
    %p3596 = scmp.le.s32.totalorder 2, %s16
    // Predicated region
    $region65: #{_lambda_.1} parent=5 // pred_check
      %p3597 = pneg %p3596
    $region66: #{_lambda_.1} parent=5 // pred_check_branch
      %3599 = sbr.rel (%p3597) target = $region68
    $region67: #{_lambda_.1} parent=5 // pred_region
      %s3600 = ssub.s32 %s16, 2
      // Predicated region
      $region69: #{_lambda_.1} parent=67 // pred_check
        %p3601 = pneg %p260
      $region70: #{_lambda_.1} parent=67 // pred_check_branch
        %3603 = sbr.rel (%p3601) target = $region72
      $region71: #{_lambda_.1} parent=67 // pred_region
        %p3604 = scmp.lt.s32.totalorder %s22, 1
        %s3605 = scalar_select %p3604, %s22, 1
        %s3606 = smul.addr %s3605, 32
        %s3607 = smul.addr %s3606, 8
        %s3608 = scalar_lea.vmem %s10, %s3607
      $region72: #{_lambda_.1} parent=67 // pred_fallthru
        _
    $region68: #{_lambda_.1} parent=5 // pred_fallthru
      _
  $region6: #{_lambda_.1} parent=0 // loop_footer
    %s20 = sadd.s32 1, %s16
  $region7: #{_lambda_.1} parent=0 // loop_footer_branch
    %15 = sbr.rel target = $region3
  $region8: #{_lambda_.1} parent=0 // loop_exit
    _

</llo_original>
